<compile_context>
chip_gen: v7x
topology: tpu7x:2x2x1
jax: 0.10.0
libtpu: 0.0.40
codegen_flags: <defaults>
</compile_context>

<pallas_src>
import math
from typing import NamedTuple

import jax
import jax.numpy as jnp
from jax import lax
from jax.experimental import pallas as pl
from jax.experimental.pallas import tpu as pltpu

# ----------------------------- synthetic config -------------------------------
B = 2                   # batch
N = 16                  # max_num_particles
BN = B * N
DIM_CONT = 3            # dim_features_continuous
DIM_DISC = 1            # dim_features_discrete
VOCAB = 8               # vocab_size_features
DV = DIM_DISC * VOCAB
ENC_OUT = DIM_CONT + DV
H_LOCAL = 16            # encoder.dim_hidden_local
T_DIM = 64              # generator.transformer_dim == temb_dim
N_HEADS = 4
HEAD_DIM = T_DIM // N_HEADS
N_BLOCKS = 2            # generator.n_attn_blocks
DISC_HID = 32           # generator.discrete_head_hidden_dim
NORM_GROUPS = 32        # Normalize() == GroupNorm(32, eps=1e-6)
GROUP_SIZE = T_DIM // NORM_GROUPS
F_IN = DIM_CONT + DV + 1

# column layout of the single fused (BN, T_DIM) output slab
COL_CONT = 0            # [0, 3)   continuous head
COL_DISC = 8            # [8, 16)  discrete head (after MLP)
COL_ABS = 32            # [32, 33) absorbing head logit
COL_DISC_RAW = 40       # [40, 48) encoder discrete output — scratch columns, never read by host

# ----------------------------- packed-weight slab indices ---------------------
(M_W1, M_WG_MEAN, M_WG_SUM, M_W2_H, M_W2_G, M_W_HEADS, M_DH_W1, M_DH_W2,
 M_POST_W, M_PROJ_FEAT, M_TEMB_W, M_PRE_W) = range(12)


def M_RC1(l): return 12 + 7 * l + 0
def M_RT(l):  return 12 + 7 * l + 1
def M_RC2(l): return 12 + 7 * l + 2
def M_WQ(l):  return 12 + 7 * l + 3
def M_WK(l):  return 12 + 7 * l + 4
def M_WV(l):  return 12 + 7 * l + 5
def M_WOA(l): return 12 + 7 * l + 6


NM = 12 + 7 * N_BLOCKS          # 26 matrices of (64, 64), bf16

(V_B1, V_BG, V_B2, V_B_HEADS, V_DH_B1, V_DH_B2, V_POST_B,
 V_PM0, V_PM_DELTA, V_PROJ_B, V_TEMB_B, V_PRE_B) = range(12)

# per-layer vector order
_VL_NAMES = ["rn1_g", "rn1_b", "rc1_b", "rt_b", "rn2_g", "rn2_b", "rc2_b",
             "an_g", "an_b", "bq", "bk", "bv", "bo"]


def V_L(l, j): return 12 + 13 * l + j


NV = 12 + 13 * N_BLOCKS         # 38 vectors of (1, 64), f32


class OutputHeads(NamedTuple):
    continuous: jax.Array
    discrete: jax.Array
    absorbing: jax.Array


# ----------------------------- in-kernel helpers ------------------------------
def _sigmoid(x):
    return 1.0 / (1.0 + jnp.exp(-x))


def _silu(x):
    return x * _sigmoid(x)


def _leaky_relu(x):
    return jnp.where(x > 0, x, 0.01 * x)


def _selu(x):
    alpha = 1.6732632423543772
    scale = 1.0507009873554805
    return scale * jnp.where(x > 0, x, alpha * (jnp.exp(x) - 1.0))


# ----------------------------- fused Pallas kernel ----------------------------
def _fused_kernel(x_ref, m_ref, temb_ref, mats_ref, vecs_ref,
                  hmask_ref, abias_ref, pairm_ref, out_ref):
    f32 = jnp.float32
    bf16 = jnp.bfloat16

    x = x_ref[...]                 # (BN, T)   zero-padded EPiC input (cols 0:F_IN real), f32
    m = m_ref[...]                 # (BN, 1)   particle mask in {0, 1}
    temb_raw = temb_ref[...]       # (B, T)    sinusoidal timestep embedding
    hmask_s = hmask_ref[...]       # (4*BN, T) head-stacked 0/1 channel selector (const)
    abias = abias_ref[...]         # (BN,4*BN) block-diag batch bias (0 / -1e30) (const)
    pair_m = pairm_ref[...]        # (T, T)    GroupNorm pair-sum 0/1 matrix (const)

    def mat(i):
        return mats_ref[i]         # (T, T) bf16

    def vec(i):
        return vecs_ref[i]         # (1, T) f32

    def mm(a, b):
        # all heavy matmuls: bf16 operands, f32 accumulate on the MXU
        return jnp.dot(a.astype(bf16), b.astype(bf16), preferred_element_type=f32)

    # ---- per-batch reductions / broadcasts: off the MXU (sublane XLU/VPU ops) ----
    def bsum(h):                   # (BN, C) -> (B, C) per-batch sum over particles
        return jnp.sum(h.reshape(B, N, h.shape[-1]), axis=1)

    def bbcast(s):                 # (B, C) -> (BN, C) per-batch row broadcast over particles
        c = s.shape[-1]
        return jnp.broadcast_to(s[:, None, :], (B, N, c)).reshape(BN, c)

    inv_gn = 1.0 / float(N * GROUP_SIZE)

    def group_norm(h, gamma, beta):
        """GroupNorm(32, eps=1e-6) per batch element; batch folded into rows."""
        s1 = bsum(h)                                           # (B, T) per-channel sums
        s2 = bsum(h * h)
        # group (pair) sums along the channel axis — tiny f32 matmul, stats stay exact-ish
        ps1 = jnp.dot(s1, pair_m, preferred_element_type=f32)  # (B, T)
        ps2 = jnp.dot(s2, pair_m, preferred_element_type=f32)
        mean = ps1 * inv_gn
        ex2 = ps2 * inv_gn
        var = jnp.maximum(ex2 - mean * mean, 0.0)              # clamp against cancellation
        sc = gamma * lax.rsqrt(var + 1e-6)                     # (B, T)
        sh = beta - mean * sc
        return h * bbcast(sc) + bbcast(sh)

    # ---------------- EPiC encoder (batch folded into rows) -------------------
    h1 = _leaky_relu(mm(x, mat(M_W1)) + vec(V_B1))                    # (BN, T) cols 0:H real
    hm = h1 * m
    s_b = bsum(hm)                                                    # (B, T) masked sum pool
    cnt = jnp.maximum(bsum(m), 1.0)                                   # (B, 1)
    mean_b = s_b * pl.reciprocal(cnt, approx=True)                    # masked mean pool
    g_b = _leaky_relu(mm(mean_b, mat(M_WG_MEAN)) + mm(s_b, mat(M_WG_SUM)) + vec(V_BG))
    g_rows = bbcast(g_b)                                              # global -> rows
    h2 = _leaky_relu(mm(h1, mat(M_W2_H)) + mm(g_rows, mat(M_W2_G)) + vec(V_B2))
    # h2 == net_last_layer (cols 0:H_LOCAL)

    # ---------------- continuous + discrete heads (merged, shared LHS) --------
    # cont -> cols [0,3), disc_raw -> cols [40,48) of the same matmul output
    headout = mm(h2, mat(M_W_HEADS)) + vec(V_B_HEADS)
    dh_hid = _selu(mm(headout, mat(M_DH_W1)) + vec(V_DH_B1))          # hidden in cols [0,32)
    disc = mm(dh_hid, mat(M_DH_W2)) + vec(V_DH_B2)                    # -> cols [8,16)

    # ---------------- absorbing head -------------------------------------------
    temb = mm(temb_raw, mat(M_TEMB_W)) + vec(V_TEMB_B)                # temb_net
    t_act = _silu(temb)                                               # (B, T)
    # proj_in: net_last @ W_feat + one_hot(mask) @ W_mask + b  (one-hot folded into pm0/pm_delta)
    h = mm(h2, mat(M_PROJ_FEAT)) + vec(V_PROJ_B) + vec(V_PM0) + m * vec(V_PM_DELTA)

    scale = 1.0 / math.sqrt(HEAD_DIM)
    for l in range(N_BLOCKS):
        # ---- ResnetBlock (pointwise conv1d == per-particle linear) ----
        r = group_norm(h, vec(V_L(l, 0)), vec(V_L(l, 1)))
        r = _silu(r)
        r = mm(r, mat(M_RC1(l))) + vec(V_L(l, 2))
        tcon = mm(t_act, mat(M_RT(l))) + vec(V_L(l, 3))               # (B, T)
        r = r + bbcast(tcon)                                          # broadcast over particles
        r = group_norm(r, vec(V_L(l, 4)), vec(V_L(l, 5)))
        r = _silu(r)
        r = mm(r, mat(M_RC2(l))) + vec(V_L(l, 6))
        h = h + r

        # ---- AttnBlock: multi-head self-attn, all heads fused into wide matmuls ----
        a = group_norm(h, vec(V_L(l, 7)), vec(V_L(l, 8)))
        q = mm(a, mat(M_WQ(l))) + vec(V_L(l, 9))
        k = mm(a, mat(M_WK(l))) + vec(V_L(l, 10))
        v = mm(a, mat(M_WV(l))) + vec(V_L(l, 11))
        # head-stacked masked K/V: rows [h*BN,(h+1)*BN) carry head h's channels only
        kms = jnp.concatenate([k] * N_HEADS, axis=0) * hmask_s        # (4*BN, T)
        vms = jnp.concatenate([v] * N_HEADS, axis=0) * hmask_s        # (4*BN, T)
        # one lane-dense (BN, 4*BN) score matmul; contraction touches only head h's channels
        sc = lax.dot_general(q.astype(bf16), kms.astype(bf16),
                             (((1,), (1,)), ((), ())),
                             preferred_element_type=f32) * scale + abias
        sc = sc - jnp.max(sc, axis=-1, keepdims=True)                 # per-row shift: softmax-safe
        p = jnp.exp(sc)                                               # (BN, 4*BN)
        numer = mm(p, vms)                                            # (BN, T) disjoint head cols
        denom = mm(p, hmask_s) + 1e-20                                # per-head denominators bcast
        att = numer * pl.reciprocal(denom, approx=True)
        h = h + mm(att, mat(M_WOA(l))) + vec(V_L(l, 12))

    emb = mm(h, mat(M_PRE_W)) + vec(V_PRE_B)                          # pre_rate_proj
    absb = mm(emb, mat(M_POST_W)) + vec(V_POST_B)                     # -> col 32

    # single (BN, T_DIM) output slab; heads in disjoint columns (cols 40:48 are scratch)
    out_ref[...] = headout + disc + absb


def fused_forward(x_pad, mask_rows, temb_raw, mats, vecs, hmask_s, abias, pair_m):
    vmem = pltpu.MemorySpace.VMEM
    n_narrow = 18 + 8 * N_BLOCKS                      # (.,64)x(64,64)-class matmuls
    flops = int(2 * BN * T_DIM * T_DIM * n_narrow
                + N_BLOCKS * 3 * 2 * BN * T_DIM * (N_HEADS * BN))
    transc = int(N_BLOCKS * BN * N_HEADS * BN + 12 * BN * T_DIM)
    bytes_acc = int(mats.size * 2
                    + (vecs.size + x_pad.size + mask_rows.size + temb_raw.size
                       + hmask_s.size + abias.size + pair_m.size + BN * T_DIM) * 4)
    return pl.pallas_call(
        _fused_kernel,
        out_shape=jax.ShapeDtypeStruct((BN, T_DIM), jnp.float32),
        in_specs=[pl.BlockSpec(memory_space=vmem)] * 8,
        out_specs=pl.BlockSpec(memory_space=vmem),
        cost_estimate=pl.CostEstimate(flops=flops, transcendentals=transc,
                                      bytes_accessed=bytes_acc),
    )(x_pad, mask_rows, temb_raw, mats, vecs, hmask_s, abias, pair_m)


# ----------------------------- glue (plain JAX) -------------------------------
def get_timestep_embedding(timesteps, embedding_dim):
    half = embedding_dim // 2
    emb = math.log(10000.0) / (half - 1)
    emb = jnp.exp(jnp.arange(half, dtype=jnp.float32) * -emb)
    emb = timesteps.astype(jnp.float32)[:, None] * emb[None, :]
    return jnp.concatenate([jnp.sin(emb), jnp.cos(emb)], axis=1)


def make_consts():
    """Hoisted kernel constants, built host-side (keeps iota/compare + live vregs out of kernel)."""
    lane = jnp.arange(T_DIM)[None, :]                                     # (1, T)
    rows = jnp.arange(N_HEADS * BN)[:, None]                              # (4*BN, 1)
    hmask_s = (lane // HEAD_DIM == rows // BN).astype(jnp.float32)        # (4*BN, T)
    rb = (jnp.arange(BN) // N)[:, None]
    cb = ((jnp.arange(N_HEADS * BN) % BN) // N)[None, :]
    abias = jnp.where(rb == cb, 0.0, -1e30).astype(jnp.float32)           # (BN, 4*BN)
    gi = jnp.arange(T_DIM) // GROUP_SIZE
    pair_m = (gi[:, None] == gi[None, :]).astype(jnp.float32)             # (T, T)
    return hmask_s, abias, pair_m


def init_params(key):
    keys = iter(jax.random.split(key, 64))

    def w(shape, fan_in):
        return jax.random.normal(next(keys), shape, jnp.float32) / math.sqrt(fan_in)

    z = lambda *s: jnp.zeros(s, jnp.float32)
    L = N_BLOCKS
    p = {}
    # EPiC encoder (simplified stand-in)
    p["epic_w1"] = w((F_IN, H_LOCAL), F_IN);                p["epic_b1"] = z(1, H_LOCAL)
    p["epic_wg"] = w((2 * H_LOCAL, H_LOCAL), 2 * H_LOCAL);  p["epic_bg"] = z(1, H_LOCAL)
    p["epic_w2"] = w((2 * H_LOCAL, H_LOCAL), 2 * H_LOCAL);  p["epic_b2"] = z(1, H_LOCAL)
    p["epic_wo"] = w((H_LOCAL, ENC_OUT), H_LOCAL);          p["epic_bo"] = z(1, ENC_OUT)
    # discrete head MLP
    p["dh_w1"] = w((DV, DISC_HID), DV);        p["dh_b1"] = z(1, DISC_HID)
    p["dh_w2"] = w((DISC_HID, DV), DISC_HID);  p["dh_b2"] = z(1, DV)
    # temb_net
    p["temb_w"] = w((T_DIM, T_DIM), T_DIM);    p["temb_b"] = z(1, T_DIM)
    # absorbing head
    p["proj_w"] = w((H_LOCAL + 2, T_DIM), H_LOCAL + 2);  p["proj_b"] = z(1, T_DIM)
    ones = jnp.ones((L, 1, T_DIM), jnp.float32)
    zer3 = jnp.zeros((L, 1, T_DIM), jnp.float32)
    p["rn1_g"], p["rn1_b"] = ones, zer3
    p["rc1_w"] = w((L, T_DIM, T_DIM), T_DIM);  p["rc1_b"] = zer3
    p["rt_w"] = w((L, T_DIM, T_DIM), T_DIM);   p["rt_b"] = zer3
    p["rn2_g"], p["rn2_b"] = ones, zer3
    p["rc2_w"] = w((L, T_DIM, T_DIM), T_DIM);  p["rc2_b"] = zer3
    p["an_g"], p["an_b"] = ones, zer3
    for nm in ("wq", "wk", "wv", "wo"):
        p[nm] = w((L, T_DIM, T_DIM), T_DIM)
    for nm in ("bq", "bk", "bv", "bo"):
        p[nm] = zer3
    p["pre_w"] = w((T_DIM, T_DIM), T_DIM);   p["pre_b"] = z(1, T_DIM)
    p["post_w"] = w((T_DIM, 1), T_DIM);      p["post_b"] = z(1, 1)
    return p


def pack_params(p):
    """Zero-pad / place every weight into two slabs: mats (NM,64,64) bf16, vecs (NV,1,64) f32."""
    mats = jnp.zeros((NM, T_DIM, T_DIM), jnp.float32)
    vecs = jnp.zeros((NV, 1, T_DIM), jnp.float32)

    def put_m(mref, i, wmat, r0=0, c0=0):
        return mref.at[i, r0:r0 + wmat.shape[0], c0:c0 + wmat.shape[1]].set(wmat)

    def put_v(vref, i, row, c0=0):
        return vref.at[i, 0, c0:c0 + row.shape[0]].set(row)

    H = H_LOCAL
    mats = put_m(mats, M_W1, p["epic_w1"])
    mats = put_m(mats, M_WG_MEAN, p["epic_wg"][:H])
    mats = put_m(mats, M_WG_SUM, p["epic_wg"][H:])
    mats = put_m(mats, M_W2_H, p["epic_w2"][:H])
    mats = put_m(mats, M_W2_G, p["epic_w2"][H:])
    # merged output head: continuous -> cols [0,3), raw discrete -> scratch cols [40,48)
    mats = put_m(mats, M_W_HEADS, p["epic_wo"][:, :DIM_CONT], c0=COL_CONT)
    mats = put_m(mats, M_W_HEADS, p["epic_wo"][:, DIM_CONT:], c0=COL_DISC_RAW)
    mats = put_m(mats, M_DH_W1, p["dh_w1"], r0=COL_DISC_RAW)      # reads cols [40,48)
    mats = put_m(mats, M_DH_W2, p["dh_w2"], c0=COL_DISC)
    mats = put_m(mats, M_POST_W, p["post_w"], c0=COL_ABS)
    mats = put_m(mats, M_PROJ_FEAT, p["proj_w"][:H])
    mats = put_m(mats, M_TEMB_W, p["temb_w"])
    mats = put_m(mats, M_PRE_W, p["pre_w"])
    for l in range(N_BLOCKS):
        mats = put_m(mats, M_RC1(l), p["rc1_w"][l])
        mats = put_m(mats, M_RT(l), p["rt_w"][l])
        mats = put_m(mats, M_RC2(l), p["rc2_w"][l])
        mats = put_m(mats, M_WQ(l), p["wq"][l])
        mats = put_m(mats, M_WK(l), p["wk"][l])
        mats = put_m(mats, M_WV(l), p["wv"][l])
        mats = put_m(mats, M_WOA(l), p["wo"][l])

    vecs = put_v(vecs, V_B1, p["epic_b1"][0])
    vecs = put_v(vecs, V_BG, p["epic_bg"][0])
    vecs = put_v(vecs, V_B2, p["epic_b2"][0])
    vecs = put_v(vecs, V_B_HEADS, p["epic_bo"][0, :DIM_CONT], c0=COL_CONT)
    vecs = put_v(vecs, V_B_HEADS, p["epic_bo"][0, DIM_CONT:], c0=COL_DISC_RAW)
    vecs = put_v(vecs, V_DH_B1, p["dh_b1"][0])
    vecs = put_v(vecs, V_DH_B2, p["dh_b2"][0], c0=COL_DISC)
    vecs = put_v(vecs, V_POST_B, p["post_b"][0], c0=COL_ABS)
    # one_hot(mask) @ proj_w[H:H+2]  ==  pm0 + mask * pm_delta
    vecs = put_v(vecs, V_PM0, p["proj_w"][H])
    vecs = put_v(vecs, V_PM_DELTA, p["proj_w"][H + 1] - p["proj_w"][H])
    vecs = put_v(vecs, V_PROJ_B, p["proj_b"][0])
    vecs = put_v(vecs, V_TEMB_B, p["temb_b"][0])
    vecs = put_v(vecs, V_PRE_B, p["pre_b"][0])
    for l in range(N_BLOCKS):
        for j, nm in enumerate(_VL_NAMES):
            vecs = put_v(vecs, V_L(l, j), p[nm][l, 0])
    # bf16 weights for the MXU; biases / GN affine params stay f32
    return mats.astype(jnp.bfloat16), vecs


@jax.jit
def absorbing_generator_forward(mats, vecs, consts, time_t, continuous, discrete, mask):
    hmask_s, abias, pair_m = consts
    # ---- pack kernel inputs (plain XLA, layout plumbing only) ----
    disc_oh = jax.nn.one_hot(discrete, VOCAB, dtype=jnp.float32).reshape(B, N, DV)
    t_b = jnp.broadcast_to(time_t.reshape(B, 1, 1), (B, N, 1))
    x_in = jnp.concatenate([continuous, disc_oh, t_b], axis=-1)       # (B, N, F_IN)
    x_pad = jnp.zeros((B, N, T_DIM), jnp.float32).at[..., :F_IN].set(x_in)
    x_pad = x_pad.reshape(BN, T_DIM)
    mask_rows = mask.reshape(BN, 1)
    ts = time_t.reshape(B)
    temb_raw = get_timestep_embedding(ts * 1000.0, T_DIM)             # (B, T_DIM)

    # ---- one fused Pallas kernel for the whole forward pass ----
    slab = fused_forward(x_pad, mask_rows, temb_raw, mats, vecs, hmask_s, abias, pair_m)

    continuous_head = slab[:, COL_CONT:COL_CONT + DIM_CONT].reshape(B, N, DIM_CONT)
    discrete_head = slab[:, COL_DISC:COL_DISC + DV].reshape(B, N, DV)
    absorbing_head = slab[:, COL_ABS:COL_ABS + 1].reshape(B, N, 1)
    return OutputHeads(continuous_head, discrete_head, absorbing_head)


# ----------------------------- main --------------------------------------------
if __name__ == "__main__":
    key = jax.random.PRNGKey(0)
    pkey, dkey = jax.random.split(key)
    params = init_params(pkey)
    mats, vecs = pack_params(params)
    consts = make_consts()

    k1, k2, k3, k4 = jax.random.split(dkey, 4)
    continuous = jax.random.normal(k1, (B, N, DIM_CONT), jnp.float32)
    discrete = jax.random.randint(k2, (B, N, DIM_DISC), 0, VOCAB)
    mask = (jax.random.uniform(k3, (B, N, 1)) > 0.3).astype(jnp.float32)  # mask_t in {0,1}
    time_t = jax.random.uniform(k4, (B, 1, 1), jnp.float32)               # state.time

    heads = absorbing_generator_forward(mats, vecs, consts, time_t, continuous, discrete, mask)
    heads = jax.tree_util.tree_map(jax.block_until_ready, heads)

    assert heads.continuous.shape == (B, N, DIM_CONT)
    assert heads.discrete.shape == (B, N, DV)
    assert heads.absorbing.shape == (B, N, 1)
    assert all(bool(jnp.all(jnp.isfinite(x))) for x in heads)
    print("KERNEL_OK")
</pallas_src>

<mosaic_0001>
module attributes {stable_mosaic.version = 11 : i64} {
  func.func @_fused_kernel(%arg0: memref<32x64xf32, #tpu.memory_space<vmem>>, %arg1: memref<32x1xf32, #tpu.memory_space<vmem>>, %arg2: memref<2x64xf32, #tpu.memory_space<vmem>>, %arg3: memref<26x64x64xbf16, #tpu.memory_space<vmem>>, %arg4: memref<38x1x64xf32, #tpu.memory_space<vmem>>, %arg5: memref<128x64xf32, #tpu.memory_space<vmem>>, %arg6: memref<32x128xf32, #tpu.memory_space<vmem>>, %arg7: memref<64x64xf32, #tpu.memory_space<vmem>>, %arg8: memref<32x64xf32, #tpu.memory_space<vmem>>) attributes {dimension_semantics = [], scalar_prefetch = 0 : i64, scratch_operands = 0 : i64, tpu.core_type = #tpu.core_type<tc>} {
    %c0 = arith.constant 0 : index
    %c0_0 = arith.constant 0 : index
    %0 = vector.load %arg0[%c0, %c0_0] : memref<32x64xf32, #tpu.memory_space<vmem>>, vector<32x64xf32>
    %c0_1 = arith.constant 0 : index
    %c0_2 = arith.constant 0 : index
    %1 = vector.load %arg1[%c0_1, %c0_2] : memref<32x1xf32, #tpu.memory_space<vmem>>, vector<32x1xf32>
    %c0_3 = arith.constant 0 : index
    %c0_4 = arith.constant 0 : index
    %2 = vector.load %arg2[%c0_3, %c0_4] : memref<2x64xf32, #tpu.memory_space<vmem>>, vector<2x64xf32>
    %c0_5 = arith.constant 0 : index
    %c0_6 = arith.constant 0 : index
    %3 = vector.load %arg5[%c0_5, %c0_6] : memref<128x64xf32, #tpu.memory_space<vmem>>, vector<128x64xf32>
    %c0_7 = arith.constant 0 : index
    %c0_8 = arith.constant 0 : index
    %4 = vector.load %arg6[%c0_7, %c0_8] : memref<32x128xf32, #tpu.memory_space<vmem>>, vector<32x128xf32>
    %c0_9 = arith.constant 0 : index
    %c0_10 = arith.constant 0 : index
    %5 = vector.load %arg7[%c0_9, %c0_10] : memref<64x64xf32, #tpu.memory_space<vmem>>, vector<64x64xf32>
    %c0_11 = arith.constant 0 : index
    %c0_12 = arith.constant 0 : index
    %c0_13 = arith.constant 0 : index
    %6 = vector.load %arg3[%c0_11, %c0_12, %c0_13] : memref<26x64x64xbf16, #tpu.memory_space<vmem>>, vector<1x64x64xbf16>
    %7 = vector.shape_cast %6 : vector<1x64x64xbf16> to vector<64x64xbf16>
    %8 = arith.truncf %0 : vector<32x64xf32> to vector<32x64xbf16>
    %cst = arith.constant dense<0.000000e+00> : vector<32x64xf32>
    %9 = tpu.matmul %8, %7, %cst {dimension_numbers = #tpu.dot_dimension_numbers<[1], [0], [0], [1], [0, 0, 1, 1], [], []>} : vector<32x64xbf16>, vector<64x64xbf16>, vector<32x64xf32> -> vector<32x64xf32>
    %c0_14 = arith.constant 0 : index
    %c0_15 = arith.constant 0 : index
    %c0_16 = arith.constant 0 : index
    %10 = vector.load %arg4[%c0_14, %c0_15, %c0_16] : memref<38x1x64xf32, #tpu.memory_space<vmem>>, vector<1x1x64xf32>
    %11 = vector.shape_cast %10 : vector<1x1x64xf32> to vector<1x64xf32>
    %12 = vector.broadcast %11 : vector<1x64xf32> to vector<32x64xf32>
    %13 = arith.addf %9, %12 : vector<32x64xf32>
    %cst_17 = arith.constant 0.000000e+00 : f32
    %14 = vector.broadcast %cst_17 : f32 to vector<32x64xf32>
    %15 = arith.cmpf ogt, %13, %14 : vector<32x64xf32>
    %cst_18 = arith.constant 0.00999999977 : f32
    %16 = vector.broadcast %cst_18 : f32 to vector<32x64xf32>
    %17 = arith.mulf %16, %13 : vector<32x64xf32>
    %18 = arith.select %15, %13, %17 : vector<32x64xi1>, vector<32x64xf32>
    %19 = vector.broadcast %1 : vector<32x1xf32> to vector<32x64xf32>
    %20 = arith.mulf %18, %19 : vector<32x64xf32>
    %21 = vector.shape_cast %20 : vector<32x64xf32> to vector<2x16x64xf32>
    %cst_19 = arith.constant dense<0.000000e+00> : vector<2x64xf32>
    %22 = vector.multi_reduction <add>, %21, %cst_19 [1] : vector<2x16x64xf32> to vector<2x64xf32>
    %23 = vector.shape_cast %1 : vector<32x1xf32> to vector<2x16x1xf32>
    %cst_20 = arith.constant dense<0.000000e+00> : vector<2x1xf32>
    %24 = vector.multi_reduction <add>, %23, %cst_20 [1] : vector<2x16x1xf32> to vector<2x1xf32>
    %cst_21 = arith.constant 1.000000e+00 : f32
    %25 = vector.broadcast %cst_21 : f32 to vector<2x1xf32>
    %26 = arith.maximumf %24, %25 : vector<2x1xf32>
    %27 = tpu.reciprocal %26 {approx = true} : vector<2x1xf32> -> vector<2x1xf32>
    %28 = vector.broadcast %27 : vector<2x1xf32> to vector<2x64xf32>
    %29 = arith.mulf %22, %28 : vector<2x64xf32>
    %c1 = arith.constant 1 : index
    %c0_22 = arith.constant 0 : index
    %c0_23 = arith.constant 0 : index
    %30 = vector.load %arg3[%c1, %c0_22, %c0_23] : memref<26x64x64xbf16, #tpu.memory_space<vmem>>, vector<1x64x64xbf16>
    %31 = vector.shape_cast %30 : vector<1x64x64xbf16> to vector<64x64xbf16>
    %32 = arith.truncf %29 : vector<2x64xf32> to vector<2x64xbf16>
    %cst_24 = arith.constant dense<0.000000e+00> : vector<2x64xf32>
    %33 = tpu.matmul %32, %31, %cst_24 {dimension_numbers = #tpu.dot_dimension_numbers<[1], [0], [0], [1], [0, 0, 1, 1], [], []>} : vector<2x64xbf16>, vector<64x64xbf16>, vector<2x64xf32> -> vector<2x64xf32>
    %c2 = arith.constant 2 : index
    %c0_25 = arith.constant 0 : index
    %c0_26 = arith.constant 0 : index
    %34 = vector.load %arg3[%c2, %c0_25, %c0_26] : memref<26x64x64xbf16, #tpu.memory_space<vmem>>, vector<1x64x64xbf16>
    %35 = vector.shape_cast %34 : vector<1x64x64xbf16> to vector<64x64xbf16>
    %36 = arith.truncf %22 : vector<2x64xf32> to vector<2x64xbf16>
    %cst_27 = arith.constant dense<0.000000e+00> : vector<2x64xf32>
    %37 = tpu.matmul %36, %35, %cst_27 {dimension_numbers = #tpu.dot_dimension_numbers<[1], [0], [0], [1], [0, 0, 1, 1], [], []>} : vector<2x64xbf16>, vector<64x64xbf16>, vector<2x64xf32> -> vector<2x64xf32>
    %38 = arith.addf %33, %37 : vector<2x64xf32>
    %c1_28 = arith.constant 1 : index
    %c0_29 = arith.constant 0 : index
    %c0_30 = arith.constant 0 : index
    %39 = vector.load %arg4[%c1_28, %c0_29, %c0_30] : memref<38x1x64xf32, #tpu.memory_space<vmem>>, vector<1x1x64xf32>
    %40 = vector.shape_cast %39 : vector<1x1x64xf32> to vector<1x64xf32>
    %41 = vector.broadcast %40 : vector<1x64xf32> to vector<2x64xf32>
    %42 = arith.addf %38, %41 : vector<2x64xf32>
    %cst_31 = arith.constant 0.000000e+00 : f32
    %43 = vector.broadcast %cst_31 : f32 to vector<2x64xf32>
    %44 = arith.cmpf ogt, %42, %43 : vector<2x64xf32>
    %cst_32 = arith.constant 0.00999999977 : f32
    %45 = vector.broadcast %cst_32 : f32 to vector<2x64xf32>
    %46 = arith.mulf %45, %42 : vector<2x64xf32>
    %47 = arith.select %44, %42, %46 : vector<2x64xi1>, vector<2x64xf32>
    %48 = vector.shape_cast %47 : vector<2x64xf32> to vector<2x1x64xf32>
    %49 = vector.shape_cast %48 : vector<2x1x64xf32> to vector<2x1x64xf32>
    %50 = vector.broadcast %49 : vector<2x1x64xf32> to vector<2x16x64xf32>
    %51 = vector.shape_cast %50 : vector<2x16x64xf32> to vector<32x64xf32>
    %c3 = arith.constant 3 : index
    %c0_33 = arith.constant 0 : index
    %c0_34 = arith.constant 0 : index
    %52 = vector.load %arg3[%c3, %c0_33, %c0_34] : memref<26x64x64xbf16, #tpu.memory_space<vmem>>, vector<1x64x64xbf16>
    %53 = vector.shape_cast %52 : vector<1x64x64xbf16> to vector<64x64xbf16>
    %54 = arith.truncf %18 : vector<32x64xf32> to vector<32x64xbf16>
    %cst_35 = arith.constant dense<0.000000e+00> : vector<32x64xf32>
    %55 = tpu.matmul %54, %53, %cst_35 {dimension_numbers = #tpu.dot_dimension_numbers<[1], [0], [0], [1], [0, 0, 1, 1], [], []>} : vector<32x64xbf16>, vector<64x64xbf16>, vector<32x64xf32> -> vector<32x64xf32>
    %c4 = arith.constant 4 : index
    %c0_36 = arith.constant 0 : index
    %c0_37 = arith.constant 0 : index
    %56 = vector.load %arg3[%c4, %c0_36, %c0_37] : memref<26x64x64xbf16, #tpu.memory_space<vmem>>, vector<1x64x64xbf16>
    %57 = vector.shape_cast %56 : vector<1x64x64xbf16> to vector<64x64xbf16>
    %58 = arith.truncf %51 : vector<32x64xf32> to vector<32x64xbf16>
    %cst_38 = arith.constant dense<0.000000e+00> : vector<32x64xf32>
    %59 = tpu.matmul %58, %57, %cst_38 {dimension_numbers = #tpu.dot_dimension_numbers<[1], [0], [0], [1], [0, 0, 1, 1], [], []>} : vector<32x64xbf16>, vector<64x64xbf16>, vector<32x64xf32> -> vector<32x64xf32>
    %60 = arith.addf %55, %59 : vector<32x64xf32>
    %c2_39 = arith.constant 2 : index
    %c0_40 = arith.constant 0 : index
    %c0_41 = arith.constant 0 : index
    %61 = vector.load %arg4[%c2_39, %c0_40, %c0_41] : memref<38x1x64xf32, #tpu.memory_space<vmem>>, vector<1x1x64xf32>
    %62 = vector.shape_cast %61 : vector<1x1x64xf32> to vector<1x64xf32>
    %63 = vector.broadcast %62 : vector<1x64xf32> to vector<32x64xf32>
    %64 = arith.addf %60, %63 : vector<32x64xf32>
    %cst_42 = arith.constant 0.000000e+00 : f32
    %65 = vector.broadcast %cst_42 : f32 to vector<32x64xf32>
    %66 = arith.cmpf ogt, %64, %65 : vector<32x64xf32>
    %cst_43 = arith.constant 0.00999999977 : f32
    %67 = vector.broadcast %cst_43 : f32 to vector<32x64xf32>
    %68 = arith.mulf %67, %64 : vector<32x64xf32>
    %69 = arith.select %66, %64, %68 : vector<32x64xi1>, vector<32x64xf32>
    %c5 = arith.constant 5 : index
    %c0_44 = arith.constant 0 : index
    %c0_45 = arith.constant 0 : index
    %70 = vector.load %arg3[%c5, %c0_44, %c0_45] : memref<26x64x64xbf16, #tpu.memory_space<vmem>>, vector<1x64x64xbf16>
    %71 = vector.shape_cast %70 : vector<1x64x64xbf16> to vector<64x64xbf16>
    %72 = arith.truncf %69 : vector<32x64xf32> to vector<32x64xbf16>
    %cst_46 = arith.constant dense<0.000000e+00> : vector<32x64xf32>
    %73 = tpu.matmul %72, %71, %cst_46 {dimension_numbers = #tpu.dot_dimension_numbers<[1], [0], [0], [1], [0, 0, 1, 1], [], []>} : vector<32x64xbf16>, vector<64x64xbf16>, vector<32x64xf32> -> vector<32x64xf32>
    %c3_47 = arith.constant 3 : index
    %c0_48 = arith.constant 0 : index
    %c0_49 = arith.constant 0 : index
    %74 = vector.load %arg4[%c3_47, %c0_48, %c0_49] : memref<38x1x64xf32, #tpu.memory_space<vmem>>, vector<1x1x64xf32>
    %75 = vector.shape_cast %74 : vector<1x1x64xf32> to vector<1x64xf32>
    %76 = vector.broadcast %75 : vector<1x64xf32> to vector<32x64xf32>
    %77 = arith.addf %73, %76 : vector<32x64xf32>
    %c6 = arith.constant 6 : index
    %c0_50 = arith.constant 0 : index
    %c0_51 = arith.constant 0 : index
    %78 = vector.load %arg3[%c6, %c0_50, %c0_51] : memref<26x64x64xbf16, #tpu.memory_space<vmem>>, vector<1x64x64xbf16>
    %79 = vector.shape_cast %78 : vector<1x64x64xbf16> to vector<64x64xbf16>
    %80 = arith.truncf %77 : vector<32x64xf32> to vector<32x64xbf16>
    %cst_52 = arith.constant dense<0.000000e+00> : vector<32x64xf32>
    %81 = tpu.matmul %80, %79, %cst_52 {dimension_numbers = #tpu.dot_dimension_numbers<[1], [0], [0], [1], [0, 0, 1, 1], [], []>} : vector<32x64xbf16>, vector<64x64xbf16>, vector<32x64xf32> -> vector<32x64xf32>
    %c4_53 = arith.constant 4 : index
    %c0_54 = arith.constant 0 : index
    %c0_55 = arith.constant 0 : index
    %82 = vector.load %arg4[%c4_53, %c0_54, %c0_55] : memref<38x1x64xf32, #tpu.memory_space<vmem>>, vector<1x1x64xf32>
    %83 = vector.shape_cast %82 : vector<1x1x64xf32> to vector<1x64xf32>
    %84 = vector.broadcast %83 : vector<1x64xf32> to vector<32x64xf32>
    %85 = arith.addf %81, %84 : vector<32x64xf32>
    %cst_56 = arith.constant 0.000000e+00 : f32
    %86 = vector.broadcast %cst_56 : f32 to vector<32x64xf32>
    %87 = arith.cmpf ogt, %85, %86 : vector<32x64xf32>
    %88 = math.exp %85 : vector<32x64xf32>
    %cst_57 = arith.constant 1.000000e+00 : f32
    %89 = vector.broadcast %cst_57 : f32 to vector<32x64xf32>
    %90 = arith.subf %88, %89 : vector<32x64xf32>
    %cst_58 = arith.constant 1.67326319 : f32
    %91 = vector.broadcast %cst_58 : f32 to vector<32x64xf32>
    %92 = arith.mulf %91, %90 : vector<32x64xf32>
    %93 = arith.select %87, %85, %92 : vector<32x64xi1>, vector<32x64xf32>
    %cst_59 = arith.constant 1.05070102 : f32
    %94 = vector.broadcast %cst_59 : f32 to vector<32x64xf32>
    %95 = arith.mulf %94, %93 : vector<32x64xf32>
    %c7 = arith.constant 7 : index
    %c0_60 = arith.constant 0 : index
    %c0_61 = arith.constant 0 : index
    %96 = vector.load %arg3[%c7, %c0_60, %c0_61] : memref<26x64x64xbf16, #tpu.memory_space<vmem>>, vector<1x64x64xbf16>
    %97 = vector.shape_cast %96 : vector<1x64x64xbf16> to vector<64x64xbf16>
    %98 = arith.truncf %95 : vector<32x64xf32> to vector<32x64xbf16>
    %cst_62 = arith.constant dense<0.000000e+00> : vector<32x64xf32>
    %99 = tpu.matmul %98, %97, %cst_62 {dimension_numbers = #tpu.dot_dimension_numbers<[1], [0], [0], [1], [0, 0, 1, 1], [], []>} : vector<32x64xbf16>, vector<64x64xbf16>, vector<32x64xf32> -> vector<32x64xf32>
    %c5_63 = arith.constant 5 : index
    %c0_64 = arith.constant 0 : index
    %c0_65 = arith.constant 0 : index
    %100 = vector.load %arg4[%c5_63, %c0_64, %c0_65] : memref<38x1x64xf32, #tpu.memory_space<vmem>>, vector<1x1x64xf32>
    %101 = vector.shape_cast %100 : vector<1x1x64xf32> to vector<1x64xf32>
    %102 = vector.broadcast %101 : vector<1x64xf32> to vector<32x64xf32>
    %103 = arith.addf %99, %102 : vector<32x64xf32>
    %c10 = arith.constant 10 : index
    %c0_66 = arith.constant 0 : index
    %c0_67 = arith.constant 0 : index
    %104 = vector.load %arg3[%c10, %c0_66, %c0_67] : memref<26x64x64xbf16, #tpu.memory_space<vmem>>, vector<1x64x64xbf16>
    %105 = vector.shape_cast %104 : vector<1x64x64xbf16> to vector<64x64xbf16>
    %106 = arith.truncf %2 : vector<2x64xf32> to vector<2x64xbf16>
    %cst_68 = arith.constant dense<0.000000e+00> : vector<2x64xf32>
    %107 = tpu.matmul %106, %105, %cst_68 {dimension_numbers = #tpu.dot_dimension_numbers<[1], [0], [0], [1], [0, 0, 1, 1], [], []>} : vector<2x64xbf16>, vector<64x64xbf16>, vector<2x64xf32> -> vector<2x64xf32>
    %c10_69 = arith.constant 10 : index
    %c0_70 = arith.constant 0 : index
    %c0_71 = arith.constant 0 : index
    %108 = vector.load %arg4[%c10_69, %c0_70, %c0_71] : memref<38x1x64xf32, #tpu.memory_space<vmem>>, vector<1x1x64xf32>
    %109 = vector.shape_cast %108 : vector<1x1x64xf32> to vector<1x64xf32>
    %110 = vector.broadcast %109 : vector<1x64xf32> to vector<2x64xf32>
    %111 = arith.addf %107, %110 : vector<2x64xf32>
    %cst_72 = arith.constant 0.000000e+00 : f32
    %112 = vector.broadcast %cst_72 : f32 to vector<2x64xf32>
    %113 = arith.subf %112, %111 : vector<2x64xf32>
    %114 = math.exp %113 : vector<2x64xf32>
    %cst_73 = arith.constant 1.000000e+00 : f32
    %115 = vector.broadcast %cst_73 : f32 to vector<2x64xf32>
    %116 = arith.addf %115, %114 : vector<2x64xf32>
    %cst_74 = arith.constant 1.000000e+00 : f32
    %117 = vector.broadcast %cst_74 : f32 to vector<2x64xf32>
    %118 = arith.divf %117, %116 : vector<2x64xf32>
    %119 = arith.mulf %111, %118 : vector<2x64xf32>
    %c9 = arith.constant 9 : index
    %c0_75 = arith.constant 0 : index
    %c0_76 = arith.constant 0 : index
    %120 = vector.load %arg3[%c9, %c0_75, %c0_76] : memref<26x64x64xbf16, #tpu.memory_space<vmem>>, vector<1x64x64xbf16>
    %121 = vector.shape_cast %120 : vector<1x64x64xbf16> to vector<64x64xbf16>
    %122 = arith.truncf %69 : vector<32x64xf32> to vector<32x64xbf16>
    %cst_77 = arith.constant dense<0.000000e+00> : vector<32x64xf32>
    %123 = tpu.matmul %122, %121, %cst_77 {dimension_numbers = #tpu.dot_dimension_numbers<[1], [0], [0], [1], [0, 0, 1, 1], [], []>} : vector<32x64xbf16>, vector<64x64xbf16>, vector<32x64xf32> -> vector<32x64xf32>
    %c9_78 = arith.constant 9 : index
    %c0_79 = arith.constant 0 : index
    %c0_80 = arith.constant 0 : index
    %124 = vector.load %arg4[%c9_78, %c0_79, %c0_80] : memref<38x1x64xf32, #tpu.memory_space<vmem>>, vector<1x1x64xf32>
    %125 = vector.shape_cast %124 : vector<1x1x64xf32> to vector<1x64xf32>
    %126 = vector.broadcast %125 : vector<1x64xf32> to vector<32x64xf32>
    %127 = arith.addf %123, %126 : vector<32x64xf32>
    %c7_81 = arith.constant 7 : index
    %c0_82 = arith.constant 0 : index
    %c0_83 = arith.constant 0 : index
    %128 = vector.load %arg4[%c7_81, %c0_82, %c0_83] : memref<38x1x64xf32, #tpu.memory_space<vmem>>, vector<1x1x64xf32>
    %129 = vector.shape_cast %128 : vector<1x1x64xf32> to vector<1x64xf32>
    %130 = vector.broadcast %129 : vector<1x64xf32> to vector<32x64xf32>
    %131 = arith.addf %127, %130 : vector<32x64xf32>
    %c8 = arith.constant 8 : index
    %c0_84 = arith.constant 0 : index
    %c0_85 = arith.constant 0 : index
    %132 = vector.load %arg4[%c8, %c0_84, %c0_85] : memref<38x1x64xf32, #tpu.memory_space<vmem>>, vector<1x1x64xf32>
    %133 = vector.shape_cast %132 : vector<1x1x64xf32> to vector<1x64xf32>
    %134 = vector.broadcast %1 : vector<32x1xf32> to vector<32x64xf32>
    %135 = vector.broadcast %133 : vector<1x64xf32> to vector<32x64xf32>
    %136 = arith.mulf %134, %135 : vector<32x64xf32>
    %137 = arith.addf %131, %136 : vector<32x64xf32>
    %c12 = arith.constant 12 : index
    %c0_86 = arith.constant 0 : index
    %c0_87 = arith.constant 0 : index
    %138 = vector.load %arg4[%c12, %c0_86, %c0_87] : memref<38x1x64xf32, #tpu.memory_space<vmem>>, vector<1x1x64xf32>
    %139 = vector.shape_cast %138 : vector<1x1x64xf32> to vector<1x64xf32>
    %c13 = arith.constant 13 : index
    %c0_88 = arith.constant 0 : index
    %c0_89 = arith.constant 0 : index
    %140 = vector.load %arg4[%c13, %c0_88, %c0_89] : memref<38x1x64xf32, #tpu.memory_space<vmem>>, vector<1x1x64xf32>
    %141 = vector.shape_cast %140 : vector<1x1x64xf32> to vector<1x64xf32>
    %142 = vector.shape_cast %137 : vector<32x64xf32> to vector<2x16x64xf32>
    %cst_90 = arith.constant dense<0.000000e+00> : vector<2x64xf32>
    %143 = vector.multi_reduction <add>, %142, %cst_90 [1] : vector<2x16x64xf32> to vector<2x64xf32>
    %144 = arith.mulf %137, %137 : vector<32x64xf32>
    %145 = vector.shape_cast %144 : vector<32x64xf32> to vector<2x16x64xf32>
    %cst_91 = arith.constant dense<0.000000e+00> : vector<2x64xf32>
    %146 = vector.multi_reduction <add>, %145, %cst_91 [1] : vector<2x16x64xf32> to vector<2x64xf32>
    %cst_92 = arith.constant dense<0.000000e+00> : vector<2x64xf32>
    %147 = tpu.matmul %143, %5, %cst_92 {dimension_numbers = #tpu.dot_dimension_numbers<[1], [0], [0], [1], [0, 0, 1, 1], [], []>} : vector<2x64xf32>, vector<64x64xf32>, vector<2x64xf32> -> vector<2x64xf32>
    %cst_93 = arith.constant dense<0.000000e+00> : vector<2x64xf32>
    %148 = tpu.matmul %146, %5, %cst_93 {dimension_numbers = #tpu.dot_dimension_numbers<[1], [0], [0], [1], [0, 0, 1, 1], [], []>} : vector<2x64xf32>, vector<64x64xf32>, vector<2x64xf32> -> vector<2x64xf32>
    %cst_94 = arith.constant 3.125000e-02 : f32
    %149 = vector.broadcast %cst_94 : f32 to vector<2x64xf32>
    %150 = arith.mulf %147, %149 : vector<2x64xf32>
    %cst_95 = arith.constant 3.125000e-02 : f32
    %151 = vector.broadcast %cst_95 : f32 to vector<2x64xf32>
    %152 = arith.mulf %148, %151 : vector<2x64xf32>
    %153 = arith.mulf %150, %150 : vector<2x64xf32>
    %154 = arith.subf %152, %153 : vector<2x64xf32>
    %cst_96 = arith.constant 0.000000e+00 : f32
    %155 = vector.broadcast %cst_96 : f32 to vector<2x64xf32>
    %156 = arith.maximumf %154, %155 : vector<2x64xf32>
    %cst_97 = arith.constant 9.99999997E-7 : f32
    %157 = vector.broadcast %cst_97 : f32 to vector<2x64xf32>
    %158 = arith.addf %156, %157 : vector<2x64xf32>
    %159 = math.rsqrt %158 : vector<2x64xf32>
    %160 = vector.broadcast %139 : vector<1x64xf32> to vector<2x64xf32>
    %161 = arith.mulf %160, %159 : vector<2x64xf32>
    %162 = arith.mulf %150, %161 : vector<2x64xf32>
    %163 = vector.broadcast %141 : vector<1x64xf32> to vector<2x64xf32>
    %164 = arith.subf %163, %162 : vector<2x64xf32>
    %165 = vector.shape_cast %161 : vector<2x64xf32> to vector<2x1x64xf32>
    %166 = vector.shape_cast %165 : vector<2x1x64xf32> to vector<2x1x64xf32>
    %167 = vector.broadcast %166 : vector<2x1x64xf32> to vector<2x16x64xf32>
    %168 = vector.shape_cast %167 : vector<2x16x64xf32> to vector<32x64xf32>
    %169 = arith.mulf %137, %168 : vector<32x64xf32>
    %170 = vector.shape_cast %164 : vector<2x64xf32> to vector<2x1x64xf32>
    %171 = vector.shape_cast %170 : vector<2x1x64xf32> to vector<2x1x64xf32>
    %172 = vector.broadcast %171 : vector<2x1x64xf32> to vector<2x16x64xf32>
    %173 = vector.shape_cast %172 : vector<2x16x64xf32> to vector<32x64xf32>
    %174 = arith.addf %169, %173 : vector<32x64xf32>
    %cst_98 = arith.constant 0.000000e+00 : f32
    %175 = vector.broadcast %cst_98 : f32 to vector<32x64xf32>
    %176 = arith.subf %175, %174 : vector<32x64xf32>
    %177 = math.exp %176 : vector<32x64xf32>
    %cst_99 = arith.constant 1.000000e+00 : f32
    %178 = vector.broadcast %cst_99 : f32 to vector<32x64xf32>
    %179 = arith.addf %178, %177 : vector<32x64xf32>
    %cst_100 = arith.constant 1.000000e+00 : f32
    %180 = vector.broadcast %cst_100 : f32 to vector<32x64xf32>
    %181 = arith.divf %180, %179 : vector<32x64xf32>
    %182 = arith.mulf %174, %181 : vector<32x64xf32>
    %c12_101 = arith.constant 12 : index
    %c0_102 = arith.constant 0 : index
    %c0_103 = arith.constant 0 : index
    %183 = vector.load %arg3[%c12_101, %c0_102, %c0_103] : memref<26x64x64xbf16, #tpu.memory_space<vmem>>, vector<1x64x64xbf16>
    %184 = vector.shape_cast %183 : vector<1x64x64xbf16> to vector<64x64xbf16>
    %185 = arith.truncf %182 : vector<32x64xf32> to vector<32x64xbf16>
    %cst_104 = arith.constant dense<0.000000e+00> : vector<32x64xf32>
    %186 = tpu.matmul %185, %184, %cst_104 {dimension_numbers = #tpu.dot_dimension_numbers<[1], [0], [0], [1], [0, 0, 1, 1], [], []>} : vector<32x64xbf16>, vector<64x64xbf16>, vector<32x64xf32> -> vector<32x64xf32>
    %c14 = arith.constant 14 : index
    %c0_105 = arith.constant 0 : index
    %c0_106 = arith.constant 0 : index
    %187 = vector.load %arg4[%c14, %c0_105, %c0_106] : memref<38x1x64xf32, #tpu.memory_space<vmem>>, vector<1x1x64xf32>
    %188 = vector.shape_cast %187 : vector<1x1x64xf32> to vector<1x64xf32>
    %189 = vector.broadcast %188 : vector<1x64xf32> to vector<32x64xf32>
    %190 = arith.addf %186, %189 : vector<32x64xf32>
    %c13_107 = arith.constant 13 : index
    %c0_108 = arith.constant 0 : index
    %c0_109 = arith.constant 0 : index
    %191 = vector.load %arg3[%c13_107, %c0_108, %c0_109] : memref<26x64x64xbf16, #tpu.memory_space<vmem>>, vector<1x64x64xbf16>
    %192 = vector.shape_cast %191 : vector<1x64x64xbf16> to vector<64x64xbf16>
    %193 = arith.truncf %119 : vector<2x64xf32> to vector<2x64xbf16>
    %cst_110 = arith.constant dense<0.000000e+00> : vector<2x64xf32>
    %194 = tpu.matmul %193, %192, %cst_110 {dimension_numbers = #tpu.dot_dimension_numbers<[1], [0], [0], [1], [0, 0, 1, 1], [], []>} : vector<2x64xbf16>, vector<64x64xbf16>, vector<2x64xf32> -> vector<2x64xf32>
    %c15 = arith.constant 15 : index
    %c0_111 = arith.constant 0 : index
    %c0_112 = arith.constant 0 : index
    %195 = vector.load %arg4[%c15, %c0_111, %c0_112] : memref<38x1x64xf32, #tpu.memory_space<vmem>>, vector<1x1x64xf32>
    %196 = vector.shape_cast %195 : vector<1x1x64xf32> to vector<1x64xf32>
    %197 = vector.broadcast %196 : vector<1x64xf32> to vector<2x64xf32>
    %198 = arith.addf %194, %197 : vector<2x64xf32>
    %199 = vector.shape_cast %198 : vector<2x64xf32> to vector<2x1x64xf32>
    %200 = vector.shape_cast %199 : vector<2x1x64xf32> to vector<2x1x64xf32>
    %201 = vector.broadcast %200 : vector<2x1x64xf32> to vector<2x16x64xf32>
    %202 = vector.shape_cast %201 : vector<2x16x64xf32> to vector<32x64xf32>
    %203 = arith.addf %190, %202 : vector<32x64xf32>
    %c16 = arith.constant 16 : index
    %c0_113 = arith.constant 0 : index
    %c0_114 = arith.constant 0 : index
    %204 = vector.load %arg4[%c16, %c0_113, %c0_114] : memref<38x1x64xf32, #tpu.memory_space<vmem>>, vector<1x1x64xf32>
    %205 = vector.shape_cast %204 : vector<1x1x64xf32> to vector<1x64xf32>
    %c17 = arith.constant 17 : index
    %c0_115 = arith.constant 0 : index
    %c0_116 = arith.constant 0 : index
    %206 = vector.load %arg4[%c17, %c0_115, %c0_116] : memref<38x1x64xf32, #tpu.memory_space<vmem>>, vector<1x1x64xf32>
    %207 = vector.shape_cast %206 : vector<1x1x64xf32> to vector<1x64xf32>
    %208 = vector.shape_cast %203 : vector<32x64xf32> to vector<2x16x64xf32>
    %cst_117 = arith.constant dense<0.000000e+00> : vector<2x64xf32>
    %209 = vector.multi_reduction <add>, %208, %cst_117 [1] : vector<2x16x64xf32> to vector<2x64xf32>
    %210 = arith.mulf %203, %203 : vector<32x64xf32>
    %211 = vector.shape_cast %210 : vector<32x64xf32> to vector<2x16x64xf32>
    %cst_118 = arith.constant dense<0.000000e+00> : vector<2x64xf32>
    %212 = vector.multi_reduction <add>, %211, %cst_118 [1] : vector<2x16x64xf32> to vector<2x64xf32>
    %cst_119 = arith.constant dense<0.000000e+00> : vector<2x64xf32>
    %213 = tpu.matmul %209, %5, %cst_119 {dimension_numbers = #tpu.dot_dimension_numbers<[1], [0], [0], [1], [0, 0, 1, 1], [], []>} : vector<2x64xf32>, vector<64x64xf32>, vector<2x64xf32> -> vector<2x64xf32>
    %cst_120 = arith.constant dense<0.000000e+00> : vector<2x64xf32>
    %214 = tpu.matmul %212, %5, %cst_120 {dimension_numbers = #tpu.dot_dimension_numbers<[1], [0], [0], [1], [0, 0, 1, 1], [], []>} : vector<2x64xf32>, vector<64x64xf32>, vector<2x64xf32> -> vector<2x64xf32>
    %cst_121 = arith.constant 3.125000e-02 : f32
    %215 = vector.broadcast %cst_121 : f32 to vector<2x64xf32>
    %216 = arith.mulf %213, %215 : vector<2x64xf32>
    %cst_122 = arith.constant 3.125000e-02 : f32
    %217 = vector.broadcast %cst_122 : f32 to vector<2x64xf32>
    %218 = arith.mulf %214, %217 : vector<2x64xf32>
    %219 = arith.mulf %216, %216 : vector<2x64xf32>
    %220 = arith.subf %218, %219 : vector<2x64xf32>
    %cst_123 = arith.constant 0.000000e+00 : f32
    %221 = vector.broadcast %cst_123 : f32 to vector<2x64xf32>
    %222 = arith.maximumf %220, %221 : vector<2x64xf32>
    %cst_124 = arith.constant 9.99999997E-7 : f32
    %223 = vector.broadcast %cst_124 : f32 to vector<2x64xf32>
    %224 = arith.addf %222, %223 : vector<2x64xf32>
    %225 = math.rsqrt %224 : vector<2x64xf32>
    %226 = vector.broadcast %205 : vector<1x64xf32> to vector<2x64xf32>
    %227 = arith.mulf %226, %225 : vector<2x64xf32>
    %228 = arith.mulf %216, %227 : vector<2x64xf32>
    %229 = vector.broadcast %207 : vector<1x64xf32> to vector<2x64xf32>
    %230 = arith.subf %229, %228 : vector<2x64xf32>
    %231 = vector.shape_cast %227 : vector<2x64xf32> to vector<2x1x64xf32>
    %232 = vector.shape_cast %231 : vector<2x1x64xf32> to vector<2x1x64xf32>
    %233 = vector.broadcast %232 : vector<2x1x64xf32> to vector<2x16x64xf32>
    %234 = vector.shape_cast %233 : vector<2x16x64xf32> to vector<32x64xf32>
    %235 = arith.mulf %203, %234 : vector<32x64xf32>
    %236 = vector.shape_cast %230 : vector<2x64xf32> to vector<2x1x64xf32>
    %237 = vector.shape_cast %236 : vector<2x1x64xf32> to vector<2x1x64xf32>
    %238 = vector.broadcast %237 : vector<2x1x64xf32> to vector<2x16x64xf32>
    %239 = vector.shape_cast %238 : vector<2x16x64xf32> to vector<32x64xf32>
    %240 = arith.addf %235, %239 : vector<32x64xf32>
    %cst_125 = arith.constant 0.000000e+00 : f32
    %241 = vector.broadcast %cst_125 : f32 to vector<32x64xf32>
    %242 = arith.subf %241, %240 : vector<32x64xf32>
    %243 = math.exp %242 : vector<32x64xf32>
    %cst_126 = arith.constant 1.000000e+00 : f32
    %244 = vector.broadcast %cst_126 : f32 to vector<32x64xf32>
    %245 = arith.addf %244, %243 : vector<32x64xf32>
    %cst_127 = arith.constant 1.000000e+00 : f32
    %246 = vector.broadcast %cst_127 : f32 to vector<32x64xf32>
    %247 = arith.divf %246, %245 : vector<32x64xf32>
    %248 = arith.mulf %240, %247 : vector<32x64xf32>
    %c14_128 = arith.constant 14 : index
    %c0_129 = arith.constant 0 : index
    %c0_130 = arith.constant 0 : index
    %249 = vector.load %arg3[%c14_128, %c0_129, %c0_130] : memref<26x64x64xbf16, #tpu.memory_space<vmem>>, vector<1x64x64xbf16>
    %250 = vector.shape_cast %249 : vector<1x64x64xbf16> to vector<64x64xbf16>
    %251 = arith.truncf %248 : vector<32x64xf32> to vector<32x64xbf16>
    %cst_131 = arith.constant dense<0.000000e+00> : vector<32x64xf32>
    %252 = tpu.matmul %251, %250, %cst_131 {dimension_numbers = #tpu.dot_dimension_numbers<[1], [0], [0], [1], [0, 0, 1, 1], [], []>} : vector<32x64xbf16>, vector<64x64xbf16>, vector<32x64xf32> -> vector<32x64xf32>
    %c18 = arith.constant 18 : index
    %c0_132 = arith.constant 0 : index
    %c0_133 = arith.constant 0 : index
    %253 = vector.load %arg4[%c18, %c0_132, %c0_133] : memref<38x1x64xf32, #tpu.memory_space<vmem>>, vector<1x1x64xf32>
    %254 = vector.shape_cast %253 : vector<1x1x64xf32> to vector<1x64xf32>
    %255 = vector.broadcast %254 : vector<1x64xf32> to vector<32x64xf32>
    %256 = arith.addf %252, %255 : vector<32x64xf32>
    %257 = arith.addf %137, %256 : vector<32x64xf32>
    %c19 = arith.constant 19 : index
    %c0_134 = arith.constant 0 : index
    %c0_135 = arith.constant 0 : index
    %258 = vector.load %arg4[%c19, %c0_134, %c0_135] : memref<38x1x64xf32, #tpu.memory_space<vmem>>, vector<1x1x64xf32>
    %259 = vector.shape_cast %258 : vector<1x1x64xf32> to vector<1x64xf32>
    %c20 = arith.constant 20 : index
    %c0_136 = arith.constant 0 : index
    %c0_137 = arith.constant 0 : index
    %260 = vector.load %arg4[%c20, %c0_136, %c0_137] : memref<38x1x64xf32, #tpu.memory_space<vmem>>, vector<1x1x64xf32>
    %261 = vector.shape_cast %260 : vector<1x1x64xf32> to vector<1x64xf32>
    %262 = vector.shape_cast %257 : vector<32x64xf32> to vector<2x16x64xf32>
    %cst_138 = arith.constant dense<0.000000e+00> : vector<2x64xf32>
    %263 = vector.multi_reduction <add>, %262, %cst_138 [1] : vector<2x16x64xf32> to vector<2x64xf32>
    %264 = arith.mulf %257, %257 : vector<32x64xf32>
    %265 = vector.shape_cast %264 : vector<32x64xf32> to vector<2x16x64xf32>
    %cst_139 = arith.constant dense<0.000000e+00> : vector<2x64xf32>
    %266 = vector.multi_reduction <add>, %265, %cst_139 [1] : vector<2x16x64xf32> to vector<2x64xf32>
    %cst_140 = arith.constant dense<0.000000e+00> : vector<2x64xf32>
    %267 = tpu.matmul %263, %5, %cst_140 {dimension_numbers = #tpu.dot_dimension_numbers<[1], [0], [0], [1], [0, 0, 1, 1], [], []>} : vector<2x64xf32>, vector<64x64xf32>, vector<2x64xf32> -> vector<2x64xf32>
    %cst_141 = arith.constant dense<0.000000e+00> : vector<2x64xf32>
    %268 = tpu.matmul %266, %5, %cst_141 {dimension_numbers = #tpu.dot_dimension_numbers<[1], [0], [0], [1], [0, 0, 1, 1], [], []>} : vector<2x64xf32>, vector<64x64xf32>, vector<2x64xf32> -> vector<2x64xf32>
    %cst_142 = arith.constant 3.125000e-02 : f32
    %269 = vector.broadcast %cst_142 : f32 to vector<2x64xf32>
    %270 = arith.mulf %267, %269 : vector<2x64xf32>
    %cst_143 = arith.constant 3.125000e-02 : f32
    %271 = vector.broadcast %cst_143 : f32 to vector<2x64xf32>
    %272 = arith.mulf %268, %271 : vector<2x64xf32>
    %273 = arith.mulf %270, %270 : vector<2x64xf32>
    %274 = arith.subf %272, %273 : vector<2x64xf32>
    %cst_144 = arith.constant 0.000000e+00 : f32
    %275 = vector.broadcast %cst_144 : f32 to vector<2x64xf32>
    %276 = arith.maximumf %274, %275 : vector<2x64xf32>
    %cst_145 = arith.constant 9.99999997E-7 : f32
    %277 = vector.broadcast %cst_145 : f32 to vector<2x64xf32>
    %278 = arith.addf %276, %277 : vector<2x64xf32>
    %279 = math.rsqrt %278 : vector<2x64xf32>
    %280 = vector.broadcast %259 : vector<1x64xf32> to vector<2x64xf32>
    %281 = arith.mulf %280, %279 : vector<2x64xf32>
    %282 = arith.mulf %270, %281 : vector<2x64xf32>
    %283 = vector.broadcast %261 : vector<1x64xf32> to vector<2x64xf32>
    %284 = arith.subf %283, %282 : vector<2x64xf32>
    %285 = vector.shape_cast %281 : vector<2x64xf32> to vector<2x1x64xf32>
    %286 = vector.shape_cast %285 : vector<2x1x64xf32> to vector<2x1x64xf32>
    %287 = vector.broadcast %286 : vector<2x1x64xf32> to vector<2x16x64xf32>
    %288 = vector.shape_cast %287 : vector<2x16x64xf32> to vector<32x64xf32>
    %289 = arith.mulf %257, %288 : vector<32x64xf32>
    %290 = vector.shape_cast %284 : vector<2x64xf32> to vector<2x1x64xf32>
    %291 = vector.shape_cast %290 : vector<2x1x64xf32> to vector<2x1x64xf32>
    %292 = vector.broadcast %291 : vector<2x1x64xf32> to vector<2x16x64xf32>
    %293 = vector.shape_cast %292 : vector<2x16x64xf32> to vector<32x64xf32>
    %294 = arith.addf %289, %293 : vector<32x64xf32>
    %c15_146 = arith.constant 15 : index
    %c0_147 = arith.constant 0 : index
    %c0_148 = arith.constant 0 : index
    %295 = vector.load %arg3[%c15_146, %c0_147, %c0_148] : memref<26x64x64xbf16, #tpu.memory_space<vmem>>, vector<1x64x64xbf16>
    %296 = vector.shape_cast %295 : vector<1x64x64xbf16> to vector<64x64xbf16>
    %297 = arith.truncf %294 : vector<32x64xf32> to vector<32x64xbf16>
    %cst_149 = arith.constant dense<0.000000e+00> : vector<32x64xf32>
    %298 = tpu.matmul %297, %296, %cst_149 {dimension_numbers = #tpu.dot_dimension_numbers<[1], [0], [0], [1], [0, 0, 1, 1], [], []>} : vector<32x64xbf16>, vector<64x64xbf16>, vector<32x64xf32> -> vector<32x64xf32>
    %c21 = arith.constant 21 : index
    %c0_150 = arith.constant 0 : index
    %c0_151 = arith.constant 0 : index
    %299 = vector.load %arg4[%c21, %c0_150, %c0_151] : memref<38x1x64xf32, #tpu.memory_space<vmem>>, vector<1x1x64xf32>
    %300 = vector.shape_cast %299 : vector<1x1x64xf32> to vector<1x64xf32>
    %301 = vector.broadcast %300 : vector<1x64xf32> to vector<32x64xf32>
    %302 = arith.addf %298, %301 : vector<32x64xf32>
    %c16_152 = arith.constant 16 : index
    %c0_153 = arith.constant 0 : index
    %c0_154 = arith.constant 0 : index
    %303 = vector.load %arg3[%c16_152, %c0_153, %c0_154] : memref<26x64x64xbf16, #tpu.memory_space<vmem>>, vector<1x64x64xbf16>
    %304 = vector.shape_cast %303 : vector<1x64x64xbf16> to vector<64x64xbf16>
    %305 = arith.truncf %294 : vector<32x64xf32> to vector<32x64xbf16>
    %cst_155 = arith.constant dense<0.000000e+00> : vector<32x64xf32>
    %306 = tpu.matmul %305, %304, %cst_155 {dimension_numbers = #tpu.dot_dimension_numbers<[1], [0], [0], [1], [0, 0, 1, 1], [], []>} : vector<32x64xbf16>, vector<64x64xbf16>, vector<32x64xf32> -> vector<32x64xf32>
    %c22 = arith.constant 22 : index
    %c0_156 = arith.constant 0 : index
    %c0_157 = arith.constant 0 : index
    %307 = vector.load %arg4[%c22, %c0_156, %c0_157] : memref<38x1x64xf32, #tpu.memory_space<vmem>>, vector<1x1x64xf32>
    %308 = vector.shape_cast %307 : vector<1x1x64xf32> to vector<1x64xf32>
    %309 = vector.broadcast %308 : vector<1x64xf32> to vector<32x64xf32>
    %310 = arith.addf %306, %309 : vector<32x64xf32>
    %c17_158 = arith.constant 17 : index
    %c0_159 = arith.constant 0 : index
    %c0_160 = arith.constant 0 : index
    %311 = vector.load %arg3[%c17_158, %c0_159, %c0_160] : memref<26x64x64xbf16, #tpu.memory_space<vmem>>, vector<1x64x64xbf16>
    %312 = vector.shape_cast %311 : vector<1x64x64xbf16> to vector<64x64xbf16>
    %313 = arith.truncf %294 : vector<32x64xf32> to vector<32x64xbf16>
    %cst_161 = arith.constant dense<0.000000e+00> : vector<32x64xf32>
    %314 = tpu.matmul %313, %312, %cst_161 {dimension_numbers = #tpu.dot_dimension_numbers<[1], [0], [0], [1], [0, 0, 1, 1], [], []>} : vector<32x64xbf16>, vector<64x64xbf16>, vector<32x64xf32> -> vector<32x64xf32>
    %c23 = arith.constant 23 : index
    %c0_162 = arith.constant 0 : index
    %c0_163 = arith.constant 0 : index
    %315 = vector.load %arg4[%c23, %c0_162, %c0_163] : memref<38x1x64xf32, #tpu.memory_space<vmem>>, vector<1x1x64xf32>
    %316 = vector.shape_cast %315 : vector<1x1x64xf32> to vector<1x64xf32>
    %317 = vector.broadcast %316 : vector<1x64xf32> to vector<32x64xf32>
    %318 = arith.addf %314, %317 : vector<32x64xf32>
    %319 = tpu.concatenate %310, %310, %310, %310 in 0 : vector<32x64xf32>, vector<32x64xf32>, vector<32x64xf32>, vector<32x64xf32> -> vector<128x64xf32>
    %320 = arith.mulf %319, %3 : vector<128x64xf32>
    %321 = tpu.concatenate %318, %318, %318, %318 in 0 : vector<32x64xf32>, vector<32x64xf32>, vector<32x64xf32>, vector<32x64xf32> -> vector<128x64xf32>
    %322 = arith.mulf %321, %3 : vector<128x64xf32>
    %323 = arith.truncf %302 : vector<32x64xf32> to vector<32x64xbf16>
    %324 = arith.truncf %320 : vector<128x64xf32> to vector<128x64xbf16>
    %cst_164 = arith.constant dense<0.000000e+00> : vector<32x128xf32>
    %325 = tpu.matmul %323, %324, %cst_164 {dimension_numbers = #tpu.dot_dimension_numbers<[1], [1], [0], [0], [0, 0, 1, 0], [], []>} : vector<32x64xbf16>, vector<128x64xbf16>, vector<32x128xf32> -> vector<32x128xf32>
    %cst_165 = arith.constant 2.500000e-01 : f32
    %326 = vector.broadcast %cst_165 : f32 to vector<32x128xf32>
    %327 = arith.mulf %325, %326 : vector<32x128xf32>
    %328 = arith.addf %327, %4 : vector<32x128xf32>
    %cst_166 = arith.constant dense<0xFF800000> : vector<32xf32>
    %329 = vector.multi_reduction <maximumf>, %328, %cst_166 [1] : vector<32x128xf32> to vector<32xf32>
    %330 = vector.shape_cast %329 : vector<32xf32> to vector<32x1xf32>
    %331 = vector.broadcast %330 : vector<32x1xf32> to vector<32x128xf32>
    %332 = arith.subf %328, %331 : vector<32x128xf32>
    %333 = math.exp %332 : vector<32x128xf32>
    %334 = arith.truncf %333 : vector<32x128xf32> to vector<32x128xbf16>
    %335 = arith.truncf %322 : vector<128x64xf32> to vector<128x64xbf16>
    %cst_167 = arith.constant dense<0.000000e+00> : vector<32x64xf32>
    %336 = tpu.matmul %334, %335, %cst_167 {dimension_numbers = #tpu.dot_dimension_numbers<[1], [0], [0], [1], [0, 0, 1, 1], [], []>} : vector<32x128xbf16>, vector<128x64xbf16>, vector<32x64xf32> -> vector<32x64xf32>
    %337 = arith.truncf %333 : vector<32x128xf32> to vector<32x128xbf16>
    %338 = arith.truncf %3 : vector<128x64xf32> to vector<128x64xbf16>
    %cst_168 = arith.constant dense<0.000000e+00> : vector<32x64xf32>
    %339 = tpu.matmul %337, %338, %cst_168 {dimension_numbers = #tpu.dot_dimension_numbers<[1], [0], [0], [1], [0, 0, 1, 1], [], []>} : vector<32x128xbf16>, vector<128x64xbf16>, vector<32x64xf32> -> vector<32x64xf32>
    %cst_169 = arith.constant 9.99999968E-21 : f32
    %340 = vector.broadcast %cst_169 : f32 to vector<32x64xf32>
    %341 = arith.addf %339, %340 : vector<32x64xf32>
    %342 = tpu.reciprocal %341 {approx = true} : vector<32x64xf32> -> vector<32x64xf32>
    %343 = arith.mulf %336, %342 : vector<32x64xf32>
    %c18_170 = arith.constant 18 : index
    %c0_171 = arith.constant 0 : index
    %c0_172 = arith.constant 0 : index
    %344 = vector.load %arg3[%c18_170, %c0_171, %c0_172] : memref<26x64x64xbf16, #tpu.memory_space<vmem>>, vector<1x64x64xbf16>
    %345 = vector.shape_cast %344 : vector<1x64x64xbf16> to vector<64x64xbf16>
    %346 = arith.truncf %343 : vector<32x64xf32> to vector<32x64xbf16>
    %cst_173 = arith.constant dense<0.000000e+00> : vector<32x64xf32>
    %347 = tpu.matmul %346, %345, %cst_173 {dimension_numbers = #tpu.dot_dimension_numbers<[1], [0], [0], [1], [0, 0, 1, 1], [], []>} : vector<32x64xbf16>, vector<64x64xbf16>, vector<32x64xf32> -> vector<32x64xf32>
    %348 = arith.addf %257, %347 : vector<32x64xf32>
    %c24 = arith.constant 24 : index
    %c0_174 = arith.constant 0 : index
    %c0_175 = arith.constant 0 : index
    %349 = vector.load %arg4[%c24, %c0_174, %c0_175] : memref<38x1x64xf32, #tpu.memory_space<vmem>>, vector<1x1x64xf32>
    %350 = vector.shape_cast %349 : vector<1x1x64xf32> to vector<1x64xf32>
    %351 = vector.broadcast %350 : vector<1x64xf32> to vector<32x64xf32>
    %352 = arith.addf %348, %351 : vector<32x64xf32>
    %c25 = arith.constant 25 : index
    %c0_176 = arith.constant 0 : index
    %c0_177 = arith.constant 0 : index
    %353 = vector.load %arg4[%c25, %c0_176, %c0_177] : memref<38x1x64xf32, #tpu.memory_space<vmem>>, vector<1x1x64xf32>
    %354 = vector.shape_cast %353 : vector<1x1x64xf32> to vector<1x64xf32>
    %c26 = arith.constant 26 : index
    %c0_178 = arith.constant 0 : index
    %c0_179 = arith.constant 0 : index
    %355 = vector.load %arg4[%c26, %c0_178, %c0_179] : memref<38x1x64xf32, #tpu.memory_space<vmem>>, vector<1x1x64xf32>
    %356 = vector.shape_cast %355 : vector<1x1x64xf32> to vector<1x64xf32>
    %357 = vector.shape_cast %352 : vector<32x64xf32> to vector<2x16x64xf32>
    %cst_180 = arith.constant dense<0.000000e+00> : vector<2x64xf32>
    %358 = vector.multi_reduction <add>, %357, %cst_180 [1] : vector<2x16x64xf32> to vector<2x64xf32>
    %359 = arith.mulf %352, %352 : vector<32x64xf32>
    %360 = vector.shape_cast %359 : vector<32x64xf32> to vector<2x16x64xf32>
    %cst_181 = arith.constant dense<0.000000e+00> : vector<2x64xf32>
    %361 = vector.multi_reduction <add>, %360, %cst_181 [1] : vector<2x16x64xf32> to vector<2x64xf32>
    %cst_182 = arith.constant dense<0.000000e+00> : vector<2x64xf32>
    %362 = tpu.matmul %358, %5, %cst_182 {dimension_numbers = #tpu.dot_dimension_numbers<[1], [0], [0], [1], [0, 0, 1, 1], [], []>} : vector<2x64xf32>, vector<64x64xf32>, vector<2x64xf32> -> vector<2x64xf32>
    %cst_183 = arith.constant dense<0.000000e+00> : vector<2x64xf32>
    %363 = tpu.matmul %361, %5, %cst_183 {dimension_numbers = #tpu.dot_dimension_numbers<[1], [0], [0], [1], [0, 0, 1, 1], [], []>} : vector<2x64xf32>, vector<64x64xf32>, vector<2x64xf32> -> vector<2x64xf32>
    %cst_184 = arith.constant 3.125000e-02 : f32
    %364 = vector.broadcast %cst_184 : f32 to vector<2x64xf32>
    %365 = arith.mulf %362, %364 : vector<2x64xf32>
    %cst_185 = arith.constant 3.125000e-02 : f32
    %366 = vector.broadcast %cst_185 : f32 to vector<2x64xf32>
    %367 = arith.mulf %363, %366 : vector<2x64xf32>
    %368 = arith.mulf %365, %365 : vector<2x64xf32>
    %369 = arith.subf %367, %368 : vector<2x64xf32>
    %cst_186 = arith.constant 0.000000e+00 : f32
    %370 = vector.broadcast %cst_186 : f32 to vector<2x64xf32>
    %371 = arith.maximumf %369, %370 : vector<2x64xf32>
    %cst_187 = arith.constant 9.99999997E-7 : f32
    %372 = vector.broadcast %cst_187 : f32 to vector<2x64xf32>
    %373 = arith.addf %371, %372 : vector<2x64xf32>
    %374 = math.rsqrt %373 : vector<2x64xf32>
    %375 = vector.broadcast %354 : vector<1x64xf32> to vector<2x64xf32>
    %376 = arith.mulf %375, %374 : vector<2x64xf32>
    %377 = arith.mulf %365, %376 : vector<2x64xf32>
    %378 = vector.broadcast %356 : vector<1x64xf32> to vector<2x64xf32>
    %379 = arith.subf %378, %377 : vector<2x64xf32>
    %380 = vector.shape_cast %376 : vector<2x64xf32> to vector<2x1x64xf32>
    %381 = vector.shape_cast %380 : vector<2x1x64xf32> to vector<2x1x64xf32>
    %382 = vector.broadcast %381 : vector<2x1x64xf32> to vector<2x16x64xf32>
    %383 = vector.shape_cast %382 : vector<2x16x64xf32> to vector<32x64xf32>
    %384 = arith.mulf %352, %383 : vector<32x64xf32>
    %385 = vector.shape_cast %379 : vector<2x64xf32> to vector<2x1x64xf32>
    %386 = vector.shape_cast %385 : vector<2x1x64xf32> to vector<2x1x64xf32>
    %387 = vector.broadcast %386 : vector<2x1x64xf32> to vector<2x16x64xf32>
    %388 = vector.shape_cast %387 : vector<2x16x64xf32> to vector<32x64xf32>
    %389 = arith.addf %384, %388 : vector<32x64xf32>
    %cst_188 = arith.constant 0.000000e+00 : f32
    %390 = vector.broadcast %cst_188 : f32 to vector<32x64xf32>
    %391 = arith.subf %390, %389 : vector<32x64xf32>
    %392 = math.exp %391 : vector<32x64xf32>
    %cst_189 = arith.constant 1.000000e+00 : f32
    %393 = vector.broadcast %cst_189 : f32 to vector<32x64xf32>
    %394 = arith.addf %393, %392 : vector<32x64xf32>
    %cst_190 = arith.constant 1.000000e+00 : f32
    %395 = vector.broadcast %cst_190 : f32 to vector<32x64xf32>
    %396 = arith.divf %395, %394 : vector<32x64xf32>
    %397 = arith.mulf %389, %396 : vector<32x64xf32>
    %c19_191 = arith.constant 19 : index
    %c0_192 = arith.constant 0 : index
    %c0_193 = arith.constant 0 : index
    %398 = vector.load %arg3[%c19_191, %c0_192, %c0_193] : memref<26x64x64xbf16, #tpu.memory_space<vmem>>, vector<1x64x64xbf16>
    %399 = vector.shape_cast %398 : vector<1x64x64xbf16> to vector<64x64xbf16>
    %400 = arith.truncf %397 : vector<32x64xf32> to vector<32x64xbf16>
    %cst_194 = arith.constant dense<0.000000e+00> : vector<32x64xf32>
    %401 = tpu.matmul %400, %399, %cst_194 {dimension_numbers = #tpu.dot_dimension_numbers<[1], [0], [0], [1], [0, 0, 1, 1], [], []>} : vector<32x64xbf16>, vector<64x64xbf16>, vector<32x64xf32> -> vector<32x64xf32>
    %c27 = arith.constant 27 : index
    %c0_195 = arith.constant 0 : index
    %c0_196 = arith.constant 0 : index
    %402 = vector.load %arg4[%c27, %c0_195, %c0_196] : memref<38x1x64xf32, #tpu.memory_space<vmem>>, vector<1x1x64xf32>
    %403 = vector.shape_cast %402 : vector<1x1x64xf32> to vector<1x64xf32>
    %404 = vector.broadcast %403 : vector<1x64xf32> to vector<32x64xf32>
    %405 = arith.addf %401, %404 : vector<32x64xf32>
    %c20_197 = arith.constant 20 : index
    %c0_198 = arith.constant 0 : index
    %c0_199 = arith.constant 0 : index
    %406 = vector.load %arg3[%c20_197, %c0_198, %c0_199] : memref<26x64x64xbf16, #tpu.memory_space<vmem>>, vector<1x64x64xbf16>
    %407 = vector.shape_cast %406 : vector<1x64x64xbf16> to vector<64x64xbf16>
    %408 = arith.truncf %119 : vector<2x64xf32> to vector<2x64xbf16>
    %cst_200 = arith.constant dense<0.000000e+00> : vector<2x64xf32>
    %409 = tpu.matmul %408, %407, %cst_200 {dimension_numbers = #tpu.dot_dimension_numbers<[1], [0], [0], [1], [0, 0, 1, 1], [], []>} : vector<2x64xbf16>, vector<64x64xbf16>, vector<2x64xf32> -> vector<2x64xf32>
    %c28 = arith.constant 28 : index
    %c0_201 = arith.constant 0 : index
    %c0_202 = arith.constant 0 : index
    %410 = vector.load %arg4[%c28, %c0_201, %c0_202] : memref<38x1x64xf32, #tpu.memory_space<vmem>>, vector<1x1x64xf32>
    %411 = vector.shape_cast %410 : vector<1x1x64xf32> to vector<1x64xf32>
    %412 = vector.broadcast %411 : vector<1x64xf32> to vector<2x64xf32>
    %413 = arith.addf %409, %412 : vector<2x64xf32>
    %414 = vector.shape_cast %413 : vector<2x64xf32> to vector<2x1x64xf32>
    %415 = vector.shape_cast %414 : vector<2x1x64xf32> to vector<2x1x64xf32>
    %416 = vector.broadcast %415 : vector<2x1x64xf32> to vector<2x16x64xf32>
    %417 = vector.shape_cast %416 : vector<2x16x64xf32> to vector<32x64xf32>
    %418 = arith.addf %405, %417 : vector<32x64xf32>
    %c29 = arith.constant 29 : index
    %c0_203 = arith.constant 0 : index
    %c0_204 = arith.constant 0 : index
    %419 = vector.load %arg4[%c29, %c0_203, %c0_204] : memref<38x1x64xf32, #tpu.memory_space<vmem>>, vector<1x1x64xf32>
    %420 = vector.shape_cast %419 : vector<1x1x64xf32> to vector<1x64xf32>
    %c30 = arith.constant 30 : index
    %c0_205 = arith.constant 0 : index
    %c0_206 = arith.constant 0 : index
    %421 = vector.load %arg4[%c30, %c0_205, %c0_206] : memref<38x1x64xf32, #tpu.memory_space<vmem>>, vector<1x1x64xf32>
    %422 = vector.shape_cast %421 : vector<1x1x64xf32> to vector<1x64xf32>
    %423 = vector.shape_cast %418 : vector<32x64xf32> to vector<2x16x64xf32>
    %cst_207 = arith.constant dense<0.000000e+00> : vector<2x64xf32>
    %424 = vector.multi_reduction <add>, %423, %cst_207 [1] : vector<2x16x64xf32> to vector<2x64xf32>
    %425 = arith.mulf %418, %418 : vector<32x64xf32>
    %426 = vector.shape_cast %425 : vector<32x64xf32> to vector<2x16x64xf32>
    %cst_208 = arith.constant dense<0.000000e+00> : vector<2x64xf32>
    %427 = vector.multi_reduction <add>, %426, %cst_208 [1] : vector<2x16x64xf32> to vector<2x64xf32>
    %cst_209 = arith.constant dense<0.000000e+00> : vector<2x64xf32>
    %428 = tpu.matmul %424, %5, %cst_209 {dimension_numbers = #tpu.dot_dimension_numbers<[1], [0], [0], [1], [0, 0, 1, 1], [], []>} : vector<2x64xf32>, vector<64x64xf32>, vector<2x64xf32> -> vector<2x64xf32>
    %cst_210 = arith.constant dense<0.000000e+00> : vector<2x64xf32>
    %429 = tpu.matmul %427, %5, %cst_210 {dimension_numbers = #tpu.dot_dimension_numbers<[1], [0], [0], [1], [0, 0, 1, 1], [], []>} : vector<2x64xf32>, vector<64x64xf32>, vector<2x64xf32> -> vector<2x64xf32>
    %cst_211 = arith.constant 3.125000e-02 : f32
    %430 = vector.broadcast %cst_211 : f32 to vector<2x64xf32>
    %431 = arith.mulf %428, %430 : vector<2x64xf32>
    %cst_212 = arith.constant 3.125000e-02 : f32
    %432 = vector.broadcast %cst_212 : f32 to vector<2x64xf32>
    %433 = arith.mulf %429, %432 : vector<2x64xf32>
    %434 = arith.mulf %431, %431 : vector<2x64xf32>
    %435 = arith.subf %433, %434 : vector<2x64xf32>
    %cst_213 = arith.constant 0.000000e+00 : f32
    %436 = vector.broadcast %cst_213 : f32 to vector<2x64xf32>
    %437 = arith.maximumf %435, %436 : vector<2x64xf32>
    %cst_214 = arith.constant 9.99999997E-7 : f32
    %438 = vector.broadcast %cst_214 : f32 to vector<2x64xf32>
    %439 = arith.addf %437, %438 : vector<2x64xf32>
    %440 = math.rsqrt %439 : vector<2x64xf32>
    %441 = vector.broadcast %420 : vector<1x64xf32> to vector<2x64xf32>
    %442 = arith.mulf %441, %440 : vector<2x64xf32>
    %443 = arith.mulf %431, %442 : vector<2x64xf32>
    %444 = vector.broadcast %422 : vector<1x64xf32> to vector<2x64xf32>
    %445 = arith.subf %444, %443 : vector<2x64xf32>
    %446 = vector.shape_cast %442 : vector<2x64xf32> to vector<2x1x64xf32>
    %447 = vector.shape_cast %446 : vector<2x1x64xf32> to vector<2x1x64xf32>
    %448 = vector.broadcast %447 : vector<2x1x64xf32> to vector<2x16x64xf32>
    %449 = vector.shape_cast %448 : vector<2x16x64xf32> to vector<32x64xf32>
    %450 = arith.mulf %418, %449 : vector<32x64xf32>
    %451 = vector.shape_cast %445 : vector<2x64xf32> to vector<2x1x64xf32>
    %452 = vector.shape_cast %451 : vector<2x1x64xf32> to vector<2x1x64xf32>
    %453 = vector.broadcast %452 : vector<2x1x64xf32> to vector<2x16x64xf32>
    %454 = vector.shape_cast %453 : vector<2x16x64xf32> to vector<32x64xf32>
    %455 = arith.addf %450, %454 : vector<32x64xf32>
    %cst_215 = arith.constant 0.000000e+00 : f32
    %456 = vector.broadcast %cst_215 : f32 to vector<32x64xf32>
    %457 = arith.subf %456, %455 : vector<32x64xf32>
    %458 = math.exp %457 : vector<32x64xf32>
    %cst_216 = arith.constant 1.000000e+00 : f32
    %459 = vector.broadcast %cst_216 : f32 to vector<32x64xf32>
    %460 = arith.addf %459, %458 : vector<32x64xf32>
    %cst_217 = arith.constant 1.000000e+00 : f32
    %461 = vector.broadcast %cst_217 : f32 to vector<32x64xf32>
    %462 = arith.divf %461, %460 : vector<32x64xf32>
    %463 = arith.mulf %455, %462 : vector<32x64xf32>
    %c21_218 = arith.constant 21 : index
    %c0_219 = arith.constant 0 : index
    %c0_220 = arith.constant 0 : index
    %464 = vector.load %arg3[%c21_218, %c0_219, %c0_220] : memref<26x64x64xbf16, #tpu.memory_space<vmem>>, vector<1x64x64xbf16>
    %465 = vector.shape_cast %464 : vector<1x64x64xbf16> to vector<64x64xbf16>
    %466 = arith.truncf %463 : vector<32x64xf32> to vector<32x64xbf16>
    %cst_221 = arith.constant dense<0.000000e+00> : vector<32x64xf32>
    %467 = tpu.matmul %466, %465, %cst_221 {dimension_numbers = #tpu.dot_dimension_numbers<[1], [0], [0], [1], [0, 0, 1, 1], [], []>} : vector<32x64xbf16>, vector<64x64xbf16>, vector<32x64xf32> -> vector<32x64xf32>
    %c31 = arith.constant 31 : index
    %c0_222 = arith.constant 0 : index
    %c0_223 = arith.constant 0 : index
    %468 = vector.load %arg4[%c31, %c0_222, %c0_223] : memref<38x1x64xf32, #tpu.memory_space<vmem>>, vector<1x1x64xf32>
    %469 = vector.shape_cast %468 : vector<1x1x64xf32> to vector<1x64xf32>
    %470 = vector.broadcast %469 : vector<1x64xf32> to vector<32x64xf32>
    %471 = arith.addf %467, %470 : vector<32x64xf32>
    %472 = arith.addf %352, %471 : vector<32x64xf32>
    %c32 = arith.constant 32 : index
    %c0_224 = arith.constant 0 : index
    %c0_225 = arith.constant 0 : index
    %473 = vector.load %arg4[%c32, %c0_224, %c0_225] : memref<38x1x64xf32, #tpu.memory_space<vmem>>, vector<1x1x64xf32>
    %474 = vector.shape_cast %473 : vector<1x1x64xf32> to vector<1x64xf32>
    %c33 = arith.constant 33 : index
    %c0_226 = arith.constant 0 : index
    %c0_227 = arith.constant 0 : index
    %475 = vector.load %arg4[%c33, %c0_226, %c0_227] : memref<38x1x64xf32, #tpu.memory_space<vmem>>, vector<1x1x64xf32>
    %476 = vector.shape_cast %475 : vector<1x1x64xf32> to vector<1x64xf32>
    %477 = vector.shape_cast %472 : vector<32x64xf32> to vector<2x16x64xf32>
    %cst_228 = arith.constant dense<0.000000e+00> : vector<2x64xf32>
    %478 = vector.multi_reduction <add>, %477, %cst_228 [1] : vector<2x16x64xf32> to vector<2x64xf32>
    %479 = arith.mulf %472, %472 : vector<32x64xf32>
    %480 = vector.shape_cast %479 : vector<32x64xf32> to vector<2x16x64xf32>
    %cst_229 = arith.constant dense<0.000000e+00> : vector<2x64xf32>
    %481 = vector.multi_reduction <add>, %480, %cst_229 [1] : vector<2x16x64xf32> to vector<2x64xf32>
    %cst_230 = arith.constant dense<0.000000e+00> : vector<2x64xf32>
    %482 = tpu.matmul %478, %5, %cst_230 {dimension_numbers = #tpu.dot_dimension_numbers<[1], [0], [0], [1], [0, 0, 1, 1], [], []>} : vector<2x64xf32>, vector<64x64xf32>, vector<2x64xf32> -> vector<2x64xf32>
    %cst_231 = arith.constant dense<0.000000e+00> : vector<2x64xf32>
    %483 = tpu.matmul %481, %5, %cst_231 {dimension_numbers = #tpu.dot_dimension_numbers<[1], [0], [0], [1], [0, 0, 1, 1], [], []>} : vector<2x64xf32>, vector<64x64xf32>, vector<2x64xf32> -> vector<2x64xf32>
    %cst_232 = arith.constant 3.125000e-02 : f32
    %484 = vector.broadcast %cst_232 : f32 to vector<2x64xf32>
    %485 = arith.mulf %482, %484 : vector<2x64xf32>
    %cst_233 = arith.constant 3.125000e-02 : f32
    %486 = vector.broadcast %cst_233 : f32 to vector<2x64xf32>
    %487 = arith.mulf %483, %486 : vector<2x64xf32>
    %488 = arith.mulf %485, %485 : vector<2x64xf32>
    %489 = arith.subf %487, %488 : vector<2x64xf32>
    %cst_234 = arith.constant 0.000000e+00 : f32
    %490 = vector.broadcast %cst_234 : f32 to vector<2x64xf32>
    %491 = arith.maximumf %489, %490 : vector<2x64xf32>
    %cst_235 = arith.constant 9.99999997E-7 : f32
    %492 = vector.broadcast %cst_235 : f32 to vector<2x64xf32>
    %493 = arith.addf %491, %492 : vector<2x64xf32>
    %494 = math.rsqrt %493 : vector<2x64xf32>
    %495 = vector.broadcast %474 : vector<1x64xf32> to vector<2x64xf32>
    %496 = arith.mulf %495, %494 : vector<2x64xf32>
    %497 = arith.mulf %485, %496 : vector<2x64xf32>
    %498 = vector.broadcast %476 : vector<1x64xf32> to vector<2x64xf32>
    %499 = arith.subf %498, %497 : vector<2x64xf32>
    %500 = vector.shape_cast %496 : vector<2x64xf32> to vector<2x1x64xf32>
    %501 = vector.shape_cast %500 : vector<2x1x64xf32> to vector<2x1x64xf32>
    %502 = vector.broadcast %501 : vector<2x1x64xf32> to vector<2x16x64xf32>
    %503 = vector.shape_cast %502 : vector<2x16x64xf32> to vector<32x64xf32>
    %504 = arith.mulf %472, %503 : vector<32x64xf32>
    %505 = vector.shape_cast %499 : vector<2x64xf32> to vector<2x1x64xf32>
    %506 = vector.shape_cast %505 : vector<2x1x64xf32> to vector<2x1x64xf32>
    %507 = vector.broadcast %506 : vector<2x1x64xf32> to vector<2x16x64xf32>
    %508 = vector.shape_cast %507 : vector<2x16x64xf32> to vector<32x64xf32>
    %509 = arith.addf %504, %508 : vector<32x64xf32>
    %c22_236 = arith.constant 22 : index
    %c0_237 = arith.constant 0 : index
    %c0_238 = arith.constant 0 : index
    %510 = vector.load %arg3[%c22_236, %c0_237, %c0_238] : memref<26x64x64xbf16, #tpu.memory_space<vmem>>, vector<1x64x64xbf16>
    %511 = vector.shape_cast %510 : vector<1x64x64xbf16> to vector<64x64xbf16>
    %512 = arith.truncf %509 : vector<32x64xf32> to vector<32x64xbf16>
    %cst_239 = arith.constant dense<0.000000e+00> : vector<32x64xf32>
    %513 = tpu.matmul %512, %511, %cst_239 {dimension_numbers = #tpu.dot_dimension_numbers<[1], [0], [0], [1], [0, 0, 1, 1], [], []>} : vector<32x64xbf16>, vector<64x64xbf16>, vector<32x64xf32> -> vector<32x64xf32>
    %c34 = arith.constant 34 : index
    %c0_240 = arith.constant 0 : index
    %c0_241 = arith.constant 0 : index
    %514 = vector.load %arg4[%c34, %c0_240, %c0_241] : memref<38x1x64xf32, #tpu.memory_space<vmem>>, vector<1x1x64xf32>
    %515 = vector.shape_cast %514 : vector<1x1x64xf32> to vector<1x64xf32>
    %516 = vector.broadcast %515 : vector<1x64xf32> to vector<32x64xf32>
    %517 = arith.addf %513, %516 : vector<32x64xf32>
    %c23_242 = arith.constant 23 : index
    %c0_243 = arith.constant 0 : index
    %c0_244 = arith.constant 0 : index
    %518 = vector.load %arg3[%c23_242, %c0_243, %c0_244] : memref<26x64x64xbf16, #tpu.memory_space<vmem>>, vector<1x64x64xbf16>
    %519 = vector.shape_cast %518 : vector<1x64x64xbf16> to vector<64x64xbf16>
    %520 = arith.truncf %509 : vector<32x64xf32> to vector<32x64xbf16>
    %cst_245 = arith.constant dense<0.000000e+00> : vector<32x64xf32>
    %521 = tpu.matmul %520, %519, %cst_245 {dimension_numbers = #tpu.dot_dimension_numbers<[1], [0], [0], [1], [0, 0, 1, 1], [], []>} : vector<32x64xbf16>, vector<64x64xbf16>, vector<32x64xf32> -> vector<32x64xf32>
    %c35 = arith.constant 35 : index
    %c0_246 = arith.constant 0 : index
    %c0_247 = arith.constant 0 : index
    %522 = vector.load %arg4[%c35, %c0_246, %c0_247] : memref<38x1x64xf32, #tpu.memory_space<vmem>>, vector<1x1x64xf32>
    %523 = vector.shape_cast %522 : vector<1x1x64xf32> to vector<1x64xf32>
    %524 = vector.broadcast %523 : vector<1x64xf32> to vector<32x64xf32>
    %525 = arith.addf %521, %524 : vector<32x64xf32>
    %c24_248 = arith.constant 24 : index
    %c0_249 = arith.constant 0 : index
    %c0_250 = arith.constant 0 : index
    %526 = vector.load %arg3[%c24_248, %c0_249, %c0_250] : memref<26x64x64xbf16, #tpu.memory_space<vmem>>, vector<1x64x64xbf16>
    %527 = vector.shape_cast %526 : vector<1x64x64xbf16> to vector<64x64xbf16>
    %528 = arith.truncf %509 : vector<32x64xf32> to vector<32x64xbf16>
    %cst_251 = arith.constant dense<0.000000e+00> : vector<32x64xf32>
    %529 = tpu.matmul %528, %527, %cst_251 {dimension_numbers = #tpu.dot_dimension_numbers<[1], [0], [0], [1], [0, 0, 1, 1], [], []>} : vector<32x64xbf16>, vector<64x64xbf16>, vector<32x64xf32> -> vector<32x64xf32>
    %c36 = arith.constant 36 : index
    %c0_252 = arith.constant 0 : index
    %c0_253 = arith.constant 0 : index
    %530 = vector.load %arg4[%c36, %c0_252, %c0_253] : memref<38x1x64xf32, #tpu.memory_space<vmem>>, vector<1x1x64xf32>
    %531 = vector.shape_cast %530 : vector<1x1x64xf32> to vector<1x64xf32>
    %532 = vector.broadcast %531 : vector<1x64xf32> to vector<32x64xf32>
    %533 = arith.addf %529, %532 : vector<32x64xf32>
    %534 = tpu.concatenate %525, %525, %525, %525 in 0 : vector<32x64xf32>, vector<32x64xf32>, vector<32x64xf32>, vector<32x64xf32> -> vector<128x64xf32>
    %535 = arith.mulf %534, %3 : vector<128x64xf32>
    %536 = tpu.concatenate %533, %533, %533, %533 in 0 : vector<32x64xf32>, vector<32x64xf32>, vector<32x64xf32>, vector<32x64xf32> -> vector<128x64xf32>
    %537 = arith.mulf %536, %3 : vector<128x64xf32>
    %538 = arith.truncf %517 : vector<32x64xf32> to vector<32x64xbf16>
    %539 = arith.truncf %535 : vector<128x64xf32> to vector<128x64xbf16>
    %cst_254 = arith.constant dense<0.000000e+00> : vector<32x128xf32>
    %540 = tpu.matmul %538, %539, %cst_254 {dimension_numbers = #tpu.dot_dimension_numbers<[1], [1], [0], [0], [0, 0, 1, 0], [], []>} : vector<32x64xbf16>, vector<128x64xbf16>, vector<32x128xf32> -> vector<32x128xf32>
    %cst_255 = arith.constant 2.500000e-01 : f32
    %541 = vector.broadcast %cst_255 : f32 to vector<32x128xf32>
    %542 = arith.mulf %540, %541 : vector<32x128xf32>
    %543 = arith.addf %542, %4 : vector<32x128xf32>
    %cst_256 = arith.constant dense<0xFF800000> : vector<32xf32>
    %544 = vector.multi_reduction <maximumf>, %543, %cst_256 [1] : vector<32x128xf32> to vector<32xf32>
    %545 = vector.shape_cast %544 : vector<32xf32> to vector<32x1xf32>
    %546 = vector.broadcast %545 : vector<32x1xf32> to vector<32x128xf32>
    %547 = arith.subf %543, %546 : vector<32x128xf32>
    %548 = math.exp %547 : vector<32x128xf32>
    %549 = arith.truncf %548 : vector<32x128xf32> to vector<32x128xbf16>
    %550 = arith.truncf %537 : vector<128x64xf32> to vector<128x64xbf16>
    %cst_257 = arith.constant dense<0.000000e+00> : vector<32x64xf32>
    %551 = tpu.matmul %549, %550, %cst_257 {dimension_numbers = #tpu.dot_dimension_numbers<[1], [0], [0], [1], [0, 0, 1, 1], [], []>} : vector<32x128xbf16>, vector<128x64xbf16>, vector<32x64xf32> -> vector<32x64xf32>
    %552 = arith.truncf %548 : vector<32x128xf32> to vector<32x128xbf16>
    %553 = arith.truncf %3 : vector<128x64xf32> to vector<128x64xbf16>
    %cst_258 = arith.constant dense<0.000000e+00> : vector<32x64xf32>
    %554 = tpu.matmul %552, %553, %cst_258 {dimension_numbers = #tpu.dot_dimension_numbers<[1], [0], [0], [1], [0, 0, 1, 1], [], []>} : vector<32x128xbf16>, vector<128x64xbf16>, vector<32x64xf32> -> vector<32x64xf32>
    %cst_259 = arith.constant 9.99999968E-21 : f32
    %555 = vector.broadcast %cst_259 : f32 to vector<32x64xf32>
    %556 = arith.addf %554, %555 : vector<32x64xf32>
    %557 = tpu.reciprocal %556 {approx = true} : vector<32x64xf32> -> vector<32x64xf32>
    %558 = arith.mulf %551, %557 : vector<32x64xf32>
    %c25_260 = arith.constant 25 : index
    %c0_261 = arith.constant 0 : index
    %c0_262 = arith.constant 0 : index
    %559 = vector.load %arg3[%c25_260, %c0_261, %c0_262] : memref<26x64x64xbf16, #tpu.memory_space<vmem>>, vector<1x64x64xbf16>
    %560 = vector.shape_cast %559 : vector<1x64x64xbf16> to vector<64x64xbf16>
    %561 = arith.truncf %558 : vector<32x64xf32> to vector<32x64xbf16>
    %cst_263 = arith.constant dense<0.000000e+00> : vector<32x64xf32>
    %562 = tpu.matmul %561, %560, %cst_263 {dimension_numbers = #tpu.dot_dimension_numbers<[1], [0], [0], [1], [0, 0, 1, 1], [], []>} : vector<32x64xbf16>, vector<64x64xbf16>, vector<32x64xf32> -> vector<32x64xf32>
    %563 = arith.addf %472, %562 : vector<32x64xf32>
    %c37 = arith.constant 37 : index
    %c0_264 = arith.constant 0 : index
    %c0_265 = arith.constant 0 : index
    %564 = vector.load %arg4[%c37, %c0_264, %c0_265] : memref<38x1x64xf32, #tpu.memory_space<vmem>>, vector<1x1x64xf32>
    %565 = vector.shape_cast %564 : vector<1x1x64xf32> to vector<1x64xf32>
    %566 = vector.broadcast %565 : vector<1x64xf32> to vector<32x64xf32>
    %567 = arith.addf %563, %566 : vector<32x64xf32>
    %c11 = arith.constant 11 : index
    %c0_266 = arith.constant 0 : index
    %c0_267 = arith.constant 0 : index
    %568 = vector.load %arg3[%c11, %c0_266, %c0_267] : memref<26x64x64xbf16, #tpu.memory_space<vmem>>, vector<1x64x64xbf16>
    %569 = vector.shape_cast %568 : vector<1x64x64xbf16> to vector<64x64xbf16>
    %570 = arith.truncf %567 : vector<32x64xf32> to vector<32x64xbf16>
    %cst_268 = arith.constant dense<0.000000e+00> : vector<32x64xf32>
    %571 = tpu.matmul %570, %569, %cst_268 {dimension_numbers = #tpu.dot_dimension_numbers<[1], [0], [0], [1], [0, 0, 1, 1], [], []>} : vector<32x64xbf16>, vector<64x64xbf16>, vector<32x64xf32> -> vector<32x64xf32>
    %c11_269 = arith.constant 11 : index
    %c0_270 = arith.constant 0 : index
    %c0_271 = arith.constant 0 : index
    %572 = vector.load %arg4[%c11_269, %c0_270, %c0_271] : memref<38x1x64xf32, #tpu.memory_space<vmem>>, vector<1x1x64xf32>
    %573 = vector.shape_cast %572 : vector<1x1x64xf32> to vector<1x64xf32>
    %574 = vector.broadcast %573 : vector<1x64xf32> to vector<32x64xf32>
    %575 = arith.addf %571, %574 : vector<32x64xf32>
    %c8_272 = arith.constant 8 : index
    %c0_273 = arith.constant 0 : index
    %c0_274 = arith.constant 0 : index
    %576 = vector.load %arg3[%c8_272, %c0_273, %c0_274] : memref<26x64x64xbf16, #tpu.memory_space<vmem>>, vector<1x64x64xbf16>
    %577 = vector.shape_cast %576 : vector<1x64x64xbf16> to vector<64x64xbf16>
    %578 = arith.truncf %575 : vector<32x64xf32> to vector<32x64xbf16>
    %cst_275 = arith.constant dense<0.000000e+00> : vector<32x64xf32>
    %579 = tpu.matmul %578, %577, %cst_275 {dimension_numbers = #tpu.dot_dimension_numbers<[1], [0], [0], [1], [0, 0, 1, 1], [], []>} : vector<32x64xbf16>, vector<64x64xbf16>, vector<32x64xf32> -> vector<32x64xf32>
    %c6_276 = arith.constant 6 : index
    %c0_277 = arith.constant 0 : index
    %c0_278 = arith.constant 0 : index
    %580 = vector.load %arg4[%c6_276, %c0_277, %c0_278] : memref<38x1x64xf32, #tpu.memory_space<vmem>>, vector<1x1x64xf32>
    %581 = vector.shape_cast %580 : vector<1x1x64xf32> to vector<1x64xf32>
    %582 = vector.broadcast %581 : vector<1x64xf32> to vector<32x64xf32>
    %583 = arith.addf %579, %582 : vector<32x64xf32>
    %584 = arith.addf %77, %103 : vector<32x64xf32>
    %585 = arith.addf %584, %583 : vector<32x64xf32>
    %c0_279 = arith.constant 0 : index
    %c0_280 = arith.constant 0 : index
    %586 = vector.load %arg8[%c0_279, %c0_280] : memref<32x64xf32, #tpu.memory_space<vmem>>, vector<32x64xf32>
    tpu.vector_store %arg8[%c0_279, %c0_280], %585 {strides = array<i32>} : memref<32x64xf32, #tpu.memory_space<vmem>>, vector<32x64xf32>,
    return
  }
}

</mosaic_0001>

<llo_original>
// kernel: absorbing_generator_forward.1
$region0: #{absorbing_generator_forward.1}
  #allocation0 [shape = 'u32[]', space=smem, size = 0x4, offset = 0x4, fixed_abs, tag = 'smem constant byte address 0x4 - core index']
  #allocation1 [shape = 'u32[144,128]{1,0:T(1,128)}', space=vmem, size = 0x12000, scoped, tag = 'internal scratch']
  %s0 = inlined_call_operand.vmem [shape: f32[32,64], index: 0, kind: input, shape index: {}]
  %s1 = inlined_call_operand.vmem [shape: f32[32,1], index: 1, kind: input, shape index: {}]
  %s2 = inlined_call_operand.vmem [shape: f32[2,64], index: 2, kind: input, shape index: {}]
  %s3 = inlined_call_operand.hbm [shape: bf16[26,64,64], index: 3, kind: input, shape index: {}]
  %s4 = inlined_call_operand.vmem [shape: f32[38,1,64], index: 4, kind: input, shape index: {}]
  %s5 = inlined_call_operand.vmem [shape: f32[128,64], index: 5, kind: input, shape index: {}]
  %s6 = inlined_call_operand.vmem [shape: f32[32,128], index: 6, kind: input, shape index: {}]
  %s7 = inlined_call_operand.vmem [shape: f32[64,64], index: 7, kind: input, shape index: {}]
  %s8 = inlined_call_operand.vmem [shape: f32[32,64], index: 8, kind: output, shape index: {}]
  %s9 = sld [smem:[#allocation0]]
  $region46: #{absorbing_generator_forward.1} parent=0
    _
  %s11 = ssub.s32 1, %s9
  %s12 = scalar_select 0, %s11, %s9
  $region1: #{absorbing_generator_forward.1} parent=0
    #allocation2 [shape = 'u8[425984]{0}', space=vmem, size = 0x68000, scoped, tag = 'input window, operand 3, single buffered']
    #allocation3 [shape = 's32[1]{0}', space=sflag, size = 0x4, scoped, tag = 'scoped memory for absorbing_generator_forward.1']
    %13 = vsyncpa [#allocation3], 0
    // Predicated region
    $region2: #{absorbing_generator_forward.1} parent=1 // pred_check
      _
    $region3: #{absorbing_generator_forward.1} parent=1 // pred_check_branch
      %15 = sbr.rel (0) target = $region5
    $region4: #{absorbing_generator_forward.1} parent=1 // pred_region
      _
    $region5: #{absorbing_generator_forward.1} parent=1 // pred_fallthru
      _
    // Predicated region
    $region6: #{absorbing_generator_forward.1} parent=1 // pred_check
      _
    $region7: #{absorbing_generator_forward.1} parent=1 // pred_check_branch
      %17 = sbr.rel (0) target = $region9
    $region8: #{absorbing_generator_forward.1} parent=1 // pred_region
      _
    $region9: #{absorbing_generator_forward.1} parent=1 // pred_fallthru
      _
    // Predicated region
    $region10: #{absorbing_generator_forward.1} parent=1 // pred_check
      _
    $region11: #{absorbing_generator_forward.1} parent=1 // pred_check_branch
      %19 = sbr.rel (0) target = $region13
    $region12: #{absorbing_generator_forward.1} parent=1 // pred_region
      _
    $region13: #{absorbing_generator_forward.1} parent=1 // pred_fallthru
      _
    // Predicated region
    $region14: #{absorbing_generator_forward.1} parent=1 // pred_check
      _
    $region15: #{absorbing_generator_forward.1} parent=1 // pred_check_branch
      %21 = sbr.rel (0) target = $region17
    $region16: #{absorbing_generator_forward.1} parent=1 // pred_region
      %s23 = ssub.s32 13312, 13312
      %24 = vsyncadd [#allocation3], %s23
      %s25 = sshll.u32 [#allocation2], 4
      %s26 = int_to_ptr.vmem [resolvable:$true] %s25
      %31 = dma.hbm_to_vmem [thread:$0]  %s3, 13312, %s26, [#allocation3], 64, 64, 4
    $region17: #{absorbing_generator_forward.1} parent=1 // pred_fallthru
      _
    // Predicated region
    $region18: #{absorbing_generator_forward.1} parent=1 // pred_check
      _
    $region19: #{absorbing_generator_forward.1} parent=1 // pred_check_branch
      %33 = sbr.rel (0) target = $region21
    $region20: #{absorbing_generator_forward.1} parent=1 // pred_region
      _
    $region21: #{absorbing_generator_forward.1} parent=1 // pred_fallthru
      _
    // Predicated region
    $region22: #{absorbing_generator_forward.1} parent=1 // pred_check
      _
    $region23: #{absorbing_generator_forward.1} parent=1 // pred_check_branch
      %35 = sbr.rel (0) target = $region25
    $region24: #{absorbing_generator_forward.1} parent=1 // pred_region
      _
    $region25: #{absorbing_generator_forward.1} parent=1 // pred_fallthru
      _
    // Predicated region
    $region26: #{absorbing_generator_forward.1} parent=1 // pred_check
      _
    $region27: #{absorbing_generator_forward.1} parent=1 // pred_check_branch
      %37 = sbr.rel (0) target = $region29
    $region28: #{absorbing_generator_forward.1} parent=1 // pred_region
      _
    $region29: #{absorbing_generator_forward.1} parent=1 // pred_fallthru
      _
    // Predicated region
    $region30: #{absorbing_generator_forward.1} parent=1 // pred_check
      _
    $region31: #{absorbing_generator_forward.1} parent=1 // pred_check_branch
      %39 = sbr.rel (0) target = $region33
    $region32: #{absorbing_generator_forward.1} parent=1 // pred_region
      _
    $region33: #{absorbing_generator_forward.1} parent=1 // pred_fallthru
      _
    // Predicated region
    $region34: #{absorbing_generator_forward.1} parent=1 // pred_check
      _
    $region35: #{absorbing_generator_forward.1} parent=1 // pred_check_branch
      %41 = sbr.rel (0) target = $region37
    $region36: #{absorbing_generator_forward.1} parent=1 // pred_region
      %42 = dma.done [#allocation3], 13312
    $region37: #{absorbing_generator_forward.1} parent=1 // pred_fallthru
      _
    %v44 = vld [vmem:[%s0] sm:$0xff]
    %v45 = vld [vmem:[%s0 + $0x8] sm:$0xff]
    %v46 = vld [vmem:[%s0 + $0x10] sm:$0xff]
    %v47 = vld [vmem:[%s0 + $0x18] sm:$0xff]
    %v48 = vld [vmem:[%s1] sm:$0xff]
    %v49 = vld [vmem:[%s1 + $0x8] sm:$0xff]
    %v50 = vld [vmem:[%s1 + $0x10] sm:$0xff]
    %v51 = vld [vmem:[%s1 + $0x18] sm:$0xff]
    %v52 = vld [vmem:[%s2] sm:$0x3]
    %v53 = vld [vmem:[%s5] sm:$0xff]
    %v54 = vld [vmem:[%s5 + $0x8] sm:$0xff]
    %v55 = vld [vmem:[%s5 + $0x10] sm:$0xff]
    %v56 = vld [vmem:[%s5 + $0x18] sm:$0xff]
    %v57 = vld [vmem:[%s5 + $0x20] sm:$0xff]
    %v58 = vld [vmem:[%s5 + $0x28] sm:$0xff]
    %v59 = vld [vmem:[%s5 + $0x30] sm:$0xff]
    %v60 = vld [vmem:[%s5 + $0x38] sm:$0xff]
    %v61 = vld [vmem:[%s5 + $0x40] sm:$0xff]
    %v62 = vld [vmem:[%s5 + $0x48] sm:$0xff]
    %v63 = vld [vmem:[%s5 + $0x50] sm:$0xff]
    %v64 = vld [vmem:[%s5 + $0x58] sm:$0xff]
    %v65 = vld [vmem:[%s5 + $0x60] sm:$0xff]
    %v66 = vld [vmem:[%s5 + $0x68] sm:$0xff]
    %v67 = vld [vmem:[%s5 + $0x70] sm:$0xff]
    %v68 = vld [vmem:[%s5 + $0x78] sm:$0xff]
    %v69 = vld [vmem:[%s6] sm:$0xff]
    %v70 = vld [vmem:[%s6 + $0x8] sm:$0xff]
    %v71 = vld [vmem:[%s6 + $0x10] sm:$0xff]
    %v72 = vld [vmem:[%s6 + $0x18] sm:$0xff]
    %v73 = vld [vmem:[%s7] sm:$0xff]
    %v74 = vld [vmem:[%s7 + $0x8] sm:$0xff]
    %v75 = vld [vmem:[%s7 + $0x10] sm:$0xff]
    %v76 = vld [vmem:[%s7 + $0x18] sm:$0xff]
    %v77 = vld [vmem:[%s7 + $0x20] sm:$0xff]
    %v78 = vld [vmem:[%s7 + $0x28] sm:$0xff]
    %v79 = vld [vmem:[%s7 + $0x30] sm:$0xff]
    %v80 = vld [vmem:[%s7 + $0x38] sm:$0xff]
    %v81 = vld [vmem:[#allocation2] sm:$0xf]
    %v82 = vld [vmem:[#allocation2 + $0x4] sm:$0xf]
    %v83 = vld [vmem:[#allocation2 + $0x8] sm:$0xf]
    %v84 = vld [vmem:[#allocation2 + $0xc] sm:$0xf]
    %v85 = vld [vmem:[#allocation2 + $0x10] sm:$0xf]
    %v86 = vld [vmem:[#allocation2 + $0x14] sm:$0xf]
    %v87 = vld [vmem:[#allocation2 + $0x18] sm:$0xf]
    %v88 = vld [vmem:[#allocation2 + $0x1c] sm:$0xf]
    %v89 = vpack.c.bf16 %v45, %v44
    %v90 = vpack.c.bf16 %v47, %v46
    %v91 = vld [vmem:[%s4] sm:$0x1]
    %v93 = vlaneseq
    %v94 = vshrl.u32 %v93, 7
    %v95 = vsub.s32 0, %v94
    %v96 = vrot.slane %v91, %v95
    %v106 = vunpack.c.l.b16 %v81
    %v107 = vunpack.c.l.b16 %v82
    %v108 = vunpack.c.l.b16 %v83
    %v109 = vunpack.c.l.b16 %v84
    %v110 = vunpack.c.l.b16 %v85
    %v111 = vunpack.c.l.b16 %v86
    %v112 = vunpack.c.l.b16 %v87
    %v113 = vunpack.c.l.b16 %v88
    %v114 = vpack.c.b16 %v107, %v106
    %v115 = vpack.c.b16 %v109, %v108
    %v116 = vpack.c.b16 %v111, %v110
    %v117 = vpack.c.b16 %v113, %v112
    %vm122 = vcmask 523264
    %v124 = vsel %vm122, %v89, 0
    %v127 = vsel %vm122, %v90, 0
    %129 = vmatprep.subr.bf16.mxu0 0
    %130 = vmatpush1.bf16.msra.mxu0 %v114
    %131 = vmatprep.subr.bf16.mxu0 0
    %132 = vmatpush1.bf16.msra.mxu0 %v115
    %133 = vmatprep.subr.bf16.mxu0 0
    %134 = vmatpush1.bf16.msra.mxu0 %v116
    %135 = vmatprep.subr.bf16.mxu0 0
    %136 = vmatpush1.bf16.msra.mxu0 %v117
    %137 = vmatprep.subr.bf16.mxu0 0
    %138 = vmatpush1.bf16.msra.mxu0 0
    %139 = vmatprep.subr.bf16.mxu0 0
    %140 = vmatpush1.bf16.msra.mxu0 0
    %141 = vmatprep.subr.bf16.mxu0 0
    %142 = vmatpush1.bf16.msra.mxu0 0
    %143 = vmatprep.subr.bf16.mxu0 0
    %144 = vmatpush1.bf16.msra.mxu0 0
    %145 = vmatprep.subr.bf16.mxu0 0
    %146 = vmatpush1.bf16.msra.mxu0 0
    %147 = vmatprep.subr.bf16.mxu0 0
    %148 = vmatpush1.bf16.msra.mxu0 0
    %149 = vmatprep.subr.bf16.mxu0 0
    %150 = vmatpush1.bf16.msra.mxu0 0
    %151 = vmatprep.subr.bf16.mxu0 0
    %152 = vmatpush1.bf16.msra.mxu0 0
    %153 = vmatprep.subr.bf16.mxu0 0
    %154 = vmatpush1.bf16.msra.mxu0 0
    %155 = vmatprep.subr.bf16.mxu0 0
    %156 = vmatpush1.bf16.msra.mxu0 0
    %157 = vmatprep.subr.bf16.mxu0 0
    %158 = vmatpush1.bf16.msra.mxu0 0
    %159 = vmatprep.subr.bf16.mxu0 0
    %160 = vmatpush1.bf16.msra.mxu0 0
    %161 = vmatprep.mubr.bf16.mxu0 0
    %162 = vmatmul.mubr.bf16.gmra.mrb[0].mxu0 %v124
    %v163 = vpop.f32.mrb[0].mxu0
    %v164 = vadd.f32 %v96, %v163
    %v165 = vpop.f32.mrb[0].mxu0
    %v166 = vpop.f32.mrb[0].mxu0
    %v167 = vadd.f32 %v96, %v166
    %v168 = vpop.f32.mrb[0].mxu0
    %169 = vmatprep.mubr.bf16.mxu0 0
    %170 = vmatmul.mubr.bf16.gmra.mrb[0].mxu0 %v127
    %v171 = vpop.f32.mrb[0].mxu0
    %v172 = vadd.f32 %v96, %v171
    %v173 = vpop.f32.mrb[0].mxu0
    %v174 = vpop.f32.mrb[0].mxu0
    %v175 = vadd.f32 %v96, %v174
    %v176 = vpop.f32.mrb[0].mxu0
    %177 = vdwg.mxu0
    %vm178 = vcmp.gt.f32.partialorder %v164, 0.0
    %vm179 = vcmp.gt.f32.partialorder %v167, 0.0
    %vm180 = vcmp.gt.f32.partialorder %v172, 0.0
    %vm181 = vcmp.gt.f32.partialorder %v175, 0.0
    %v182 = vmul.f32 %v164, 0.01
    %v183 = vmul.f32 %v167, 0.01
    %v184 = vmul.f32 %v172, 0.01
    %v185 = vmul.f32 %v175, 0.01
    %v186 = vsel %vm178, %v164, %v182
    %v187 = vsel %vm179, %v167, %v183
    %v188 = vsel %vm180, %v172, %v184
    %v189 = vsel %vm181, %v175, %v185
    %191 = vset.pattern.permute.xlu0 0
    %192 = vperm.xlu0 %191, %v48
    %v193 = vpop.permute.xlu0 %192
    %196 = vset.pattern.permute.xlu0 0
    %197 = vperm.xlu0 %196, %v49
    %v198 = vpop.permute.xlu0 %197
    %201 = vset.pattern.permute.xlu0 0
    %202 = vperm.xlu0 %201, %v50
    %v203 = vpop.permute.xlu0 %202
    %206 = vset.pattern.permute.xlu0 0
    %207 = vperm.xlu0 %206, %v51
    %v208 = vpop.permute.xlu0 %207
    %v210 = vmul.f32 %v186, %v193
    %v211 = vmul.f32 %v187, %v198
    %v212 = vmul.f32 %v188, %v203
    %v213 = vmul.f32 %v189, %v208
    %v214 = vsel %vm122, %v210, 0.0
    %v215 = vsel %vm122, %v211, 0.0
    %v216 = vadd.f32 %v214, %v215
    %v217 = vrot.slane %v216, 4
    %v218 = vadd.f32 %v216, %v217
    %v219 = vrot.slane %v218, 2
    %v220 = vadd.f32 %v218, %v219
    %v221 = vrot.slane %v220, 1
    %v222 = vadd.f32 %v220, %v221
    %v223 = vsel %vm122, %v212, 0.0
    %v224 = vsel %vm122, %v213, 0.0
    %v225 = vadd.f32 %v223, %v224
    %v226 = vrot.slane %v225, 4
    %v227 = vadd.f32 %v225, %v226
    %v228 = vrot.slane %v227, 2
    %v229 = vadd.f32 %v227, %v228
    %v230 = vrot.slane %v229, 1
    %v231 = vadd.f32 %v229, %v230
    %vm232 = vcmask 7168
    %v233 = vsel %vm232, %v48, 0.0
    %v234 = vsel %vm232, %v49, 0.0
    %v235 = vadd.f32 %v233, %v234
    %v236 = vrot.slane %v235, 4
    %v237 = vadd.f32 %v235, %v236
    %v238 = vrot.slane %v237, 2
    %v239 = vadd.f32 %v237, %v238
    %v240 = vrot.slane %v239, 1
    %v241 = vadd.f32 %v239, %v240
    %v242 = vsel %vm232, %v50, 0.0
    %v243 = vsel %vm232, %v51, 0.0
    %v244 = vadd.f32 %v242, %v243
    %v245 = vrot.slane %v244, 4
    %v246 = vadd.f32 %v244, %v245
    %v247 = vrot.slane %v246, 2
    %v248 = vadd.f32 %v246, %v247
    %v249 = vrot.slane %v248, 1
    %v250 = vadd.f32 %v248, %v249
    %v251 = vmax.f32 %v241, 1.0
    %v252 = vmax.f32 %v250, 1.0
    %v253 = vrcp.pop %v251
    %v254 = vrcp.pop %v252
    %256 = vset.pattern.permute.xlu0 0
    %257 = vperm.xlu0 %256, %v253
    %v258 = vpop.permute.xlu0 %257
    %261 = vset.pattern.permute.xlu0 0
    %262 = vperm.xlu0 %261, %v254
    %v263 = vpop.permute.xlu0 %262
    %v265 = vmul.f32 %v222, %v258
    %v266 = vmul.f32 %v231, %v263
    %s267 = scalar_lea.vmem [#allocation2], 32
    %v268 = vld [vmem:[%s267] sm:$0xf]
    %v269 = vld [vmem:[%s267 + $0x4] sm:$0xf]
    %v270 = vld [vmem:[%s267 + $0x8] sm:$0xf]
    %v271 = vld [vmem:[%s267 + $0xc] sm:$0xf]
    %v272 = vld [vmem:[%s267 + $0x10] sm:$0xf]
    %v273 = vld [vmem:[%s267 + $0x14] sm:$0xf]
    %v274 = vld [vmem:[%s267 + $0x18] sm:$0xf]
    %v275 = vld [vmem:[%s267 + $0x1c] sm:$0xf]
    %v276 = vpack.c.bf16 %v265, %v265
    %v277 = vpack.c.bf16 %v266, %v266
    %s278 = scalar_lea.vmem [#allocation2], 64
    %v279 = vld [vmem:[%s278] sm:$0xf]
    %v280 = vld [vmem:[%s278 + $0x4] sm:$0xf]
    %v281 = vld [vmem:[%s278 + $0x8] sm:$0xf]
    %v282 = vld [vmem:[%s278 + $0xc] sm:$0xf]
    %v283 = vld [vmem:[%s278 + $0x10] sm:$0xf]
    %v284 = vld [vmem:[%s278 + $0x14] sm:$0xf]
    %v285 = vld [vmem:[%s278 + $0x18] sm:$0xf]
    %v286 = vld [vmem:[%s278 + $0x1c] sm:$0xf]
    %v287 = vpack.c.bf16 %v222, %v222
    %v288 = vpack.c.bf16 %v231, %v231
    %v291 = vunpack.c.l.b16 %v287
    %v292 = vunpack.c.l.b16 %v288
    %vm293 = vcmask 1041409
    %v294 = vsel %vm293, %v292, %v291
    %v295 = vpack.c.b16 %v294, %v294
    %v304 = vunpack.c.l.b16 %v279
    %v305 = vunpack.c.l.b16 %v280
    %v306 = vunpack.c.l.b16 %v281
    %v307 = vunpack.c.l.b16 %v282
    %v308 = vunpack.c.l.b16 %v283
    %v309 = vunpack.c.l.b16 %v284
    %v310 = vunpack.c.l.b16 %v285
    %v311 = vunpack.c.l.b16 %v286
    %v312 = vpack.c.b16 %v305, %v304
    %v313 = vpack.c.b16 %v307, %v306
    %v314 = vpack.c.b16 %v309, %v308
    %v315 = vpack.c.b16 %v311, %v310
    %v321 = vsel %vm122, %v295, 0
    %323 = vmatprep.subr.bf16.mxu0 0
    %324 = vmatpush1.bf16.msra.mxu0 %v312
    %325 = vmatprep.subr.bf16.mxu0 0
    %326 = vmatpush1.bf16.msra.mxu0 %v313
    %327 = vmatprep.subr.bf16.mxu0 0
    %328 = vmatpush1.bf16.msra.mxu0 %v314
    %329 = vmatprep.subr.bf16.mxu0 0
    %330 = vmatpush1.bf16.msra.mxu0 %v315
    %331 = vmatprep.subr.bf16.mxu0 0
    %332 = vmatpush1.bf16.msra.mxu0 0
    %333 = vmatprep.subr.bf16.mxu0 0
    %334 = vmatpush1.bf16.msra.mxu0 0
    %335 = vmatprep.subr.bf16.mxu0 0
    %336 = vmatpush1.bf16.msra.mxu0 0
    %337 = vmatprep.subr.bf16.mxu0 0
    %338 = vmatpush1.bf16.msra.mxu0 0
    %339 = vmatprep.subr.bf16.mxu0 0
    %340 = vmatpush1.bf16.msra.mxu0 0
    %341 = vmatprep.subr.bf16.mxu0 0
    %342 = vmatpush1.bf16.msra.mxu0 0
    %343 = vmatprep.subr.bf16.mxu0 0
    %344 = vmatpush1.bf16.msra.mxu0 0
    %345 = vmatprep.subr.bf16.mxu0 0
    %346 = vmatpush1.bf16.msra.mxu0 0
    %347 = vmatprep.subr.bf16.mxu0 0
    %348 = vmatpush1.bf16.msra.mxu0 0
    %349 = vmatprep.subr.bf16.mxu0 0
    %350 = vmatpush1.bf16.msra.mxu0 0
    %351 = vmatprep.subr.bf16.mxu0 0
    %352 = vmatpush1.bf16.msra.mxu0 0
    %353 = vmatprep.subr.bf16.mxu0 0
    %354 = vmatpush1.bf16.msra.mxu0 0
    %355 = vmatprep.mubr.bf16.mxu0 0
    %356 = vmatmul.mubr.bf16.gmra.mrb[0].mxu0 %v321
    %v357 = vpop.f32.mrb[0].mxu0
    %v358 = vadd.f32 0.0, %v357
    %v359 = vpop.f32.mrb[0].mxu0
    %v360 = vpop.f32.mrb[0].mxu0
    %v361 = vpop.f32.mrb[0].mxu0
    %362 = vdwg.mxu0
    %v365 = vunpack.c.l.b16 %v276
    %v366 = vunpack.c.l.b16 %v277
    %v367 = vsel %vm293, %v366, %v365
    %v368 = vpack.c.b16 %v367, %v367
    %v377 = vunpack.c.l.b16 %v268
    %v378 = vunpack.c.l.b16 %v269
    %v379 = vunpack.c.l.b16 %v270
    %v380 = vunpack.c.l.b16 %v271
    %v381 = vunpack.c.l.b16 %v272
    %v382 = vunpack.c.l.b16 %v273
    %v383 = vunpack.c.l.b16 %v274
    %v384 = vunpack.c.l.b16 %v275
    %v385 = vpack.c.b16 %v378, %v377
    %v386 = vpack.c.b16 %v380, %v379
    %v387 = vpack.c.b16 %v382, %v381
    %v388 = vpack.c.b16 %v384, %v383
    %v394 = vsel %vm122, %v368, 0
    %396 = vmatprep.subr.bf16.mxu0 0
    %397 = vmatpush1.bf16.msra.mxu0 %v385
    %398 = vmatprep.subr.bf16.mxu0 0
    %399 = vmatpush1.bf16.msra.mxu0 %v386
    %400 = vmatprep.subr.bf16.mxu0 0
    %401 = vmatpush1.bf16.msra.mxu0 %v387
    %402 = vmatprep.subr.bf16.mxu0 0
    %403 = vmatpush1.bf16.msra.mxu0 %v388
    %404 = vmatprep.subr.bf16.mxu0 0
    %405 = vmatpush1.bf16.msra.mxu0 0
    %406 = vmatprep.subr.bf16.mxu0 0
    %407 = vmatpush1.bf16.msra.mxu0 0
    %408 = vmatprep.subr.bf16.mxu0 0
    %409 = vmatpush1.bf16.msra.mxu0 0
    %410 = vmatprep.subr.bf16.mxu0 0
    %411 = vmatpush1.bf16.msra.mxu0 0
    %412 = vmatprep.subr.bf16.mxu0 0
    %413 = vmatpush1.bf16.msra.mxu0 0
    %414 = vmatprep.subr.bf16.mxu0 0
    %415 = vmatpush1.bf16.msra.mxu0 0
    %416 = vmatprep.subr.bf16.mxu0 0
    %417 = vmatpush1.bf16.msra.mxu0 0
    %418 = vmatprep.subr.bf16.mxu0 0
    %419 = vmatpush1.bf16.msra.mxu0 0
    %420 = vmatprep.subr.bf16.mxu0 0
    %421 = vmatpush1.bf16.msra.mxu0 0
    %422 = vmatprep.subr.bf16.mxu0 0
    %423 = vmatpush1.bf16.msra.mxu0 0
    %424 = vmatprep.subr.bf16.mxu0 0
    %425 = vmatpush1.bf16.msra.mxu0 0
    %426 = vmatprep.subr.bf16.mxu0 0
    %427 = vmatpush1.bf16.msra.mxu0 0
    %428 = vmatprep.mubr.bf16.mxu0 0
    %429 = vmatmul.mubr.bf16.gmra.mrb[0].mxu0 %v394
    %v430 = vpop.f32.mrb[0].mxu0
    %v431 = vadd.f32 %v358, %v430
    %v432 = vpop.f32.mrb[0].mxu0
    %v433 = vpop.f32.mrb[0].mxu0
    %v434 = vpop.f32.mrb[0].mxu0
    %435 = vdwg.mxu0
    %s436 = scalar_lea.vmem %s4, 1
    %v437 = vld [vmem:[%s436] sm:$0x1]
    %v439 = vlaneseq
    %v440 = vshrl.u32 %v439, 7
    %v441 = vsub.s32 0, %v440
    %v442 = vrot.slane %v437, %v441
    %v444 = vadd.f32 %v431, %v442
    %vm445 = vcmp.gt.f32.partialorder %v444, 0.0
    %v446 = vmul.f32 %v444, 0.01
    %v447 = vsel %vm445, %v444, %v446
    %v450 = vunpack.c.l.s4 1966171168
    %v451 = vunpack.c.0.s8 %v450
    %v452 = vlaneseq
    %v453 = vshrl.u32 %v452, 7
    %v454 = vsub.s32 %v451, %v453
    %v455 = vrot.slane %v447, %v454
    %v456 = vcombine.high %v455, %v455
    %v458 = vunpack.c.l.s4 1966171168
    %v459 = vunpack.c.0.s8 %v458
    %v460 = vlaneseq
    %v461 = vshrl.u32 %v460, 7
    %v462 = vsub.s32 %v459, %v461
    %v463 = vrot.slane %v455, %v462
    %v465 = vunpack.c.l.s4 1966171168
    %v466 = vunpack.c.0.s8 %v465
    %v467 = vlaneseq
    %v468 = vshrl.u32 %v467, 7
    %v469 = vsub.s32 %v466, %v468
    %v470 = vrot.slane %v456, %v469
    %v471 = vlaneseq
    %v472 = vshrl.u32 %v471, 7
    %v473 = vsub.s32 0, %v472
    %v474 = vrot.slane %v463, %v473
    %v475 = vlaneseq
    %v476 = vshrl.u32 %v475, 7
    %v477 = vsub.s32 0, %v476
    %v478 = vrot.slane %v470, %v477
    %s481 = scalar_lea.vmem [#allocation2], 96
    %v482 = vld [vmem:[%s481] sm:$0xf]
    %v483 = vld [vmem:[%s481 + $0x4] sm:$0xf]
    %v484 = vld [vmem:[%s481 + $0x8] sm:$0xf]
    %v485 = vld [vmem:[%s481 + $0xc] sm:$0xf]
    %v486 = vld [vmem:[%s481 + $0x10] sm:$0xf]
    %v487 = vld [vmem:[%s481 + $0x14] sm:$0xf]
    %v488 = vld [vmem:[%s481 + $0x18] sm:$0xf]
    %v489 = vld [vmem:[%s481 + $0x1c] sm:$0xf]
    %v490 = vpack.c.bf16 %v187, %v186
    %v491 = vpack.c.bf16 %v189, %v188
    %s492 = scalar_lea.vmem [#allocation2], 128
    %v493 = vld [vmem:[%s492] sm:$0xf]
    %v494 = vld [vmem:[%s492 + $0x4] sm:$0xf]
    %v495 = vld [vmem:[%s492 + $0x8] sm:$0xf]
    %v496 = vld [vmem:[%s492 + $0xc] sm:$0xf]
    %v497 = vld [vmem:[%s492 + $0x10] sm:$0xf]
    %v498 = vld [vmem:[%s492 + $0x14] sm:$0xf]
    %v499 = vld [vmem:[%s492 + $0x18] sm:$0xf]
    %v500 = vld [vmem:[%s492 + $0x1c] sm:$0xf]
    %v501 = vpack.c.bf16 %v474, %v474
    %v502 = vpack.c.bf16 %v478, %v478
    %v511 = vunpack.c.l.b16 %v493
    %v512 = vunpack.c.l.b16 %v494
    %v513 = vunpack.c.l.b16 %v495
    %v514 = vunpack.c.l.b16 %v496
    %v515 = vunpack.c.l.b16 %v497
    %v516 = vunpack.c.l.b16 %v498
    %v517 = vunpack.c.l.b16 %v499
    %v518 = vunpack.c.l.b16 %v500
    %v519 = vpack.c.b16 %v512, %v511
    %v520 = vpack.c.b16 %v514, %v513
    %v521 = vpack.c.b16 %v516, %v515
    %v522 = vpack.c.b16 %v518, %v517
    %v528 = vsel %vm122, %v501, 0
    %v531 = vsel %vm122, %v502, 0
    %533 = vmatprep.subr.bf16.mxu0 0
    %534 = vmatpush1.bf16.msra.mxu0 %v519
    %535 = vmatprep.subr.bf16.mxu0 0
    %536 = vmatpush1.bf16.msra.mxu0 %v520
    %537 = vmatprep.subr.bf16.mxu0 0
    %538 = vmatpush1.bf16.msra.mxu0 %v521
    %539 = vmatprep.subr.bf16.mxu0 0
    %540 = vmatpush1.bf16.msra.mxu0 %v522
    %541 = vmatprep.subr.bf16.mxu0 0
    %542 = vmatpush1.bf16.msra.mxu0 0
    %543 = vmatprep.subr.bf16.mxu0 0
    %544 = vmatpush1.bf16.msra.mxu0 0
    %545 = vmatprep.subr.bf16.mxu0 0
    %546 = vmatpush1.bf16.msra.mxu0 0
    %547 = vmatprep.subr.bf16.mxu0 0
    %548 = vmatpush1.bf16.msra.mxu0 0
    %549 = vmatprep.subr.bf16.mxu0 0
    %550 = vmatpush1.bf16.msra.mxu0 0
    %551 = vmatprep.subr.bf16.mxu0 0
    %552 = vmatpush1.bf16.msra.mxu0 0
    %553 = vmatprep.subr.bf16.mxu0 0
    %554 = vmatpush1.bf16.msra.mxu0 0
    %555 = vmatprep.subr.bf16.mxu0 0
    %556 = vmatpush1.bf16.msra.mxu0 0
    %557 = vmatprep.subr.bf16.mxu0 0
    %558 = vmatpush1.bf16.msra.mxu0 0
    %559 = vmatprep.subr.bf16.mxu0 0
    %560 = vmatpush1.bf16.msra.mxu0 0
    %561 = vmatprep.subr.bf16.mxu0 0
    %562 = vmatpush1.bf16.msra.mxu0 0
    %563 = vmatprep.subr.bf16.mxu0 0
    %564 = vmatpush1.bf16.msra.mxu0 0
    %565 = vmatprep.mubr.bf16.mxu0 0
    %566 = vmatmul.mubr.bf16.gmra.mrb[0].mxu0 %v528
    %v567 = vpop.f32.mrb[0].mxu0
    %v568 = vadd.f32 0.0, %v567
    %v569 = vpop.f32.mrb[0].mxu0
    %v570 = vpop.f32.mrb[0].mxu0
    %v571 = vadd.f32 0.0, %v570
    %v572 = vpop.f32.mrb[0].mxu0
    %573 = vmatprep.mubr.bf16.mxu0 0
    %574 = vmatmul.mubr.bf16.gmra.mrb[0].mxu0 %v531
    %v575 = vpop.f32.mrb[0].mxu0
    %v576 = vadd.f32 0.0, %v575
    %v577 = vpop.f32.mrb[0].mxu0
    %v578 = vpop.f32.mrb[0].mxu0
    %v579 = vadd.f32 0.0, %v578
    %v580 = vpop.f32.mrb[0].mxu0
    %581 = vdwg.mxu0
    %v590 = vunpack.c.l.b16 %v482
    %v591 = vunpack.c.l.b16 %v483
    %v592 = vunpack.c.l.b16 %v484
    %v593 = vunpack.c.l.b16 %v485
    %v594 = vunpack.c.l.b16 %v486
    %v595 = vunpack.c.l.b16 %v487
    %v596 = vunpack.c.l.b16 %v488
    %v597 = vunpack.c.l.b16 %v489
    %v598 = vpack.c.b16 %v591, %v590
    %v599 = vpack.c.b16 %v593, %v592
    %v600 = vpack.c.b16 %v595, %v594
    %v601 = vpack.c.b16 %v597, %v596
    %v607 = vsel %vm122, %v490, 0
    %v610 = vsel %vm122, %v491, 0
    %612 = vmatprep.subr.bf16.mxu0 0
    %613 = vmatpush1.bf16.msra.mxu0 %v598
    %614 = vmatprep.subr.bf16.mxu0 0
    %615 = vmatpush1.bf16.msra.mxu0 %v599
    %616 = vmatprep.subr.bf16.mxu0 0
    %617 = vmatpush1.bf16.msra.mxu0 %v600
    %618 = vmatprep.subr.bf16.mxu0 0
    %619 = vmatpush1.bf16.msra.mxu0 %v601
    %620 = vmatprep.subr.bf16.mxu0 0
    %621 = vmatpush1.bf16.msra.mxu0 0
    %622 = vmatprep.subr.bf16.mxu0 0
    %623 = vmatpush1.bf16.msra.mxu0 0
    %624 = vmatprep.subr.bf16.mxu0 0
    %625 = vmatpush1.bf16.msra.mxu0 0
    %626 = vmatprep.subr.bf16.mxu0 0
    %627 = vmatpush1.bf16.msra.mxu0 0
    %628 = vmatprep.subr.bf16.mxu0 0
    %629 = vmatpush1.bf16.msra.mxu0 0
    %630 = vmatprep.subr.bf16.mxu0 0
    %631 = vmatpush1.bf16.msra.mxu0 0
    %632 = vmatprep.subr.bf16.mxu0 0
    %633 = vmatpush1.bf16.msra.mxu0 0
    %634 = vmatprep.subr.bf16.mxu0 0
    %635 = vmatpush1.bf16.msra.mxu0 0
    %636 = vmatprep.subr.bf16.mxu0 0
    %637 = vmatpush1.bf16.msra.mxu0 0
    %638 = vmatprep.subr.bf16.mxu0 0
    %639 = vmatpush1.bf16.msra.mxu0 0
    %640 = vmatprep.subr.bf16.mxu0 0
    %641 = vmatpush1.bf16.msra.mxu0 0
    %642 = vmatprep.subr.bf16.mxu0 0
    %643 = vmatpush1.bf16.msra.mxu0 0
    %644 = vmatprep.mubr.bf16.mxu0 0
    %645 = vmatmul.mubr.bf16.gmra.mrb[0].mxu0 %v607
    %v646 = vpop.f32.mrb[0].mxu0
    %v647 = vadd.f32 %v568, %v646
    %v648 = vpop.f32.mrb[0].mxu0
    %v649 = vpop.f32.mrb[0].mxu0
    %v650 = vadd.f32 %v571, %v649
    %v651 = vpop.f32.mrb[0].mxu0
    %652 = vmatprep.mubr.bf16.mxu0 0
    %653 = vmatmul.mubr.bf16.gmra.mrb[0].mxu0 %v610
    %v654 = vpop.f32.mrb[0].mxu0
    %v655 = vadd.f32 %v576, %v654
    %v656 = vpop.f32.mrb[0].mxu0
    %v657 = vpop.f32.mrb[0].mxu0
    %v658 = vadd.f32 %v579, %v657
    %v659 = vpop.f32.mrb[0].mxu0
    %660 = vdwg.mxu0
    %s661 = scalar_lea.vmem %s4, 2
    %v662 = vld [vmem:[%s661] sm:$0x1]
    %v664 = vlaneseq
    %v665 = vshrl.u32 %v664, 7
    %v666 = vsub.s32 0, %v665
    %v667 = vrot.slane %v662, %v666
    %v669 = vadd.f32 %v647, %v667
    %v670 = vadd.f32 %v650, %v667
    %v671 = vadd.f32 %v655, %v667
    %v672 = vadd.f32 %v658, %v667
    %vm673 = vcmp.gt.f32.partialorder %v669, 0.0
    %vm674 = vcmp.gt.f32.partialorder %v670, 0.0
    %vm675 = vcmp.gt.f32.partialorder %v671, 0.0
    %vm676 = vcmp.gt.f32.partialorder %v672, 0.0
    %v677 = vmul.f32 %v669, 0.01
    %v678 = vmul.f32 %v670, 0.01
    %v679 = vmul.f32 %v671, 0.01
    %v680 = vmul.f32 %v672, 0.01
    %v681 = vsel %vm673, %v669, %v677
    %v682 = vsel %vm674, %v670, %v678
    %v683 = vsel %vm675, %v671, %v679
    %v684 = vsel %vm676, %v672, %v680
    %s685 = scalar_lea.vmem [#allocation2], 160
    %v686 = vld [vmem:[%s685] sm:$0xf]
    %v687 = vld [vmem:[%s685 + $0x4] sm:$0xf]
    %v688 = vld [vmem:[%s685 + $0x8] sm:$0xf]
    %v689 = vld [vmem:[%s685 + $0xc] sm:$0xf]
    %v690 = vld [vmem:[%s685 + $0x10] sm:$0xf]
    %v691 = vld [vmem:[%s685 + $0x14] sm:$0xf]
    %v692 = vld [vmem:[%s685 + $0x18] sm:$0xf]
    %v693 = vld [vmem:[%s685 + $0x1c] sm:$0xf]
    %v694 = vpack.c.bf16 %v682, %v681
    %v695 = vpack.c.bf16 %v684, %v683
    %s696 = scalar_lea.vmem %s4, 3
    %v697 = vld [vmem:[%s696] sm:$0x1]
    %v699 = vlaneseq
    %v700 = vshrl.u32 %v699, 7
    %v701 = vsub.s32 0, %v700
    %v702 = vrot.slane %v697, %v701
    %v712 = vunpack.c.l.b16 %v686
    %v713 = vunpack.c.l.b16 %v687
    %v714 = vunpack.c.l.b16 %v688
    %v715 = vunpack.c.l.b16 %v689
    %v716 = vunpack.c.l.b16 %v690
    %v717 = vunpack.c.l.b16 %v691
    %v718 = vunpack.c.l.b16 %v692
    %v719 = vunpack.c.l.b16 %v693
    %v720 = vpack.c.b16 %v713, %v712
    %v721 = vpack.c.b16 %v715, %v714
    %v722 = vpack.c.b16 %v717, %v716
    %v723 = vpack.c.b16 %v719, %v718
    %v729 = vsel %vm122, %v694, 0
    %v732 = vsel %vm122, %v695, 0
    %734 = vmatprep.subr.bf16.mxu0 0
    %735 = vmatpush1.bf16.msra.mxu0 %v720
    %736 = vmatprep.subr.bf16.mxu0 0
    %737 = vmatpush1.bf16.msra.mxu0 %v721
    %738 = vmatprep.subr.bf16.mxu0 0
    %739 = vmatpush1.bf16.msra.mxu0 %v722
    %740 = vmatprep.subr.bf16.mxu0 0
    %741 = vmatpush1.bf16.msra.mxu0 %v723
    %742 = vmatprep.subr.bf16.mxu0 0
    %743 = vmatpush1.bf16.msra.mxu0 0
    %744 = vmatprep.subr.bf16.mxu0 0
    %745 = vmatpush1.bf16.msra.mxu0 0
    %746 = vmatprep.subr.bf16.mxu0 0
    %747 = vmatpush1.bf16.msra.mxu0 0
    %748 = vmatprep.subr.bf16.mxu0 0
    %749 = vmatpush1.bf16.msra.mxu0 0
    %750 = vmatprep.subr.bf16.mxu0 0
    %751 = vmatpush1.bf16.msra.mxu0 0
    %752 = vmatprep.subr.bf16.mxu0 0
    %753 = vmatpush1.bf16.msra.mxu0 0
    %754 = vmatprep.subr.bf16.mxu0 0
    %755 = vmatpush1.bf16.msra.mxu0 0
    %756 = vmatprep.subr.bf16.mxu0 0
    %757 = vmatpush1.bf16.msra.mxu0 0
    %758 = vmatprep.subr.bf16.mxu0 0
    %759 = vmatpush1.bf16.msra.mxu0 0
    %760 = vmatprep.subr.bf16.mxu0 0
    %761 = vmatpush1.bf16.msra.mxu0 0
    %762 = vmatprep.subr.bf16.mxu0 0
    %763 = vmatpush1.bf16.msra.mxu0 0
    %764 = vmatprep.subr.bf16.mxu0 0
    %765 = vmatpush1.bf16.msra.mxu0 0
    %766 = vmatprep.mubr.bf16.mxu0 0
    %767 = vmatmul.mubr.bf16.gmra.mrb[0].mxu0 %v729
    %v768 = vpop.f32.mrb[0].mxu0
    %v769 = vadd.f32 %v702, %v768
    %v770 = vpop.f32.mrb[0].mxu0
    %v771 = vpop.f32.mrb[0].mxu0
    %v772 = vadd.f32 %v702, %v771
    %v773 = vpop.f32.mrb[0].mxu0
    %774 = vmatprep.mubr.bf16.mxu0 0
    %775 = vmatmul.mubr.bf16.gmra.mrb[0].mxu0 %v732
    %v776 = vpop.f32.mrb[0].mxu0
    %v777 = vadd.f32 %v702, %v776
    %v778 = vpop.f32.mrb[0].mxu0
    %v779 = vpop.f32.mrb[0].mxu0
    %v780 = vadd.f32 %v702, %v779
    %v781 = vpop.f32.mrb[0].mxu0
    %782 = vdwg.mxu0
    %s783 = scalar_lea.vmem [#allocation2], 192
    %v784 = vld [vmem:[%s783] sm:$0xf]
    %v785 = vld [vmem:[%s783 + $0x4] sm:$0xf]
    %v786 = vld [vmem:[%s783 + $0x8] sm:$0xf]
    %v787 = vld [vmem:[%s783 + $0xc] sm:$0xf]
    %v788 = vld [vmem:[%s783 + $0x10] sm:$0xf]
    %v789 = vld [vmem:[%s783 + $0x14] sm:$0xf]
    %v790 = vld [vmem:[%s783 + $0x18] sm:$0xf]
    %v791 = vld [vmem:[%s783 + $0x1c] sm:$0xf]
    %v792 = vpack.c.bf16 %v772, %v769
    %v793 = vpack.c.bf16 %v780, %v777
    %s794 = scalar_lea.vmem %s4, 4
    %v795 = vld [vmem:[%s794] sm:$0x1]
    %v797 = vlaneseq
    %v798 = vshrl.u32 %v797, 7
    %v799 = vsub.s32 0, %v798
    %v800 = vrot.slane %v795, %v799
    %v810 = vunpack.c.l.b16 %v784
    %v811 = vunpack.c.l.b16 %v785
    %v812 = vunpack.c.l.b16 %v786
    %v813 = vunpack.c.l.b16 %v787
    %v814 = vunpack.c.l.b16 %v788
    %v815 = vunpack.c.l.b16 %v789
    %v816 = vunpack.c.l.b16 %v790
    %v817 = vunpack.c.l.b16 %v791
    %v818 = vpack.c.b16 %v811, %v810
    %v819 = vpack.c.b16 %v813, %v812
    %v820 = vpack.c.b16 %v815, %v814
    %v821 = vpack.c.b16 %v817, %v816
    %v827 = vsel %vm122, %v792, 0
    %v830 = vsel %vm122, %v793, 0
    %832 = vmatprep.subr.bf16.mxu0 0
    %833 = vmatpush1.bf16.msra.mxu0 %v818
    %834 = vmatprep.subr.bf16.mxu0 0
    %835 = vmatpush1.bf16.msra.mxu0 %v819
    %836 = vmatprep.subr.bf16.mxu0 0
    %837 = vmatpush1.bf16.msra.mxu0 %v820
    %838 = vmatprep.subr.bf16.mxu0 0
    %839 = vmatpush1.bf16.msra.mxu0 %v821
    %840 = vmatprep.subr.bf16.mxu0 0
    %841 = vmatpush1.bf16.msra.mxu0 0
    %842 = vmatprep.subr.bf16.mxu0 0
    %843 = vmatpush1.bf16.msra.mxu0 0
    %844 = vmatprep.subr.bf16.mxu0 0
    %845 = vmatpush1.bf16.msra.mxu0 0
    %846 = vmatprep.subr.bf16.mxu0 0
    %847 = vmatpush1.bf16.msra.mxu0 0
    %848 = vmatprep.subr.bf16.mxu0 0
    %849 = vmatpush1.bf16.msra.mxu0 0
    %850 = vmatprep.subr.bf16.mxu0 0
    %851 = vmatpush1.bf16.msra.mxu0 0
    %852 = vmatprep.subr.bf16.mxu0 0
    %853 = vmatpush1.bf16.msra.mxu0 0
    %854 = vmatprep.subr.bf16.mxu0 0
    %855 = vmatpush1.bf16.msra.mxu0 0
    %856 = vmatprep.subr.bf16.mxu0 0
    %857 = vmatpush1.bf16.msra.mxu0 0
    %858 = vmatprep.subr.bf16.mxu0 0
    %859 = vmatpush1.bf16.msra.mxu0 0
    %860 = vmatprep.subr.bf16.mxu0 0
    %861 = vmatpush1.bf16.msra.mxu0 0
    %862 = vmatprep.subr.bf16.mxu0 0
    %863 = vmatpush1.bf16.msra.mxu0 0
    %864 = vmatprep.mubr.bf16.mxu0 0
    %865 = vmatmul.mubr.bf16.gmra.mrb[0].mxu0 %v827
    %v866 = vpop.f32.mrb[0].mxu0
    %v867 = vadd.f32 %v800, %v866
    %v868 = vpop.f32.mrb[0].mxu0
    %v869 = vpop.f32.mrb[0].mxu0
    %v870 = vadd.f32 %v800, %v869
    %v871 = vpop.f32.mrb[0].mxu0
    %872 = vmatprep.mubr.bf16.mxu0 0
    %873 = vmatmul.mubr.bf16.gmra.mrb[0].mxu0 %v830
    %v874 = vpop.f32.mrb[0].mxu0
    %v875 = vadd.f32 %v800, %v874
    %v876 = vpop.f32.mrb[0].mxu0
    %v877 = vpop.f32.mrb[0].mxu0
    %v878 = vadd.f32 %v800, %v877
    %v879 = vpop.f32.mrb[0].mxu0
    %880 = vdwg.mxu0
    %vm881 = vcmp.gt.f32.partialorder %v867, 0.0
    %vm882 = vcmp.gt.f32.partialorder %v870, 0.0
    %vm883 = vcmp.gt.f32.partialorder %v875, 0.0
    %vm884 = vcmp.gt.f32.partialorder %v878, 0.0
    %v885 = vmul.f32 %v867, 1.442695
    %v886 = vpow.pop %v885
    %v887 = vmul.f32 %v870, 1.442695
    %v888 = vpow.pop %v887
    %v889 = vmul.f32 %v875, 1.442695
    %v890 = vpow.pop %v889
    %v891 = vmul.f32 %v878, 1.442695
    %v892 = vpow.pop %v891
    %v893 = vsub.f32 %v886, 1.0
    %v894 = vsub.f32 %v888, 1.0
    %v895 = vsub.f32 %v890, 1.0
    %v896 = vsub.f32 %v892, 1.0
    %v897 = vmul.f32 %v893, 1.6732632
    %v898 = vmul.f32 %v894, 1.6732632
    %v899 = vmul.f32 %v895, 1.6732632
    %v900 = vmul.f32 %v896, 1.6732632
    %v901 = vsel %vm881, %v867, %v897
    %v902 = vsel %vm882, %v870, %v898
    %v903 = vsel %vm883, %v875, %v899
    %v904 = vsel %vm884, %v878, %v900
    %v905 = vmul.f32 %v901, 1.050701
    %v906 = vmul.f32 %v902, 1.050701
    %v907 = vmul.f32 %v903, 1.050701
    %v908 = vmul.f32 %v904, 1.050701
    %s909 = scalar_lea.vmem [#allocation2], 224
    %v910 = vld [vmem:[%s909] sm:$0xf]
    %v911 = vld [vmem:[%s909 + $0x4] sm:$0xf]
    %v912 = vld [vmem:[%s909 + $0x8] sm:$0xf]
    %v913 = vld [vmem:[%s909 + $0xc] sm:$0xf]
    %v914 = vld [vmem:[%s909 + $0x10] sm:$0xf]
    %v915 = vld [vmem:[%s909 + $0x14] sm:$0xf]
    %v916 = vld [vmem:[%s909 + $0x18] sm:$0xf]
    %v917 = vld [vmem:[%s909 + $0x1c] sm:$0xf]
    %v918 = vpack.c.bf16 %v906, %v905
    %v919 = vpack.c.bf16 %v908, %v907
    %s920 = scalar_lea.vmem %s4, 5
    %v921 = vld [vmem:[%s920] sm:$0x1]
    %v923 = vlaneseq
    %v924 = vshrl.u32 %v923, 7
    %v925 = vsub.s32 0, %v924
    %v926 = vrot.slane %v921, %v925
    %v936 = vunpack.c.l.b16 %v910
    %v937 = vunpack.c.l.b16 %v911
    %v938 = vunpack.c.l.b16 %v912
    %v939 = vunpack.c.l.b16 %v913
    %v940 = vunpack.c.l.b16 %v914
    %v941 = vunpack.c.l.b16 %v915
    %v942 = vunpack.c.l.b16 %v916
    %v943 = vunpack.c.l.b16 %v917
    %v944 = vpack.c.b16 %v937, %v936
    %v945 = vpack.c.b16 %v939, %v938
    %v946 = vpack.c.b16 %v941, %v940
    %v947 = vpack.c.b16 %v943, %v942
    %v953 = vsel %vm122, %v918, 0
    %v956 = vsel %vm122, %v919, 0
    %958 = vmatprep.subr.bf16.mxu0 0
    %959 = vmatpush1.bf16.msra.mxu0 %v944
    %960 = vmatprep.subr.bf16.mxu0 0
    %961 = vmatpush1.bf16.msra.mxu0 %v945
    %962 = vmatprep.subr.bf16.mxu0 0
    %963 = vmatpush1.bf16.msra.mxu0 %v946
    %964 = vmatprep.subr.bf16.mxu0 0
    %965 = vmatpush1.bf16.msra.mxu0 %v947
    %966 = vmatprep.subr.bf16.mxu0 0
    %967 = vmatpush1.bf16.msra.mxu0 0
    %968 = vmatprep.subr.bf16.mxu0 0
    %969 = vmatpush1.bf16.msra.mxu0 0
    %970 = vmatprep.subr.bf16.mxu0 0
    %971 = vmatpush1.bf16.msra.mxu0 0
    %972 = vmatprep.subr.bf16.mxu0 0
    %973 = vmatpush1.bf16.msra.mxu0 0
    %974 = vmatprep.subr.bf16.mxu0 0
    %975 = vmatpush1.bf16.msra.mxu0 0
    %976 = vmatprep.subr.bf16.mxu0 0
    %977 = vmatpush1.bf16.msra.mxu0 0
    %978 = vmatprep.subr.bf16.mxu0 0
    %979 = vmatpush1.bf16.msra.mxu0 0
    %980 = vmatprep.subr.bf16.mxu0 0
    %981 = vmatpush1.bf16.msra.mxu0 0
    %982 = vmatprep.subr.bf16.mxu0 0
    %983 = vmatpush1.bf16.msra.mxu0 0
    %984 = vmatprep.subr.bf16.mxu0 0
    %985 = vmatpush1.bf16.msra.mxu0 0
    %986 = vmatprep.subr.bf16.mxu0 0
    %987 = vmatpush1.bf16.msra.mxu0 0
    %988 = vmatprep.subr.bf16.mxu0 0
    %989 = vmatpush1.bf16.msra.mxu0 0
    %990 = vmatprep.mubr.bf16.mxu0 0
    %991 = vmatmul.mubr.bf16.gmra.mrb[0].mxu0 %v953
    %v992 = vpop.f32.mrb[0].mxu0
    %v993 = vadd.f32 %v926, %v992
    %v994 = vpop.f32.mrb[0].mxu0
    %v995 = vpop.f32.mrb[0].mxu0
    %v996 = vadd.f32 %v926, %v995
    %v997 = vpop.f32.mrb[0].mxu0
    %998 = vmatprep.mubr.bf16.mxu0 0
    %999 = vmatmul.mubr.bf16.gmra.mrb[0].mxu0 %v956
    %v1000 = vpop.f32.mrb[0].mxu0
    %v1001 = vadd.f32 %v926, %v1000
    %v1002 = vpop.f32.mrb[0].mxu0
    %v1003 = vpop.f32.mrb[0].mxu0
    %v1004 = vadd.f32 %v926, %v1003
    %v1005 = vpop.f32.mrb[0].mxu0
    %1006 = vdwg.mxu0
    %s1007 = scalar_lea.vmem [#allocation2], 320
    %v1008 = vld [vmem:[%s1007] sm:$0xf]
    %v1009 = vld [vmem:[%s1007 + $0x4] sm:$0xf]
    %v1010 = vld [vmem:[%s1007 + $0x8] sm:$0xf]
    %v1011 = vld [vmem:[%s1007 + $0xc] sm:$0xf]
    %v1012 = vld [vmem:[%s1007 + $0x10] sm:$0xf]
    %v1013 = vld [vmem:[%s1007 + $0x14] sm:$0xf]
    %v1014 = vld [vmem:[%s1007 + $0x18] sm:$0xf]
    %v1015 = vld [vmem:[%s1007 + $0x1c] sm:$0xf]
    %v1016 = vpack.c.bf16 %v52, %v52
    %s1017 = scalar_lea.vmem %s4, 10
    %v1018 = vld [vmem:[%s1017] sm:$0x1]
    %v1020 = vlaneseq
    %v1021 = vshrl.u32 %v1020, 7
    %v1022 = vsub.s32 0, %v1021
    %v1023 = vrot.slane %v1018, %v1022
    %v1033 = vunpack.c.l.b16 %v1008
    %v1034 = vunpack.c.l.b16 %v1009
    %v1035 = vunpack.c.l.b16 %v1010
    %v1036 = vunpack.c.l.b16 %v1011
    %v1037 = vunpack.c.l.b16 %v1012
    %v1038 = vunpack.c.l.b16 %v1013
    %v1039 = vunpack.c.l.b16 %v1014
    %v1040 = vunpack.c.l.b16 %v1015
    %v1041 = vpack.c.b16 %v1034, %v1033
    %v1042 = vpack.c.b16 %v1036, %v1035
    %v1043 = vpack.c.b16 %v1038, %v1037
    %v1044 = vpack.c.b16 %v1040, %v1039
    %v1050 = vsel %vm122, %v1016, 0
    %1052 = vmatprep.subr.bf16.mxu0 0
    %1053 = vmatpush1.bf16.msra.mxu0 %v1041
    %1054 = vmatprep.subr.bf16.mxu0 0
    %1055 = vmatpush1.bf16.msra.mxu0 %v1042
    %1056 = vmatprep.subr.bf16.mxu0 0
    %1057 = vmatpush1.bf16.msra.mxu0 %v1043
    %1058 = vmatprep.subr.bf16.mxu0 0
    %1059 = vmatpush1.bf16.msra.mxu0 %v1044
    %1060 = vmatprep.subr.bf16.mxu0 0
    %1061 = vmatpush1.bf16.msra.mxu0 0
    %1062 = vmatprep.subr.bf16.mxu0 0
    %1063 = vmatpush1.bf16.msra.mxu0 0
    %1064 = vmatprep.subr.bf16.mxu0 0
    %1065 = vmatpush1.bf16.msra.mxu0 0
    %1066 = vmatprep.subr.bf16.mxu0 0
    %1067 = vmatpush1.bf16.msra.mxu0 0
    %1068 = vmatprep.subr.bf16.mxu0 0
    %1069 = vmatpush1.bf16.msra.mxu0 0
    %1070 = vmatprep.subr.bf16.mxu0 0
    %1071 = vmatpush1.bf16.msra.mxu0 0
    %1072 = vmatprep.subr.bf16.mxu0 0
    %1073 = vmatpush1.bf16.msra.mxu0 0
    %1074 = vmatprep.subr.bf16.mxu0 0
    %1075 = vmatpush1.bf16.msra.mxu0 0
    %1076 = vmatprep.subr.bf16.mxu0 0
    %1077 = vmatpush1.bf16.msra.mxu0 0
    %1078 = vmatprep.subr.bf16.mxu0 0
    %1079 = vmatpush1.bf16.msra.mxu0 0
    %1080 = vmatprep.subr.bf16.mxu0 0
    %1081 = vmatpush1.bf16.msra.mxu0 0
    %1082 = vmatprep.subr.bf16.mxu0 0
    %1083 = vmatpush1.bf16.msra.mxu0 0
    %1084 = vmatprep.mubr.bf16.mxu0 0
    %1085 = vmatmul.mubr.bf16.gmra.mrb[0].mxu0 %v1050
    %v1086 = vpop.f32.mrb[0].mxu0
    %v1087 = vadd.f32 %v1023, %v1086
    %v1088 = vpop.f32.mrb[0].mxu0
    %v1089 = vpop.f32.mrb[0].mxu0
    %v1090 = vpop.f32.mrb[0].mxu0
    %1091 = vdwg.mxu0
    %v1092 = vsub.f32 0.0, %v1087
    %v1093 = vmul.f32 %v1092, 1.442695
    %v1094 = vpow.pop %v1093
    %v1095 = vadd.f32 %v1094, 1.0
    %v1096 = vrcp.pop %v1095
    %v1097 = vmul.f32 1.0, %v1096
    %v1098 = vmul.f32 %v1087, %v1097
    %s1099 = scalar_lea.vmem [#allocation2], 288
    %v1100 = vld [vmem:[%s1099] sm:$0xf]
    %v1101 = vld [vmem:[%s1099 + $0x4] sm:$0xf]
    %v1102 = vld [vmem:[%s1099 + $0x8] sm:$0xf]
    %v1103 = vld [vmem:[%s1099 + $0xc] sm:$0xf]
    %v1104 = vld [vmem:[%s1099 + $0x10] sm:$0xf]
    %v1105 = vld [vmem:[%s1099 + $0x14] sm:$0xf]
    %v1106 = vld [vmem:[%s1099 + $0x18] sm:$0xf]
    %v1107 = vld [vmem:[%s1099 + $0x1c] sm:$0xf]
    %s1108 = scalar_lea.vmem %s4, 9
    %v1109 = vld [vmem:[%s1108] sm:$0x1]
    %v1111 = vlaneseq
    %v1112 = vshrl.u32 %v1111, 7
    %v1113 = vsub.s32 0, %v1112
    %v1114 = vrot.slane %v1109, %v1113
    %v1124 = vunpack.c.l.b16 %v1100
    %v1125 = vunpack.c.l.b16 %v1101
    %v1126 = vunpack.c.l.b16 %v1102
    %v1127 = vunpack.c.l.b16 %v1103
    %v1128 = vunpack.c.l.b16 %v1104
    %v1129 = vunpack.c.l.b16 %v1105
    %v1130 = vunpack.c.l.b16 %v1106
    %v1131 = vunpack.c.l.b16 %v1107
    %v1132 = vpack.c.b16 %v1125, %v1124
    %v1133 = vpack.c.b16 %v1127, %v1126
    %v1134 = vpack.c.b16 %v1129, %v1128
    %v1135 = vpack.c.b16 %v1131, %v1130
    %1140 = vmatprep.subr.bf16.mxu0 0
    %1141 = vmatpush1.bf16.msra.mxu0 %v1132
    %1142 = vmatprep.subr.bf16.mxu0 0
    %1143 = vmatpush1.bf16.msra.mxu0 %v1133
    %1144 = vmatprep.subr.bf16.mxu0 0
    %1145 = vmatpush1.bf16.msra.mxu0 %v1134
    %1146 = vmatprep.subr.bf16.mxu0 0
    %1147 = vmatpush1.bf16.msra.mxu0 %v1135
    %1148 = vmatprep.subr.bf16.mxu0 0
    %1149 = vmatpush1.bf16.msra.mxu0 0
    %1150 = vmatprep.subr.bf16.mxu0 0
    %1151 = vmatpush1.bf16.msra.mxu0 0
    %1152 = vmatprep.subr.bf16.mxu0 0
    %1153 = vmatpush1.bf16.msra.mxu0 0
    %1154 = vmatprep.subr.bf16.mxu0 0
    %1155 = vmatpush1.bf16.msra.mxu0 0
    %1156 = vmatprep.subr.bf16.mxu0 0
    %1157 = vmatpush1.bf16.msra.mxu0 0
    %1158 = vmatprep.subr.bf16.mxu0 0
    %1159 = vmatpush1.bf16.msra.mxu0 0
    %1160 = vmatprep.subr.bf16.mxu0 0
    %1161 = vmatpush1.bf16.msra.mxu0 0
    %1162 = vmatprep.subr.bf16.mxu0 0
    %1163 = vmatpush1.bf16.msra.mxu0 0
    %1164 = vmatprep.subr.bf16.mxu0 0
    %1165 = vmatpush1.bf16.msra.mxu0 0
    %1166 = vmatprep.subr.bf16.mxu0 0
    %1167 = vmatpush1.bf16.msra.mxu0 0
    %1168 = vmatprep.subr.bf16.mxu0 0
    %1169 = vmatpush1.bf16.msra.mxu0 0
    %1170 = vmatprep.subr.bf16.mxu0 0
    %1171 = vmatpush1.bf16.msra.mxu0 0
    %1172 = vmatprep.mubr.bf16.mxu0 0
    %1173 = vmatmul.mubr.bf16.gmra.mrb[0].mxu0 %v729
    %v1174 = vpop.f32.mrb[0].mxu0
    %v1175 = vadd.f32 %v1114, %v1174
    %v1176 = vpop.f32.mrb[0].mxu0
    %v1177 = vpop.f32.mrb[0].mxu0
    %v1178 = vadd.f32 %v1114, %v1177
    %v1179 = vpop.f32.mrb[0].mxu0
    %1180 = vmatprep.mubr.bf16.mxu0 0
    %1181 = vmatmul.mubr.bf16.gmra.mrb[0].mxu0 %v732
    %v1182 = vpop.f32.mrb[0].mxu0
    %v1183 = vadd.f32 %v1114, %v1182
    %v1184 = vpop.f32.mrb[0].mxu0
    %v1185 = vpop.f32.mrb[0].mxu0
    %v1186 = vadd.f32 %v1114, %v1185
    %v1187 = vpop.f32.mrb[0].mxu0
    %1188 = vdwg.mxu0
    %s1189 = scalar_lea.vmem %s4, 7
    %v1190 = vld [vmem:[%s1189] sm:$0x1]
    %v1192 = vlaneseq
    %v1193 = vshrl.u32 %v1192, 7
    %v1194 = vsub.s32 0, %v1193
    %v1195 = vrot.slane %v1190, %v1194
    %v1197 = vadd.f32 %v1175, %v1195
    %v1198 = vadd.f32 %v1178, %v1195
    %v1199 = vadd.f32 %v1183, %v1195
    %v1200 = vadd.f32 %v1186, %v1195
    %s1201 = scalar_lea.vmem %s4, 8
    %v1202 = vld [vmem:[%s1201] sm:$0x1]
    %v1204 = vlaneseq
    %v1205 = vshrl.u32 %v1204, 7
    %v1206 = vsub.s32 0, %v1205
    %v1207 = vrot.slane %v1202, %v1206
    %v1209 = vmul.f32 %v193, %v1207
    %v1210 = vmul.f32 %v198, %v1207
    %v1211 = vmul.f32 %v203, %v1207
    %v1212 = vmul.f32 %v208, %v1207
    %v1213 = vadd.f32 %v1197, %v1209
    %v1214 = vadd.f32 %v1198, %v1210
    %v1215 = vadd.f32 %v1199, %v1211
    %v1216 = vadd.f32 %v1200, %v1212
    %s1217 = scalar_lea.vmem %s4, 12
    %v1218 = vld [vmem:[%s1217] sm:$0x1]
    %s1219 = scalar_lea.vmem %s4, 13
    %v1220 = vld [vmem:[%s1219] sm:$0x1]
    %v1221 = vsel %vm122, %v1213, 0.0
    %v1222 = vsel %vm122, %v1214, 0.0
    %v1223 = vadd.f32 %v1221, %v1222
    %v1224 = vrot.slane %v1223, 4
    %v1225 = vadd.f32 %v1223, %v1224
    %v1226 = vrot.slane %v1225, 2
    %v1227 = vadd.f32 %v1225, %v1226
    %v1228 = vrot.slane %v1227, 1
    %v1229 = vadd.f32 %v1227, %v1228
    %v1230 = vsel %vm122, %v1215, 0.0
    %v1231 = vsel %vm122, %v1216, 0.0
    %v1232 = vadd.f32 %v1230, %v1231
    %v1233 = vrot.slane %v1232, 4
    %v1234 = vadd.f32 %v1232, %v1233
    %v1235 = vrot.slane %v1234, 2
    %v1236 = vadd.f32 %v1234, %v1235
    %v1237 = vrot.slane %v1236, 1
    %v1238 = vadd.f32 %v1236, %v1237
    %v1239 = vmul.f32 %v1213, %v1213
    %v1240 = vmul.f32 %v1214, %v1214
    %v1241 = vmul.f32 %v1215, %v1215
    %v1242 = vmul.f32 %v1216, %v1216
    %v1243 = vsel %vm122, %v1239, 0.0
    %v1244 = vsel %vm122, %v1240, 0.0
    %v1245 = vadd.f32 %v1243, %v1244
    %v1246 = vrot.slane %v1245, 4
    %v1247 = vadd.f32 %v1245, %v1246
    %v1248 = vrot.slane %v1247, 2
    %v1249 = vadd.f32 %v1247, %v1248
    %v1250 = vrot.slane %v1249, 1
    %v1251 = vadd.f32 %v1249, %v1250
    %v1252 = vsel %vm122, %v1241, 0.0
    %v1253 = vsel %vm122, %v1242, 0.0
    %v1254 = vadd.f32 %v1252, %v1253
    %v1255 = vrot.slane %v1254, 4
    %v1256 = vadd.f32 %v1254, %v1255
    %v1257 = vrot.slane %v1256, 2
    %v1258 = vadd.f32 %v1256, %v1257
    %v1259 = vrot.slane %v1258, 1
    %v1260 = vadd.f32 %v1258, %v1259
    %v1263 = vsel %vm293, %v1238, %v1229
    %v1264 = vsel %vm122, %v1263, 0
    %1266 = vmatprep.subr.mxu0 0.0
    %1267 = vmatpush1.msra.mxu0 %v73
    %1268 = vmatprep.subr.mxu0 0.0
    %1269 = vmatpush1.msra.mxu0 %v74
    %1270 = vmatprep.subr.mxu0 0.0
    %1271 = vmatpush1.msra.mxu0 %v75
    %1272 = vmatprep.subr.mxu0 0.0
    %1273 = vmatpush1.msra.mxu0 %v76
    %1274 = vmatprep.subr.mxu0 0.0
    %1275 = vmatpush1.msra.mxu0 %v77
    %1276 = vmatprep.subr.mxu0 0.0
    %1277 = vmatpush1.msra.mxu0 %v78
    %1278 = vmatprep.subr.mxu0 0.0
    %1279 = vmatpush1.msra.mxu0 %v79
    %1280 = vmatprep.subr.mxu0 0.0
    %1281 = vmatpush1.msra.mxu0 %v80
    %1282 = vmatprep.subr.mxu0 0.0
    %1283 = vmatpush1.msra.mxu0 0.0
    %1284 = vmatprep.subr.mxu0 0.0
    %1285 = vmatpush1.msra.mxu0 0.0
    %1286 = vmatprep.subr.mxu0 0.0
    %1287 = vmatpush1.msra.mxu0 0.0
    %1288 = vmatprep.subr.mxu0 0.0
    %1289 = vmatpush1.msra.mxu0 0.0
    %1290 = vmatprep.subr.mxu0 0.0
    %1291 = vmatpush1.msra.mxu0 0.0
    %1292 = vmatprep.subr.mxu0 0.0
    %1293 = vmatpush1.msra.mxu0 0.0
    %1294 = vmatprep.subr.mxu0 0.0
    %1295 = vmatpush1.msra.mxu0 0.0
    %1296 = vmatprep.subr.mxu0 0.0
    %1297 = vmatpush1.msra.mxu0 0.0
    %1298 = vmatprep.subr.mxu0 0.0
    %1299 = vmatpush1.msra.mxu0 0.0
    %1300 = vmatprep.subr.mxu0 0.0
    %1301 = vmatpush1.msra.mxu0 0.0
    %1302 = vmatprep.subr.mxu0 0.0
    %1303 = vmatpush1.msra.mxu0 0.0
    %1304 = vmatprep.subr.mxu0 0.0
    %1305 = vmatpush1.msra.mxu0 0.0
    %1306 = vmatprep.subr.mxu0 0.0
    %1307 = vmatpush1.msra.mxu0 0.0
    %1308 = vmatprep.subr.mxu0 0.0
    %1309 = vmatpush1.msra.mxu0 0.0
    %1310 = vmatprep.subr.mxu0 0.0
    %1311 = vmatpush1.msra.mxu0 0.0
    %1312 = vmatprep.subr.mxu0 0.0
    %1313 = vmatpush1.msra.mxu0 0.0
    %1314 = vmatprep.subr.mxu0 0.0
    %1315 = vmatpush1.msra.mxu0 0.0
    %1316 = vmatprep.subr.mxu0 0.0
    %1317 = vmatpush1.msra.mxu0 0.0
    %1318 = vmatprep.subr.mxu0 0.0
    %1319 = vmatpush1.msra.mxu0 0.0
    %1320 = vmatprep.subr.mxu0 0.0
    %1321 = vmatpush1.msra.mxu0 0.0
    %1322 = vmatprep.subr.mxu0 0.0
    %1323 = vmatpush1.msra.mxu0 0.0
    %1324 = vmatprep.subr.mxu0 0.0
    %1325 = vmatpush1.msra.mxu0 0.0
    %1326 = vmatprep.subr.mxu0 0.0
    %1327 = vmatpush1.msra.mxu0 0.0
    %1328 = vmatprep.subr.mxu0 0.0
    %1329 = vmatpush1.msra.mxu0 0.0
    %1330 = vmatprep.mubr.f32.mxu0 0.0
    %1331 = vmatmul.mubr.f32.gmra.mrb[0].mxu0 %v1264
    %v1332 = vpop.f32.mrb[0].mxu0
    %v1333 = vadd.f32 0.0, %v1332
    %v1334 = vpop.f32.mrb[0].mxu0
    %1335 = vdwg.mxu0
    %v1338 = vsel %vm293, %v1260, %v1251
    %v1339 = vsel %vm122, %v1338, 0
    %1341 = vmatprep.subr.mxu0 0.0
    %1342 = vmatpush1.msra.mxu0 %v73
    %1343 = vmatprep.subr.mxu0 0.0
    %1344 = vmatpush1.msra.mxu0 %v74
    %1345 = vmatprep.subr.mxu0 0.0
    %1346 = vmatpush1.msra.mxu0 %v75
    %1347 = vmatprep.subr.mxu0 0.0
    %1348 = vmatpush1.msra.mxu0 %v76
    %1349 = vmatprep.subr.mxu0 0.0
    %1350 = vmatpush1.msra.mxu0 %v77
    %1351 = vmatprep.subr.mxu0 0.0
    %1352 = vmatpush1.msra.mxu0 %v78
    %1353 = vmatprep.subr.mxu0 0.0
    %1354 = vmatpush1.msra.mxu0 %v79
    %1355 = vmatprep.subr.mxu0 0.0
    %1356 = vmatpush1.msra.mxu0 %v80
    %1357 = vmatprep.subr.mxu0 0.0
    %1358 = vmatpush1.msra.mxu0 0.0
    %1359 = vmatprep.subr.mxu0 0.0
    %1360 = vmatpush1.msra.mxu0 0.0
    %1361 = vmatprep.subr.mxu0 0.0
    %1362 = vmatpush1.msra.mxu0 0.0
    %1363 = vmatprep.subr.mxu0 0.0
    %1364 = vmatpush1.msra.mxu0 0.0
    %1365 = vmatprep.subr.mxu0 0.0
    %1366 = vmatpush1.msra.mxu0 0.0
    %1367 = vmatprep.subr.mxu0 0.0
    %1368 = vmatpush1.msra.mxu0 0.0
    %1369 = vmatprep.subr.mxu0 0.0
    %1370 = vmatpush1.msra.mxu0 0.0
    %1371 = vmatprep.subr.mxu0 0.0
    %1372 = vmatpush1.msra.mxu0 0.0
    %1373 = vmatprep.subr.mxu0 0.0
    %1374 = vmatpush1.msra.mxu0 0.0
    %1375 = vmatprep.subr.mxu0 0.0
    %1376 = vmatpush1.msra.mxu0 0.0
    %1377 = vmatprep.subr.mxu0 0.0
    %1378 = vmatpush1.msra.mxu0 0.0
    %1379 = vmatprep.subr.mxu0 0.0
    %1380 = vmatpush1.msra.mxu0 0.0
    %1381 = vmatprep.subr.mxu0 0.0
    %1382 = vmatpush1.msra.mxu0 0.0
    %1383 = vmatprep.subr.mxu0 0.0
    %1384 = vmatpush1.msra.mxu0 0.0
    %1385 = vmatprep.subr.mxu0 0.0
    %1386 = vmatpush1.msra.mxu0 0.0
    %1387 = vmatprep.subr.mxu0 0.0
    %1388 = vmatpush1.msra.mxu0 0.0
    %1389 = vmatprep.subr.mxu0 0.0
    %1390 = vmatpush1.msra.mxu0 0.0
    %1391 = vmatprep.subr.mxu0 0.0
    %1392 = vmatpush1.msra.mxu0 0.0
    %1393 = vmatprep.subr.mxu0 0.0
    %1394 = vmatpush1.msra.mxu0 0.0
    %1395 = vmatprep.subr.mxu0 0.0
    %1396 = vmatpush1.msra.mxu0 0.0
    %1397 = vmatprep.subr.mxu0 0.0
    %1398 = vmatpush1.msra.mxu0 0.0
    %1399 = vmatprep.subr.mxu0 0.0
    %1400 = vmatpush1.msra.mxu0 0.0
    %1401 = vmatprep.subr.mxu0 0.0
    %1402 = vmatpush1.msra.mxu0 0.0
    %1403 = vmatprep.subr.mxu0 0.0
    %1404 = vmatpush1.msra.mxu0 0.0
    %1405 = vmatprep.mubr.f32.mxu0 0.0
    %1406 = vmatmul.mubr.f32.gmra.mrb[0].mxu0 %v1339
    %v1407 = vpop.f32.mrb[0].mxu0
    %v1408 = vadd.f32 0.0, %v1407
    %v1409 = vpop.f32.mrb[0].mxu0
    %1410 = vdwg.mxu0
    %v1411 = vmul.f32 %v1333, 0.03125
    %v1412 = vmul.f32 %v1408, 0.03125
    %v1413 = vmul.f32 %v1411, %v1411
    %v1414 = vsub.f32 %v1412, %v1413
    %v1415 = vmax.f32 %v1414, 0.0
    %v1416 = vadd.f32 %v1415, 1e-06
    %v1417 = vrsqrt.pop %v1416
    %v1419 = vlaneseq
    %v1420 = vshrl.u32 %v1419, 7
    %v1421 = vsub.s32 0, %v1420
    %v1422 = vrot.slane %v1218, %v1421
    %v1424 = vmul.f32 %v1422, %v1417
    %v1425 = vmul.f32 %v1411, %v1424
    %v1427 = vlaneseq
    %v1428 = vshrl.u32 %v1427, 7
    %v1429 = vsub.s32 0, %v1428
    %v1430 = vrot.slane %v1220, %v1429
    %v1432 = vsub.f32 %v1430, %v1425
    %v1435 = vunpack.c.l.s4 1966171168
    %v1436 = vunpack.c.0.s8 %v1435
    %v1437 = vlaneseq
    %v1438 = vshrl.u32 %v1437, 7
    %v1439 = vsub.s32 %v1436, %v1438
    %v1440 = vrot.slane %v1424, %v1439
    %v1441 = vcombine.high %v1440, %v1440
    %v1443 = vunpack.c.l.s4 1966171168
    %v1444 = vunpack.c.0.s8 %v1443
    %v1445 = vlaneseq
    %v1446 = vshrl.u32 %v1445, 7
    %v1447 = vsub.s32 %v1444, %v1446
    %v1448 = vrot.slane %v1440, %v1447
    %v1450 = vunpack.c.l.s4 1966171168
    %v1451 = vunpack.c.0.s8 %v1450
    %v1452 = vlaneseq
    %v1453 = vshrl.u32 %v1452, 7
    %v1454 = vsub.s32 %v1451, %v1453
    %v1455 = vrot.slane %v1441, %v1454
    %v1456 = vlaneseq
    %v1457 = vshrl.u32 %v1456, 7
    %v1458 = vsub.s32 0, %v1457
    %v1459 = vrot.slane %v1448, %v1458
    %v1460 = vlaneseq
    %v1461 = vshrl.u32 %v1460, 7
    %v1462 = vsub.s32 0, %v1461
    %v1463 = vrot.slane %v1455, %v1462
    %v1466 = vmul.f32 %v1213, %v1459
    %v1467 = vmul.f32 %v1214, %v1459
    %v1468 = vmul.f32 %v1215, %v1463
    %v1469 = vmul.f32 %v1216, %v1463
    %v1472 = vunpack.c.l.s4 1966171168
    %v1473 = vunpack.c.0.s8 %v1472
    %v1474 = vlaneseq
    %v1475 = vshrl.u32 %v1474, 7
    %v1476 = vsub.s32 %v1473, %v1475
    %v1477 = vrot.slane %v1432, %v1476
    %v1478 = vcombine.high %v1477, %v1477
    %v1480 = vunpack.c.l.s4 1966171168
    %v1481 = vunpack.c.0.s8 %v1480
    %v1482 = vlaneseq
    %v1483 = vshrl.u32 %v1482, 7
    %v1484 = vsub.s32 %v1481, %v1483
    %v1485 = vrot.slane %v1477, %v1484
    %v1487 = vunpack.c.l.s4 1966171168
    %v1488 = vunpack.c.0.s8 %v1487
    %v1489 = vlaneseq
    %v1490 = vshrl.u32 %v1489, 7
    %v1491 = vsub.s32 %v1488, %v1490
    %v1492 = vrot.slane %v1478, %v1491
    %v1493 = vlaneseq
    %v1494 = vshrl.u32 %v1493, 7
    %v1495 = vsub.s32 0, %v1494
    %v1496 = vrot.slane %v1485, %v1495
    %v1497 = vlaneseq
    %v1498 = vshrl.u32 %v1497, 7
    %v1499 = vsub.s32 0, %v1498
    %v1500 = vrot.slane %v1492, %v1499
    %v1503 = vadd.f32 %v1466, %v1496
    %v1504 = vadd.f32 %v1467, %v1496
    %v1505 = vadd.f32 %v1468, %v1500
    %v1506 = vadd.f32 %v1469, %v1500
    %v1507 = vsub.f32 0.0, %v1503
    %v1508 = vsub.f32 0.0, %v1504
    %v1509 = vsub.f32 0.0, %v1505
    %v1510 = vsub.f32 0.0, %v1506
    %v1511 = vmul.f32 %v1507, 1.442695
    %v1512 = vpow.pop %v1511
    %v1513 = vmul.f32 %v1508, 1.442695
    %v1514 = vpow.pop %v1513
    %v1515 = vmul.f32 %v1509, 1.442695
    %v1516 = vpow.pop %v1515
    %v1517 = vmul.f32 %v1510, 1.442695
    %v1518 = vpow.pop %v1517
    %v1519 = vadd.f32 %v1512, 1.0
    %v1520 = vadd.f32 %v1514, 1.0
    %v1521 = vadd.f32 %v1516, 1.0
    %v1522 = vadd.f32 %v1518, 1.0
    %v1523 = vrcp.pop %v1519
    %v1524 = vmul.f32 1.0, %v1523
    %v1525 = vrcp.pop %v1520
    %v1526 = vmul.f32 1.0, %v1525
    %v1527 = vrcp.pop %v1521
    %v1528 = vmul.f32 1.0, %v1527
    %v1529 = vrcp.pop %v1522
    %v1530 = vmul.f32 1.0, %v1529
    %v1531 = vmul.f32 %v1503, %v1524
    %v1532 = vmul.f32 %v1504, %v1526
    %v1533 = vmul.f32 %v1505, %v1528
    %v1534 = vmul.f32 %v1506, %v1530
    %s1535 = scalar_lea.vmem [#allocation2], 384
    %v1536 = vld [vmem:[%s1535] sm:$0xf]
    %v1537 = vld [vmem:[%s1535 + $0x4] sm:$0xf]
    %v1538 = vld [vmem:[%s1535 + $0x8] sm:$0xf]
    %v1539 = vld [vmem:[%s1535 + $0xc] sm:$0xf]
    %v1540 = vld [vmem:[%s1535 + $0x10] sm:$0xf]
    %v1541 = vld [vmem:[%s1535 + $0x14] sm:$0xf]
    %v1542 = vld [vmem:[%s1535 + $0x18] sm:$0xf]
    %v1543 = vld [vmem:[%s1535 + $0x1c] sm:$0xf]
    %v1544 = vpack.c.bf16 %v1532, %v1531
    %v1545 = vpack.c.bf16 %v1534, %v1533
    %s1546 = scalar_lea.vmem %s4, 14
    %v1547 = vld [vmem:[%s1546] sm:$0x1]
    %v1549 = vlaneseq
    %v1550 = vshrl.u32 %v1549, 7
    %v1551 = vsub.s32 0, %v1550
    %v1552 = vrot.slane %v1547, %v1551
    %v1562 = vunpack.c.l.b16 %v1536
    %v1563 = vunpack.c.l.b16 %v1537
    %v1564 = vunpack.c.l.b16 %v1538
    %v1565 = vunpack.c.l.b16 %v1539
    %v1566 = vunpack.c.l.b16 %v1540
    %v1567 = vunpack.c.l.b16 %v1541
    %v1568 = vunpack.c.l.b16 %v1542
    %v1569 = vunpack.c.l.b16 %v1543
    %v1570 = vpack.c.b16 %v1563, %v1562
    %v1571 = vpack.c.b16 %v1565, %v1564
    %v1572 = vpack.c.b16 %v1567, %v1566
    %v1573 = vpack.c.b16 %v1569, %v1568
    %v1579 = vsel %vm122, %v1544, 0
    %v1582 = vsel %vm122, %v1545, 0
    %1584 = vmatprep.subr.bf16.mxu0 0
    %1585 = vmatpush1.bf16.msra.mxu0 %v1570
    %1586 = vmatprep.subr.bf16.mxu0 0
    %1587 = vmatpush1.bf16.msra.mxu0 %v1571
    %1588 = vmatprep.subr.bf16.mxu0 0
    %1589 = vmatpush1.bf16.msra.mxu0 %v1572
    %1590 = vmatprep.subr.bf16.mxu0 0
    %1591 = vmatpush1.bf16.msra.mxu0 %v1573
    %1592 = vmatprep.subr.bf16.mxu0 0
    %1593 = vmatpush1.bf16.msra.mxu0 0
    %1594 = vmatprep.subr.bf16.mxu0 0
    %1595 = vmatpush1.bf16.msra.mxu0 0
    %1596 = vmatprep.subr.bf16.mxu0 0
    %1597 = vmatpush1.bf16.msra.mxu0 0
    %1598 = vmatprep.subr.bf16.mxu0 0
    %1599 = vmatpush1.bf16.msra.mxu0 0
    %1600 = vmatprep.subr.bf16.mxu0 0
    %1601 = vmatpush1.bf16.msra.mxu0 0
    %1602 = vmatprep.subr.bf16.mxu0 0
    %1603 = vmatpush1.bf16.msra.mxu0 0
    %1604 = vmatprep.subr.bf16.mxu0 0
    %1605 = vmatpush1.bf16.msra.mxu0 0
    %1606 = vmatprep.subr.bf16.mxu0 0
    %1607 = vmatpush1.bf16.msra.mxu0 0
    %1608 = vmatprep.subr.bf16.mxu0 0
    %1609 = vmatpush1.bf16.msra.mxu0 0
    %1610 = vmatprep.subr.bf16.mxu0 0
    %1611 = vmatpush1.bf16.msra.mxu0 0
    %1612 = vmatprep.subr.bf16.mxu0 0
    %1613 = vmatpush1.bf16.msra.mxu0 0
    %1614 = vmatprep.subr.bf16.mxu0 0
    %1615 = vmatpush1.bf16.msra.mxu0 0
    %1616 = vmatprep.mubr.bf16.mxu0 0
    %1617 = vmatmul.mubr.bf16.gmra.mrb[0].mxu0 %v1579
    %v1618 = vpop.f32.mrb[0].mxu0
    %v1619 = vadd.f32 %v1552, %v1618
    %v1620 = vpop.f32.mrb[0].mxu0
    %v1621 = vpop.f32.mrb[0].mxu0
    %v1622 = vadd.f32 %v1552, %v1621
    %v1623 = vpop.f32.mrb[0].mxu0
    %1624 = vmatprep.mubr.bf16.mxu0 0
    %1625 = vmatmul.mubr.bf16.gmra.mrb[0].mxu0 %v1582
    %v1626 = vpop.f32.mrb[0].mxu0
    %v1627 = vadd.f32 %v1552, %v1626
    %v1628 = vpop.f32.mrb[0].mxu0
    %v1629 = vpop.f32.mrb[0].mxu0
    %v1630 = vadd.f32 %v1552, %v1629
    %v1631 = vpop.f32.mrb[0].mxu0
    %1632 = vdwg.mxu0
    %s1633 = scalar_lea.vmem [#allocation2], 416
    %v1634 = vld [vmem:[%s1633] sm:$0xf]
    %v1635 = vld [vmem:[%s1633 + $0x4] sm:$0xf]
    %v1636 = vld [vmem:[%s1633 + $0x8] sm:$0xf]
    %v1637 = vld [vmem:[%s1633 + $0xc] sm:$0xf]
    %v1638 = vld [vmem:[%s1633 + $0x10] sm:$0xf]
    %v1639 = vld [vmem:[%s1633 + $0x14] sm:$0xf]
    %v1640 = vld [vmem:[%s1633 + $0x18] sm:$0xf]
    %v1641 = vld [vmem:[%s1633 + $0x1c] sm:$0xf]
    %v1642 = vpack.c.bf16 %v1098, %v1098
    %s1643 = scalar_lea.vmem %s4, 15
    %v1644 = vld [vmem:[%s1643] sm:$0x1]
    %v1646 = vlaneseq
    %v1647 = vshrl.u32 %v1646, 7
    %v1648 = vsub.s32 0, %v1647
    %v1649 = vrot.slane %v1644, %v1648
    %v1659 = vunpack.c.l.b16 %v1634
    %v1660 = vunpack.c.l.b16 %v1635
    %v1661 = vunpack.c.l.b16 %v1636
    %v1662 = vunpack.c.l.b16 %v1637
    %v1663 = vunpack.c.l.b16 %v1638
    %v1664 = vunpack.c.l.b16 %v1639
    %v1665 = vunpack.c.l.b16 %v1640
    %v1666 = vunpack.c.l.b16 %v1641
    %v1667 = vpack.c.b16 %v1660, %v1659
    %v1668 = vpack.c.b16 %v1662, %v1661
    %v1669 = vpack.c.b16 %v1664, %v1663
    %v1670 = vpack.c.b16 %v1666, %v1665
    %v1676 = vsel %vm122, %v1642, 0
    %1678 = vmatprep.subr.bf16.mxu0 0
    %1679 = vmatpush1.bf16.msra.mxu0 %v1667
    %1680 = vmatprep.subr.bf16.mxu0 0
    %1681 = vmatpush1.bf16.msra.mxu0 %v1668
    %1682 = vmatprep.subr.bf16.mxu0 0
    %1683 = vmatpush1.bf16.msra.mxu0 %v1669
    %1684 = vmatprep.subr.bf16.mxu0 0
    %1685 = vmatpush1.bf16.msra.mxu0 %v1670
    %1686 = vmatprep.subr.bf16.mxu0 0
    %1687 = vmatpush1.bf16.msra.mxu0 0
    %1688 = vmatprep.subr.bf16.mxu0 0
    %1689 = vmatpush1.bf16.msra.mxu0 0
    %1690 = vmatprep.subr.bf16.mxu0 0
    %1691 = vmatpush1.bf16.msra.mxu0 0
    %1692 = vmatprep.subr.bf16.mxu0 0
    %1693 = vmatpush1.bf16.msra.mxu0 0
    %1694 = vmatprep.subr.bf16.mxu0 0
    %1695 = vmatpush1.bf16.msra.mxu0 0
    %1696 = vmatprep.subr.bf16.mxu0 0
    %1697 = vmatpush1.bf16.msra.mxu0 0
    %1698 = vmatprep.subr.bf16.mxu0 0
    %1699 = vmatpush1.bf16.msra.mxu0 0
    %1700 = vmatprep.subr.bf16.mxu0 0
    %1701 = vmatpush1.bf16.msra.mxu0 0
    %1702 = vmatprep.subr.bf16.mxu0 0
    %1703 = vmatpush1.bf16.msra.mxu0 0
    %1704 = vmatprep.subr.bf16.mxu0 0
    %1705 = vmatpush1.bf16.msra.mxu0 0
    %1706 = vmatprep.subr.bf16.mxu0 0
    %1707 = vmatpush1.bf16.msra.mxu0 0
    %1708 = vmatprep.subr.bf16.mxu0 0
    %1709 = vmatpush1.bf16.msra.mxu0 0
    %1710 = vmatprep.mubr.bf16.mxu0 0
    %1711 = vmatmul.mubr.bf16.gmra.mrb[0].mxu0 %v1676
    %v1712 = vpop.f32.mrb[0].mxu0
    %v1713 = vadd.f32 %v1649, %v1712
    %v1714 = vpop.f32.mrb[0].mxu0
    %v1715 = vpop.f32.mrb[0].mxu0
    %v1716 = vpop.f32.mrb[0].mxu0
    %1717 = vdwg.mxu0
    %v1720 = vunpack.c.l.s4 1966171168
    %v1721 = vunpack.c.0.s8 %v1720
    %v1722 = vlaneseq
    %v1723 = vshrl.u32 %v1722, 7
    %v1724 = vsub.s32 %v1721, %v1723
    %v1725 = vrot.slane %v1713, %v1724
    %v1726 = vcombine.high %v1725, %v1725
    %v1728 = vunpack.c.l.s4 1966171168
    %v1729 = vunpack.c.0.s8 %v1728
    %v1730 = vlaneseq
    %v1731 = vshrl.u32 %v1730, 7
    %v1732 = vsub.s32 %v1729, %v1731
    %v1733 = vrot.slane %v1725, %v1732
    %v1735 = vunpack.c.l.s4 1966171168
    %v1736 = vunpack.c.0.s8 %v1735
    %v1737 = vlaneseq
    %v1738 = vshrl.u32 %v1737, 7
    %v1739 = vsub.s32 %v1736, %v1738
    %v1740 = vrot.slane %v1726, %v1739
    %v1741 = vlaneseq
    %v1742 = vshrl.u32 %v1741, 7
    %v1743 = vsub.s32 0, %v1742
    %v1744 = vrot.slane %v1733, %v1743
    %v1745 = vlaneseq
    %v1746 = vshrl.u32 %v1745, 7
    %v1747 = vsub.s32 0, %v1746
    %v1748 = vrot.slane %v1740, %v1747
    %v1751 = vadd.f32 %v1619, %v1744
    %v1752 = vadd.f32 %v1622, %v1744
    %v1753 = vadd.f32 %v1627, %v1748
    %v1754 = vadd.f32 %v1630, %v1748
    %s1755 = scalar_lea.vmem %s4, 16
    %v1756 = vld [vmem:[%s1755] sm:$0x1]
    %s1757 = scalar_lea.vmem %s4, 17
    %v1758 = vld [vmem:[%s1757] sm:$0x1]
    %v1759 = vsel %vm122, %v1751, 0.0
    %v1760 = vsel %vm122, %v1752, 0.0
    %v1761 = vadd.f32 %v1759, %v1760
    %v1762 = vrot.slane %v1761, 4
    %v1763 = vadd.f32 %v1761, %v1762
    %v1764 = vrot.slane %v1763, 2
    %v1765 = vadd.f32 %v1763, %v1764
    %v1766 = vrot.slane %v1765, 1
    %v1767 = vadd.f32 %v1765, %v1766
    %v1768 = vsel %vm122, %v1753, 0.0
    %v1769 = vsel %vm122, %v1754, 0.0
    %v1770 = vadd.f32 %v1768, %v1769
    %v1771 = vrot.slane %v1770, 4
    %v1772 = vadd.f32 %v1770, %v1771
    %v1773 = vrot.slane %v1772, 2
    %v1774 = vadd.f32 %v1772, %v1773
    %v1775 = vrot.slane %v1774, 1
    %v1776 = vadd.f32 %v1774, %v1775
    %v1777 = vmul.f32 %v1751, %v1751
    %v1778 = vmul.f32 %v1752, %v1752
    %v1779 = vmul.f32 %v1753, %v1753
    %v1780 = vmul.f32 %v1754, %v1754
    %v1781 = vsel %vm122, %v1777, 0.0
    %v1782 = vsel %vm122, %v1778, 0.0
    %v1783 = vadd.f32 %v1781, %v1782
    %v1784 = vrot.slane %v1783, 4
    %v1785 = vadd.f32 %v1783, %v1784
    %v1786 = vrot.slane %v1785, 2
    %v1787 = vadd.f32 %v1785, %v1786
    %v1788 = vrot.slane %v1787, 1
    %v1789 = vadd.f32 %v1787, %v1788
    %v1790 = vsel %vm122, %v1779, 0.0
    %v1791 = vsel %vm122, %v1780, 0.0
    %v1792 = vadd.f32 %v1790, %v1791
    %v1793 = vrot.slane %v1792, 4
    %v1794 = vadd.f32 %v1792, %v1793
    %v1795 = vrot.slane %v1794, 2
    %v1796 = vadd.f32 %v1794, %v1795
    %v1797 = vrot.slane %v1796, 1
    %v1798 = vadd.f32 %v1796, %v1797
    %v1801 = vsel %vm293, %v1776, %v1767
    %v1802 = vsel %vm122, %v1801, 0
    %1804 = vmatprep.subr.mxu0 0.0
    %1805 = vmatpush1.msra.mxu0 %v73
    %1806 = vmatprep.subr.mxu0 0.0
    %1807 = vmatpush1.msra.mxu0 %v74
    %1808 = vmatprep.subr.mxu0 0.0
    %1809 = vmatpush1.msra.mxu0 %v75
    %1810 = vmatprep.subr.mxu0 0.0
    %1811 = vmatpush1.msra.mxu0 %v76
    %1812 = vmatprep.subr.mxu0 0.0
    %1813 = vmatpush1.msra.mxu0 %v77
    %1814 = vmatprep.subr.mxu0 0.0
    %1815 = vmatpush1.msra.mxu0 %v78
    %1816 = vmatprep.subr.mxu0 0.0
    %1817 = vmatpush1.msra.mxu0 %v79
    %1818 = vmatprep.subr.mxu0 0.0
    %1819 = vmatpush1.msra.mxu0 %v80
    %1820 = vmatprep.subr.mxu0 0.0
    %1821 = vmatpush1.msra.mxu0 0.0
    %1822 = vmatprep.subr.mxu0 0.0
    %1823 = vmatpush1.msra.mxu0 0.0
    %1824 = vmatprep.subr.mxu0 0.0
    %1825 = vmatpush1.msra.mxu0 0.0
    %1826 = vmatprep.subr.mxu0 0.0
    %1827 = vmatpush1.msra.mxu0 0.0
    %1828 = vmatprep.subr.mxu0 0.0
    %1829 = vmatpush1.msra.mxu0 0.0
    %1830 = vmatprep.subr.mxu0 0.0
    %1831 = vmatpush1.msra.mxu0 0.0
    %1832 = vmatprep.subr.mxu0 0.0
    %1833 = vmatpush1.msra.mxu0 0.0
    %1834 = vmatprep.subr.mxu0 0.0
    %1835 = vmatpush1.msra.mxu0 0.0
    %1836 = vmatprep.subr.mxu0 0.0
    %1837 = vmatpush1.msra.mxu0 0.0
    %1838 = vmatprep.subr.mxu0 0.0
    %1839 = vmatpush1.msra.mxu0 0.0
    %1840 = vmatprep.subr.mxu0 0.0
    %1841 = vmatpush1.msra.mxu0 0.0
    %1842 = vmatprep.subr.mxu0 0.0
    %1843 = vmatpush1.msra.mxu0 0.0
    %1844 = vmatprep.subr.mxu0 0.0
    %1845 = vmatpush1.msra.mxu0 0.0
    %1846 = vmatprep.subr.mxu0 0.0
    %1847 = vmatpush1.msra.mxu0 0.0
    %1848 = vmatprep.subr.mxu0 0.0
    %1849 = vmatpush1.msra.mxu0 0.0
    %1850 = vmatprep.subr.mxu0 0.0
    %1851 = vmatpush1.msra.mxu0 0.0
    %1852 = vmatprep.subr.mxu0 0.0
    %1853 = vmatpush1.msra.mxu0 0.0
    %1854 = vmatprep.subr.mxu0 0.0
    %1855 = vmatpush1.msra.mxu0 0.0
    %1856 = vmatprep.subr.mxu0 0.0
    %1857 = vmatpush1.msra.mxu0 0.0
    %1858 = vmatprep.subr.mxu0 0.0
    %1859 = vmatpush1.msra.mxu0 0.0
    %1860 = vmatprep.subr.mxu0 0.0
    %1861 = vmatpush1.msra.mxu0 0.0
    %1862 = vmatprep.subr.mxu0 0.0
    %1863 = vmatpush1.msra.mxu0 0.0
    %1864 = vmatprep.subr.mxu0 0.0
    %1865 = vmatpush1.msra.mxu0 0.0
    %1866 = vmatprep.subr.mxu0 0.0
    %1867 = vmatpush1.msra.mxu0 0.0
    %1868 = vmatprep.mubr.f32.mxu0 0.0
    %1869 = vmatmul.mubr.f32.gmra.mrb[0].mxu0 %v1802
    %v1870 = vpop.f32.mrb[0].mxu0
    %v1871 = vadd.f32 0.0, %v1870
    %v1872 = vpop.f32.mrb[0].mxu0
    %1873 = vdwg.mxu0
    %v1876 = vsel %vm293, %v1798, %v1789
    %v1877 = vsel %vm122, %v1876, 0
    %1879 = vmatprep.subr.mxu0 0.0
    %1880 = vmatpush1.msra.mxu0 %v73
    %1881 = vmatprep.subr.mxu0 0.0
    %1882 = vmatpush1.msra.mxu0 %v74
    %1883 = vmatprep.subr.mxu0 0.0
    %1884 = vmatpush1.msra.mxu0 %v75
    %1885 = vmatprep.subr.mxu0 0.0
    %1886 = vmatpush1.msra.mxu0 %v76
    %1887 = vmatprep.subr.mxu0 0.0
    %1888 = vmatpush1.msra.mxu0 %v77
    %1889 = vmatprep.subr.mxu0 0.0
    %1890 = vmatpush1.msra.mxu0 %v78
    %1891 = vmatprep.subr.mxu0 0.0
    %1892 = vmatpush1.msra.mxu0 %v79
    %1893 = vmatprep.subr.mxu0 0.0
    %1894 = vmatpush1.msra.mxu0 %v80
    %1895 = vmatprep.subr.mxu0 0.0
    %1896 = vmatpush1.msra.mxu0 0.0
    %1897 = vmatprep.subr.mxu0 0.0
    %1898 = vmatpush1.msra.mxu0 0.0
    %1899 = vmatprep.subr.mxu0 0.0
    %1900 = vmatpush1.msra.mxu0 0.0
    %1901 = vmatprep.subr.mxu0 0.0
    %1902 = vmatpush1.msra.mxu0 0.0
    %1903 = vmatprep.subr.mxu0 0.0
    %1904 = vmatpush1.msra.mxu0 0.0
    %1905 = vmatprep.subr.mxu0 0.0
    %1906 = vmatpush1.msra.mxu0 0.0
    %1907 = vmatprep.subr.mxu0 0.0
    %1908 = vmatpush1.msra.mxu0 0.0
    %1909 = vmatprep.subr.mxu0 0.0
    %1910 = vmatpush1.msra.mxu0 0.0
    %1911 = vmatprep.subr.mxu0 0.0
    %1912 = vmatpush1.msra.mxu0 0.0
    %1913 = vmatprep.subr.mxu0 0.0
    %1914 = vmatpush1.msra.mxu0 0.0
    %1915 = vmatprep.subr.mxu0 0.0
    %1916 = vmatpush1.msra.mxu0 0.0
    %1917 = vmatprep.subr.mxu0 0.0
    %1918 = vmatpush1.msra.mxu0 0.0
    %1919 = vmatprep.subr.mxu0 0.0
    %1920 = vmatpush1.msra.mxu0 0.0
    %1921 = vmatprep.subr.mxu0 0.0
    %1922 = vmatpush1.msra.mxu0 0.0
    %1923 = vmatprep.subr.mxu0 0.0
    %1924 = vmatpush1.msra.mxu0 0.0
    %1925 = vmatprep.subr.mxu0 0.0
    %1926 = vmatpush1.msra.mxu0 0.0
    %1927 = vmatprep.subr.mxu0 0.0
    %1928 = vmatpush1.msra.mxu0 0.0
    %1929 = vmatprep.subr.mxu0 0.0
    %1930 = vmatpush1.msra.mxu0 0.0
    %1931 = vmatprep.subr.mxu0 0.0
    %1932 = vmatpush1.msra.mxu0 0.0
    %1933 = vmatprep.subr.mxu0 0.0
    %1934 = vmatpush1.msra.mxu0 0.0
    %1935 = vmatprep.subr.mxu0 0.0
    %1936 = vmatpush1.msra.mxu0 0.0
    %1937 = vmatprep.subr.mxu0 0.0
    %1938 = vmatpush1.msra.mxu0 0.0
    %1939 = vmatprep.subr.mxu0 0.0
    %1940 = vmatpush1.msra.mxu0 0.0
    %1941 = vmatprep.subr.mxu0 0.0
    %1942 = vmatpush1.msra.mxu0 0.0
    %1943 = vmatprep.mubr.f32.mxu0 0.0
    %1944 = vmatmul.mubr.f32.gmra.mrb[0].mxu0 %v1877
    %v1945 = vpop.f32.mrb[0].mxu0
    %v1946 = vadd.f32 0.0, %v1945
    %v1947 = vpop.f32.mrb[0].mxu0
    %1948 = vdwg.mxu0
    %v1949 = vmul.f32 %v1871, 0.03125
    %v1950 = vmul.f32 %v1946, 0.03125
    %v1951 = vmul.f32 %v1949, %v1949
    %v1952 = vsub.f32 %v1950, %v1951
    %v1953 = vmax.f32 %v1952, 0.0
    %v1954 = vadd.f32 %v1953, 1e-06
    %v1955 = vrsqrt.pop %v1954
    %v1957 = vlaneseq
    %v1958 = vshrl.u32 %v1957, 7
    %v1959 = vsub.s32 0, %v1958
    %v1960 = vrot.slane %v1756, %v1959
    %v1962 = vmul.f32 %v1960, %v1955
    %v1963 = vmul.f32 %v1949, %v1962
    %v1965 = vlaneseq
    %v1966 = vshrl.u32 %v1965, 7
    %v1967 = vsub.s32 0, %v1966
    %v1968 = vrot.slane %v1758, %v1967
    %v1970 = vsub.f32 %v1968, %v1963
    %v1973 = vunpack.c.l.s4 1966171168
    %v1974 = vunpack.c.0.s8 %v1973
    %v1975 = vlaneseq
    %v1976 = vshrl.u32 %v1975, 7
    %v1977 = vsub.s32 %v1974, %v1976
    %v1978 = vrot.slane %v1962, %v1977
    %v1979 = vcombine.high %v1978, %v1978
    %v1981 = vunpack.c.l.s4 1966171168
    %v1982 = vunpack.c.0.s8 %v1981
    %v1983 = vlaneseq
    %v1984 = vshrl.u32 %v1983, 7
    %v1985 = vsub.s32 %v1982, %v1984
    %v1986 = vrot.slane %v1978, %v1985
    %v1988 = vunpack.c.l.s4 1966171168
    %v1989 = vunpack.c.0.s8 %v1988
    %v1990 = vlaneseq
    %v1991 = vshrl.u32 %v1990, 7
    %v1992 = vsub.s32 %v1989, %v1991
    %v1993 = vrot.slane %v1979, %v1992
    %v1994 = vlaneseq
    %v1995 = vshrl.u32 %v1994, 7
    %v1996 = vsub.s32 0, %v1995
    %v1997 = vrot.slane %v1986, %v1996
    %v1998 = vlaneseq
    %v1999 = vshrl.u32 %v1998, 7
    %v2000 = vsub.s32 0, %v1999
    %v2001 = vrot.slane %v1993, %v2000
    %v2004 = vmul.f32 %v1751, %v1997
    %v2005 = vmul.f32 %v1752, %v1997
    %v2006 = vmul.f32 %v1753, %v2001
    %v2007 = vmul.f32 %v1754, %v2001
    %v2010 = vunpack.c.l.s4 1966171168
    %v2011 = vunpack.c.0.s8 %v2010
    %v2012 = vlaneseq
    %v2013 = vshrl.u32 %v2012, 7
    %v2014 = vsub.s32 %v2011, %v2013
    %v2015 = vrot.slane %v1970, %v2014
    %v2016 = vcombine.high %v2015, %v2015
    %v2018 = vunpack.c.l.s4 1966171168
    %v2019 = vunpack.c.0.s8 %v2018
    %v2020 = vlaneseq
    %v2021 = vshrl.u32 %v2020, 7
    %v2022 = vsub.s32 %v2019, %v2021
    %v2023 = vrot.slane %v2015, %v2022
    %v2025 = vunpack.c.l.s4 1966171168
    %v2026 = vunpack.c.0.s8 %v2025
    %v2027 = vlaneseq
    %v2028 = vshrl.u32 %v2027, 7
    %v2029 = vsub.s32 %v2026, %v2028
    %v2030 = vrot.slane %v2016, %v2029
    %v2031 = vlaneseq
    %v2032 = vshrl.u32 %v2031, 7
    %v2033 = vsub.s32 0, %v2032
    %v2034 = vrot.slane %v2023, %v2033
    %v2035 = vlaneseq
    %v2036 = vshrl.u32 %v2035, 7
    %v2037 = vsub.s32 0, %v2036
    %v2038 = vrot.slane %v2030, %v2037
    %v2041 = vadd.f32 %v2004, %v2034
    %v2042 = vadd.f32 %v2005, %v2034
    %v2043 = vadd.f32 %v2006, %v2038
    %v2044 = vadd.f32 %v2007, %v2038
    %v2045 = vsub.f32 0.0, %v2041
    %v2046 = vsub.f32 0.0, %v2042
    %v2047 = vsub.f32 0.0, %v2043
    %v2048 = vsub.f32 0.0, %v2044
    %v2049 = vmul.f32 %v2045, 1.442695
    %v2050 = vpow.pop %v2049
    %v2051 = vmul.f32 %v2046, 1.442695
    %v2052 = vpow.pop %v2051
    %v2053 = vmul.f32 %v2047, 1.442695
    %v2054 = vpow.pop %v2053
    %v2055 = vmul.f32 %v2048, 1.442695
    %v2056 = vpow.pop %v2055
    %v2057 = vadd.f32 %v2050, 1.0
    %v2058 = vadd.f32 %v2052, 1.0
    %v2059 = vadd.f32 %v2054, 1.0
    %v2060 = vadd.f32 %v2056, 1.0
    %v2061 = vrcp.pop %v2057
    %v2062 = vmul.f32 1.0, %v2061
    %v2063 = vrcp.pop %v2058
    %v2064 = vmul.f32 1.0, %v2063
    %v2065 = vrcp.pop %v2059
    %v2066 = vmul.f32 1.0, %v2065
    %v2067 = vrcp.pop %v2060
    %v2068 = vmul.f32 1.0, %v2067
    %v2069 = vmul.f32 %v2041, %v2062
    %v2070 = vmul.f32 %v2042, %v2064
    %v2071 = vmul.f32 %v2043, %v2066
    %v2072 = vmul.f32 %v2044, %v2068
    %s2073 = scalar_lea.vmem [#allocation2], 448
    %v2074 = vld [vmem:[%s2073] sm:$0xf]
    %v2075 = vld [vmem:[%s2073 + $0x4] sm:$0xf]
    %v2076 = vld [vmem:[%s2073 + $0x8] sm:$0xf]
    %v2077 = vld [vmem:[%s2073 + $0xc] sm:$0xf]
    %v2078 = vld [vmem:[%s2073 + $0x10] sm:$0xf]
    %v2079 = vld [vmem:[%s2073 + $0x14] sm:$0xf]
    %v2080 = vld [vmem:[%s2073 + $0x18] sm:$0xf]
    %v2081 = vld [vmem:[%s2073 + $0x1c] sm:$0xf]
    %v2082 = vpack.c.bf16 %v2070, %v2069
    %v2083 = vpack.c.bf16 %v2072, %v2071
    %s2084 = scalar_lea.vmem %s4, 18
    %v2085 = vld [vmem:[%s2084] sm:$0x1]
    %v2087 = vlaneseq
    %v2088 = vshrl.u32 %v2087, 7
    %v2089 = vsub.s32 0, %v2088
    %v2090 = vrot.slane %v2085, %v2089
    %v2100 = vunpack.c.l.b16 %v2074
    %v2101 = vunpack.c.l.b16 %v2075
    %v2102 = vunpack.c.l.b16 %v2076
    %v2103 = vunpack.c.l.b16 %v2077
    %v2104 = vunpack.c.l.b16 %v2078
    %v2105 = vunpack.c.l.b16 %v2079
    %v2106 = vunpack.c.l.b16 %v2080
    %v2107 = vunpack.c.l.b16 %v2081
    %v2108 = vpack.c.b16 %v2101, %v2100
    %v2109 = vpack.c.b16 %v2103, %v2102
    %v2110 = vpack.c.b16 %v2105, %v2104
    %v2111 = vpack.c.b16 %v2107, %v2106
    %v2117 = vsel %vm122, %v2082, 0
    %v2120 = vsel %vm122, %v2083, 0
    %2122 = vmatprep.subr.bf16.mxu0 0
    %2123 = vmatpush1.bf16.msra.mxu0 %v2108
    %2124 = vmatprep.subr.bf16.mxu0 0
    %2125 = vmatpush1.bf16.msra.mxu0 %v2109
    %2126 = vmatprep.subr.bf16.mxu0 0
    %2127 = vmatpush1.bf16.msra.mxu0 %v2110
    %2128 = vmatprep.subr.bf16.mxu0 0
    %2129 = vmatpush1.bf16.msra.mxu0 %v2111
    %2130 = vmatprep.subr.bf16.mxu0 0
    %2131 = vmatpush1.bf16.msra.mxu0 0
    %2132 = vmatprep.subr.bf16.mxu0 0
    %2133 = vmatpush1.bf16.msra.mxu0 0
    %2134 = vmatprep.subr.bf16.mxu0 0
    %2135 = vmatpush1.bf16.msra.mxu0 0
    %2136 = vmatprep.subr.bf16.mxu0 0
    %2137 = vmatpush1.bf16.msra.mxu0 0
    %2138 = vmatprep.subr.bf16.mxu0 0
    %2139 = vmatpush1.bf16.msra.mxu0 0
    %2140 = vmatprep.subr.bf16.mxu0 0
    %2141 = vmatpush1.bf16.msra.mxu0 0
    %2142 = vmatprep.subr.bf16.mxu0 0
    %2143 = vmatpush1.bf16.msra.mxu0 0
    %2144 = vmatprep.subr.bf16.mxu0 0
    %2145 = vmatpush1.bf16.msra.mxu0 0
    %2146 = vmatprep.subr.bf16.mxu0 0
    %2147 = vmatpush1.bf16.msra.mxu0 0
    %2148 = vmatprep.subr.bf16.mxu0 0
    %2149 = vmatpush1.bf16.msra.mxu0 0
    %2150 = vmatprep.subr.bf16.mxu0 0
    %2151 = vmatpush1.bf16.msra.mxu0 0
    %2152 = vmatprep.subr.bf16.mxu0 0
    %2153 = vmatpush1.bf16.msra.mxu0 0
    %2154 = vmatprep.mubr.bf16.mxu0 0
    %2155 = vmatmul.mubr.bf16.gmra.mrb[0].mxu0 %v2117
    %v2156 = vpop.f32.mrb[0].mxu0
    %v2157 = vadd.f32 %v2090, %v2156
    %v2158 = vpop.f32.mrb[0].mxu0
    %v2159 = vpop.f32.mrb[0].mxu0
    %v2160 = vadd.f32 %v2090, %v2159
    %v2161 = vpop.f32.mrb[0].mxu0
    %2162 = vmatprep.mubr.bf16.mxu0 0
    %2163 = vmatmul.mubr.bf16.gmra.mrb[0].mxu0 %v2120
    %v2164 = vpop.f32.mrb[0].mxu0
    %v2165 = vadd.f32 %v2090, %v2164
    %v2166 = vpop.f32.mrb[0].mxu0
    %v2167 = vpop.f32.mrb[0].mxu0
    %v2168 = vadd.f32 %v2090, %v2167
    %v2169 = vpop.f32.mrb[0].mxu0
    %2170 = vdwg.mxu0
    %v2171 = vadd.f32 %v1213, %v2157
    %v2172 = vadd.f32 %v1214, %v2160
    %v2173 = vadd.f32 %v1215, %v2165
    %v2174 = vadd.f32 %v1216, %v2168
    %s2175 = scalar_lea.vmem %s4, 19
    %v2176 = vld [vmem:[%s2175] sm:$0x1]
    %s2177 = scalar_lea.vmem %s4, 20
    %v2178 = vld [vmem:[%s2177] sm:$0x1]
    %v2179 = vsel %vm122, %v2171, 0.0
    %v2180 = vsel %vm122, %v2172, 0.0
    %v2181 = vadd.f32 %v2179, %v2180
    %v2182 = vrot.slane %v2181, 4
    %v2183 = vadd.f32 %v2181, %v2182
    %v2184 = vrot.slane %v2183, 2
    %v2185 = vadd.f32 %v2183, %v2184
    %v2186 = vrot.slane %v2185, 1
    %v2187 = vadd.f32 %v2185, %v2186
    %v2188 = vsel %vm122, %v2173, 0.0
    %v2189 = vsel %vm122, %v2174, 0.0
    %v2190 = vadd.f32 %v2188, %v2189
    %v2191 = vrot.slane %v2190, 4
    %v2192 = vadd.f32 %v2190, %v2191
    %v2193 = vrot.slane %v2192, 2
    %v2194 = vadd.f32 %v2192, %v2193
    %v2195 = vrot.slane %v2194, 1
    %v2196 = vadd.f32 %v2194, %v2195
    %v2197 = vmul.f32 %v2171, %v2171
    %v2198 = vmul.f32 %v2172, %v2172
    %v2199 = vmul.f32 %v2173, %v2173
    %v2200 = vmul.f32 %v2174, %v2174
    %v2201 = vsel %vm122, %v2197, 0.0
    %v2202 = vsel %vm122, %v2198, 0.0
    %v2203 = vadd.f32 %v2201, %v2202
    %v2204 = vrot.slane %v2203, 4
    %v2205 = vadd.f32 %v2203, %v2204
    %v2206 = vrot.slane %v2205, 2
    %v2207 = vadd.f32 %v2205, %v2206
    %v2208 = vrot.slane %v2207, 1
    %v2209 = vadd.f32 %v2207, %v2208
    %v2210 = vsel %vm122, %v2199, 0.0
    %v2211 = vsel %vm122, %v2200, 0.0
    %v2212 = vadd.f32 %v2210, %v2211
    %v2213 = vrot.slane %v2212, 4
    %v2214 = vadd.f32 %v2212, %v2213
    %v2215 = vrot.slane %v2214, 2
    %v2216 = vadd.f32 %v2214, %v2215
    %v2217 = vrot.slane %v2216, 1
    %v2218 = vadd.f32 %v2216, %v2217
    %v2221 = vsel %vm293, %v2196, %v2187
    %v2222 = vsel %vm122, %v2221, 0
    %2224 = vmatprep.subr.mxu0 0.0
    %2225 = vmatpush1.msra.mxu0 %v73
    %2226 = vmatprep.subr.mxu0 0.0
    %2227 = vmatpush1.msra.mxu0 %v74
    %2228 = vmatprep.subr.mxu0 0.0
    %2229 = vmatpush1.msra.mxu0 %v75
    %2230 = vmatprep.subr.mxu0 0.0
    %2231 = vmatpush1.msra.mxu0 %v76
    %2232 = vmatprep.subr.mxu0 0.0
    %2233 = vmatpush1.msra.mxu0 %v77
    %2234 = vmatprep.subr.mxu0 0.0
    %2235 = vmatpush1.msra.mxu0 %v78
    %2236 = vmatprep.subr.mxu0 0.0
    %2237 = vmatpush1.msra.mxu0 %v79
    %2238 = vmatprep.subr.mxu0 0.0
    %2239 = vmatpush1.msra.mxu0 %v80
    %2240 = vmatprep.subr.mxu0 0.0
    %2241 = vmatpush1.msra.mxu0 0.0
    %2242 = vmatprep.subr.mxu0 0.0
    %2243 = vmatpush1.msra.mxu0 0.0
    %2244 = vmatprep.subr.mxu0 0.0
    %2245 = vmatpush1.msra.mxu0 0.0
    %2246 = vmatprep.subr.mxu0 0.0
    %2247 = vmatpush1.msra.mxu0 0.0
    %2248 = vmatprep.subr.mxu0 0.0
    %2249 = vmatpush1.msra.mxu0 0.0
    %2250 = vmatprep.subr.mxu0 0.0
    %2251 = vmatpush1.msra.mxu0 0.0
    %2252 = vmatprep.subr.mxu0 0.0
    %2253 = vmatpush1.msra.mxu0 0.0
    %2254 = vmatprep.subr.mxu0 0.0
    %2255 = vmatpush1.msra.mxu0 0.0
    %2256 = vmatprep.subr.mxu0 0.0
    %2257 = vmatpush1.msra.mxu0 0.0
    %2258 = vmatprep.subr.mxu0 0.0
    %2259 = vmatpush1.msra.mxu0 0.0
    %2260 = vmatprep.subr.mxu0 0.0
    %2261 = vmatpush1.msra.mxu0 0.0
    %2262 = vmatprep.subr.mxu0 0.0
    %2263 = vmatpush1.msra.mxu0 0.0
    %2264 = vmatprep.subr.mxu0 0.0
    %2265 = vmatpush1.msra.mxu0 0.0
    %2266 = vmatprep.subr.mxu0 0.0
    %2267 = vmatpush1.msra.mxu0 0.0
    %2268 = vmatprep.subr.mxu0 0.0
    %2269 = vmatpush1.msra.mxu0 0.0
    %2270 = vmatprep.subr.mxu0 0.0
    %2271 = vmatpush1.msra.mxu0 0.0
    %2272 = vmatprep.subr.mxu0 0.0
    %2273 = vmatpush1.msra.mxu0 0.0
    %2274 = vmatprep.subr.mxu0 0.0
    %2275 = vmatpush1.msra.mxu0 0.0
    %2276 = vmatprep.subr.mxu0 0.0
    %2277 = vmatpush1.msra.mxu0 0.0
    %2278 = vmatprep.subr.mxu0 0.0
    %2279 = vmatpush1.msra.mxu0 0.0
    %2280 = vmatprep.subr.mxu0 0.0
    %2281 = vmatpush1.msra.mxu0 0.0
    %2282 = vmatprep.subr.mxu0 0.0
    %2283 = vmatpush1.msra.mxu0 0.0
    %2284 = vmatprep.subr.mxu0 0.0
    %2285 = vmatpush1.msra.mxu0 0.0
    %2286 = vmatprep.subr.mxu0 0.0
    %2287 = vmatpush1.msra.mxu0 0.0
    %2288 = vmatprep.mubr.f32.mxu0 0.0
    %2289 = vmatmul.mubr.f32.gmra.mrb[0].mxu0 %v2222
    %v2290 = vpop.f32.mrb[0].mxu0
    %v2291 = vadd.f32 0.0, %v2290
    %v2292 = vpop.f32.mrb[0].mxu0
    %2293 = vdwg.mxu0
    %v2296 = vsel %vm293, %v2218, %v2209
    %v2297 = vsel %vm122, %v2296, 0
    %2299 = vmatprep.subr.mxu0 0.0
    %2300 = vmatpush1.msra.mxu0 %v73
    %2301 = vmatprep.subr.mxu0 0.0
    %2302 = vmatpush1.msra.mxu0 %v74
    %2303 = vmatprep.subr.mxu0 0.0
    %2304 = vmatpush1.msra.mxu0 %v75
    %2305 = vmatprep.subr.mxu0 0.0
    %2306 = vmatpush1.msra.mxu0 %v76
    %2307 = vmatprep.subr.mxu0 0.0
    %2308 = vmatpush1.msra.mxu0 %v77
    %2309 = vmatprep.subr.mxu0 0.0
    %2310 = vmatpush1.msra.mxu0 %v78
    %2311 = vmatprep.subr.mxu0 0.0
    %2312 = vmatpush1.msra.mxu0 %v79
    %2313 = vmatprep.subr.mxu0 0.0
    %2314 = vmatpush1.msra.mxu0 %v80
    %2315 = vmatprep.subr.mxu0 0.0
    %2316 = vmatpush1.msra.mxu0 0.0
    %2317 = vmatprep.subr.mxu0 0.0
    %2318 = vmatpush1.msra.mxu0 0.0
    %2319 = vmatprep.subr.mxu0 0.0
    %2320 = vmatpush1.msra.mxu0 0.0
    %2321 = vmatprep.subr.mxu0 0.0
    %2322 = vmatpush1.msra.mxu0 0.0
    %2323 = vmatprep.subr.mxu0 0.0
    %2324 = vmatpush1.msra.mxu0 0.0
    %2325 = vmatprep.subr.mxu0 0.0
    %2326 = vmatpush1.msra.mxu0 0.0
    %2327 = vmatprep.subr.mxu0 0.0
    %2328 = vmatpush1.msra.mxu0 0.0
    %2329 = vmatprep.subr.mxu0 0.0
    %2330 = vmatpush1.msra.mxu0 0.0
    %2331 = vmatprep.subr.mxu0 0.0
    %2332 = vmatpush1.msra.mxu0 0.0
    %2333 = vmatprep.subr.mxu0 0.0
    %2334 = vmatpush1.msra.mxu0 0.0
    %2335 = vmatprep.subr.mxu0 0.0
    %2336 = vmatpush1.msra.mxu0 0.0
    %2337 = vmatprep.subr.mxu0 0.0
    %2338 = vmatpush1.msra.mxu0 0.0
    %2339 = vmatprep.subr.mxu0 0.0
    %2340 = vmatpush1.msra.mxu0 0.0
    %2341 = vmatprep.subr.mxu0 0.0
    %2342 = vmatpush1.msra.mxu0 0.0
    %2343 = vmatprep.subr.mxu0 0.0
    %2344 = vmatpush1.msra.mxu0 0.0
    %2345 = vmatprep.subr.mxu0 0.0
    %2346 = vmatpush1.msra.mxu0 0.0
    %2347 = vmatprep.subr.mxu0 0.0
    %2348 = vmatpush1.msra.mxu0 0.0
    %2349 = vmatprep.subr.mxu0 0.0
    %2350 = vmatpush1.msra.mxu0 0.0
    %2351 = vmatprep.subr.mxu0 0.0
    %2352 = vmatpush1.msra.mxu0 0.0
    %2353 = vmatprep.subr.mxu0 0.0
    %2354 = vmatpush1.msra.mxu0 0.0
    %2355 = vmatprep.subr.mxu0 0.0
    %2356 = vmatpush1.msra.mxu0 0.0
    %2357 = vmatprep.subr.mxu0 0.0
    %2358 = vmatpush1.msra.mxu0 0.0
    %2359 = vmatprep.subr.mxu0 0.0
    %2360 = vmatpush1.msra.mxu0 0.0
    %2361 = vmatprep.subr.mxu0 0.0
    %2362 = vmatpush1.msra.mxu0 0.0
    %2363 = vmatprep.mubr.f32.mxu0 0.0
    %2364 = vmatmul.mubr.f32.gmra.mrb[0].mxu0 %v2297
    %v2365 = vpop.f32.mrb[0].mxu0
    %v2366 = vadd.f32 0.0, %v2365
    %v2367 = vpop.f32.mrb[0].mxu0
    %2368 = vdwg.mxu0
    %v2369 = vmul.f32 %v2291, 0.03125
    %v2370 = vmul.f32 %v2366, 0.03125
    %v2371 = vmul.f32 %v2369, %v2369
    %v2372 = vsub.f32 %v2370, %v2371
    %v2373 = vmax.f32 %v2372, 0.0
    %v2374 = vadd.f32 %v2373, 1e-06
    %v2375 = vrsqrt.pop %v2374
    %v2377 = vlaneseq
    %v2378 = vshrl.u32 %v2377, 7
    %v2379 = vsub.s32 0, %v2378
    %v2380 = vrot.slane %v2176, %v2379
    %v2382 = vmul.f32 %v2380, %v2375
    %v2383 = vmul.f32 %v2369, %v2382
    %v2385 = vlaneseq
    %v2386 = vshrl.u32 %v2385, 7
    %v2387 = vsub.s32 0, %v2386
    %v2388 = vrot.slane %v2178, %v2387
    %v2390 = vsub.f32 %v2388, %v2383
    %v2393 = vunpack.c.l.s4 1966171168
    %v2394 = vunpack.c.0.s8 %v2393
    %v2395 = vlaneseq
    %v2396 = vshrl.u32 %v2395, 7
    %v2397 = vsub.s32 %v2394, %v2396
    %v2398 = vrot.slane %v2382, %v2397
    %v2399 = vcombine.high %v2398, %v2398
    %v2401 = vunpack.c.l.s4 1966171168
    %v2402 = vunpack.c.0.s8 %v2401
    %v2403 = vlaneseq
    %v2404 = vshrl.u32 %v2403, 7
    %v2405 = vsub.s32 %v2402, %v2404
    %v2406 = vrot.slane %v2398, %v2405
    %v2408 = vunpack.c.l.s4 1966171168
    %v2409 = vunpack.c.0.s8 %v2408
    %v2410 = vlaneseq
    %v2411 = vshrl.u32 %v2410, 7
    %v2412 = vsub.s32 %v2409, %v2411
    %v2413 = vrot.slane %v2399, %v2412
    %v2414 = vlaneseq
    %v2415 = vshrl.u32 %v2414, 7
    %v2416 = vsub.s32 0, %v2415
    %v2417 = vrot.slane %v2406, %v2416
    %v2418 = vlaneseq
    %v2419 = vshrl.u32 %v2418, 7
    %v2420 = vsub.s32 0, %v2419
    %v2421 = vrot.slane %v2413, %v2420
    %v2424 = vmul.f32 %v2171, %v2417
    %v2425 = vmul.f32 %v2172, %v2417
    %v2426 = vmul.f32 %v2173, %v2421
    %v2427 = vmul.f32 %v2174, %v2421
    %v2430 = vunpack.c.l.s4 1966171168
    %v2431 = vunpack.c.0.s8 %v2430
    %v2432 = vlaneseq
    %v2433 = vshrl.u32 %v2432, 7
    %v2434 = vsub.s32 %v2431, %v2433
    %v2435 = vrot.slane %v2390, %v2434
    %v2436 = vcombine.high %v2435, %v2435
    %v2438 = vunpack.c.l.s4 1966171168
    %v2439 = vunpack.c.0.s8 %v2438
    %v2440 = vlaneseq
    %v2441 = vshrl.u32 %v2440, 7
    %v2442 = vsub.s32 %v2439, %v2441
    %v2443 = vrot.slane %v2435, %v2442
    %v2445 = vunpack.c.l.s4 1966171168
    %v2446 = vunpack.c.0.s8 %v2445
    %v2447 = vlaneseq
    %v2448 = vshrl.u32 %v2447, 7
    %v2449 = vsub.s32 %v2446, %v2448
    %v2450 = vrot.slane %v2436, %v2449
    %v2451 = vlaneseq
    %v2452 = vshrl.u32 %v2451, 7
    %v2453 = vsub.s32 0, %v2452
    %v2454 = vrot.slane %v2443, %v2453
    %v2455 = vlaneseq
    %v2456 = vshrl.u32 %v2455, 7
    %v2457 = vsub.s32 0, %v2456
    %v2458 = vrot.slane %v2450, %v2457
    %v2461 = vadd.f32 %v2424, %v2454
    %v2462 = vadd.f32 %v2425, %v2454
    %v2463 = vadd.f32 %v2426, %v2458
    %v2464 = vadd.f32 %v2427, %v2458
    %s2465 = scalar_lea.vmem [#allocation2], 480
    %v2466 = vld [vmem:[%s2465] sm:$0xf]
    %v2467 = vld [vmem:[%s2465 + $0x4] sm:$0xf]
    %v2468 = vld [vmem:[%s2465 + $0x8] sm:$0xf]
    %v2469 = vld [vmem:[%s2465 + $0xc] sm:$0xf]
    %v2470 = vld [vmem:[%s2465 + $0x10] sm:$0xf]
    %v2471 = vld [vmem:[%s2465 + $0x14] sm:$0xf]
    %v2472 = vld [vmem:[%s2465 + $0x18] sm:$0xf]
    %v2473 = vld [vmem:[%s2465 + $0x1c] sm:$0xf]
    %v2474 = vpack.c.bf16 %v2462, %v2461
    %v2475 = vpack.c.bf16 %v2464, %v2463
    %s2476 = scalar_lea.vmem %s4, 21
    %v2477 = vld [vmem:[%s2476] sm:$0x1]
    %v2479 = vlaneseq
    %v2480 = vshrl.u32 %v2479, 7
    %v2481 = vsub.s32 0, %v2480
    %v2482 = vrot.slane %v2477, %v2481
    %v2492 = vunpack.c.l.b16 %v2466
    %v2493 = vunpack.c.l.b16 %v2467
    %v2494 = vunpack.c.l.b16 %v2468
    %v2495 = vunpack.c.l.b16 %v2469
    %v2496 = vunpack.c.l.b16 %v2470
    %v2497 = vunpack.c.l.b16 %v2471
    %v2498 = vunpack.c.l.b16 %v2472
    %v2499 = vunpack.c.l.b16 %v2473
    %v2500 = vpack.c.b16 %v2493, %v2492
    %v2501 = vpack.c.b16 %v2495, %v2494
    %v2502 = vpack.c.b16 %v2497, %v2496
    %v2503 = vpack.c.b16 %v2499, %v2498
    %v2509 = vsel %vm122, %v2474, 0
    %v2512 = vsel %vm122, %v2475, 0
    %2514 = vmatprep.subr.bf16.mxu0 0
    %2515 = vmatpush1.bf16.msra.mxu0 %v2500
    %2516 = vmatprep.subr.bf16.mxu0 0
    %2517 = vmatpush1.bf16.msra.mxu0 %v2501
    %2518 = vmatprep.subr.bf16.mxu0 0
    %2519 = vmatpush1.bf16.msra.mxu0 %v2502
    %2520 = vmatprep.subr.bf16.mxu0 0
    %2521 = vmatpush1.bf16.msra.mxu0 %v2503
    %2522 = vmatprep.subr.bf16.mxu0 0
    %2523 = vmatpush1.bf16.msra.mxu0 0
    %2524 = vmatprep.subr.bf16.mxu0 0
    %2525 = vmatpush1.bf16.msra.mxu0 0
    %2526 = vmatprep.subr.bf16.mxu0 0
    %2527 = vmatpush1.bf16.msra.mxu0 0
    %2528 = vmatprep.subr.bf16.mxu0 0
    %2529 = vmatpush1.bf16.msra.mxu0 0
    %2530 = vmatprep.subr.bf16.mxu0 0
    %2531 = vmatpush1.bf16.msra.mxu0 0
    %2532 = vmatprep.subr.bf16.mxu0 0
    %2533 = vmatpush1.bf16.msra.mxu0 0
    %2534 = vmatprep.subr.bf16.mxu0 0
    %2535 = vmatpush1.bf16.msra.mxu0 0
    %2536 = vmatprep.subr.bf16.mxu0 0
    %2537 = vmatpush1.bf16.msra.mxu0 0
    %2538 = vmatprep.subr.bf16.mxu0 0
    %2539 = vmatpush1.bf16.msra.mxu0 0
    %2540 = vmatprep.subr.bf16.mxu0 0
    %2541 = vmatpush1.bf16.msra.mxu0 0
    %2542 = vmatprep.subr.bf16.mxu0 0
    %2543 = vmatpush1.bf16.msra.mxu0 0
    %2544 = vmatprep.subr.bf16.mxu0 0
    %2545 = vmatpush1.bf16.msra.mxu0 0
    %2546 = vmatprep.mubr.bf16.mxu0 0
    %2547 = vmatmul.mubr.bf16.gmra.mrb[0].mxu0 %v2509
    %v2548 = vpop.f32.mrb[0].mxu0
    %v2549 = vadd.f32 %v2482, %v2548
    %v2550 = vpop.f32.mrb[0].mxu0
    %v2551 = vpop.f32.mrb[0].mxu0
    %v2552 = vadd.f32 %v2482, %v2551
    %v2553 = vpop.f32.mrb[0].mxu0
    %2554 = vmatprep.mubr.bf16.mxu0 0
    %2555 = vmatmul.mubr.bf16.gmra.mrb[0].mxu0 %v2512
    %v2556 = vpop.f32.mrb[0].mxu0
    %v2557 = vadd.f32 %v2482, %v2556
    %v2558 = vpop.f32.mrb[0].mxu0
    %v2559 = vpop.f32.mrb[0].mxu0
    %v2560 = vadd.f32 %v2482, %v2559
    %v2561 = vpop.f32.mrb[0].mxu0
    %2562 = vdwg.mxu0
    %s2563 = scalar_lea.vmem [#allocation2], 512
    %v2564 = vld [vmem:[%s2563] sm:$0xf]
    %v2565 = vld [vmem:[%s2563 + $0x4] sm:$0xf]
    %v2566 = vld [vmem:[%s2563 + $0x8] sm:$0xf]
    %v2567 = vld [vmem:[%s2563 + $0xc] sm:$0xf]
    %v2568 = vld [vmem:[%s2563 + $0x10] sm:$0xf]
    %v2569 = vld [vmem:[%s2563 + $0x14] sm:$0xf]
    %v2570 = vld [vmem:[%s2563 + $0x18] sm:$0xf]
    %v2571 = vld [vmem:[%s2563 + $0x1c] sm:$0xf]
    %s2572 = scalar_lea.vmem %s4, 22
    %v2573 = vld [vmem:[%s2572] sm:$0x1]
    %v2575 = vlaneseq
    %v2576 = vshrl.u32 %v2575, 7
    %v2577 = vsub.s32 0, %v2576
    %v2578 = vrot.slane %v2573, %v2577
    %v2588 = vunpack.c.l.b16 %v2564
    %v2589 = vunpack.c.l.b16 %v2565
    %v2590 = vunpack.c.l.b16 %v2566
    %v2591 = vunpack.c.l.b16 %v2567
    %v2592 = vunpack.c.l.b16 %v2568
    %v2593 = vunpack.c.l.b16 %v2569
    %v2594 = vunpack.c.l.b16 %v2570
    %v2595 = vunpack.c.l.b16 %v2571
    %v2596 = vpack.c.b16 %v2589, %v2588
    %v2597 = vpack.c.b16 %v2591, %v2590
    %v2598 = vpack.c.b16 %v2593, %v2592
    %v2599 = vpack.c.b16 %v2595, %v2594
    %2604 = vmatprep.subr.bf16.mxu0 0
    %2605 = vmatpush1.bf16.msra.mxu0 %v2596
    %2606 = vmatprep.subr.bf16.mxu0 0
    %2607 = vmatpush1.bf16.msra.mxu0 %v2597
    %2608 = vmatprep.subr.bf16.mxu0 0
    %2609 = vmatpush1.bf16.msra.mxu0 %v2598
    %2610 = vmatprep.subr.bf16.mxu0 0
    %2611 = vmatpush1.bf16.msra.mxu0 %v2599
    %2612 = vmatprep.subr.bf16.mxu0 0
    %2613 = vmatpush1.bf16.msra.mxu0 0
    %2614 = vmatprep.subr.bf16.mxu0 0
    %2615 = vmatpush1.bf16.msra.mxu0 0
    %2616 = vmatprep.subr.bf16.mxu0 0
    %2617 = vmatpush1.bf16.msra.mxu0 0
    %2618 = vmatprep.subr.bf16.mxu0 0
    %2619 = vmatpush1.bf16.msra.mxu0 0
    %2620 = vmatprep.subr.bf16.mxu0 0
    %2621 = vmatpush1.bf16.msra.mxu0 0
    %2622 = vmatprep.subr.bf16.mxu0 0
    %2623 = vmatpush1.bf16.msra.mxu0 0
    %2624 = vmatprep.subr.bf16.mxu0 0
    %2625 = vmatpush1.bf16.msra.mxu0 0
    %2626 = vmatprep.subr.bf16.mxu0 0
    %2627 = vmatpush1.bf16.msra.mxu0 0
    %2628 = vmatprep.subr.bf16.mxu0 0
    %2629 = vmatpush1.bf16.msra.mxu0 0
    %2630 = vmatprep.subr.bf16.mxu0 0
    %2631 = vmatpush1.bf16.msra.mxu0 0
    %2632 = vmatprep.subr.bf16.mxu0 0
    %2633 = vmatpush1.bf16.msra.mxu0 0
    %2634 = vmatprep.subr.bf16.mxu0 0
    %2635 = vmatpush1.bf16.msra.mxu0 0
    %2636 = vmatprep.mubr.bf16.mxu0 0
    %2637 = vmatmul.mubr.bf16.gmra.mrb[0].mxu0 %v2509
    %v2638 = vpop.f32.mrb[0].mxu0
    %v2639 = vadd.f32 %v2578, %v2638
    %v2640 = vpop.f32.mrb[0].mxu0
    %v2641 = vpop.f32.mrb[0].mxu0
    %v2642 = vadd.f32 %v2578, %v2641
    %v2643 = vpop.f32.mrb[0].mxu0
    %2644 = vmatprep.mubr.bf16.mxu0 0
    %2645 = vmatmul.mubr.bf16.gmra.mrb[0].mxu0 %v2512
    %v2646 = vpop.f32.mrb[0].mxu0
    %v2647 = vadd.f32 %v2578, %v2646
    %v2648 = vpop.f32.mrb[0].mxu0
    %v2649 = vpop.f32.mrb[0].mxu0
    %v2650 = vadd.f32 %v2578, %v2649
    %v2651 = vpop.f32.mrb[0].mxu0
    %2652 = vdwg.mxu0
    %s2653 = scalar_lea.vmem [#allocation2], 544
    %v2654 = vld [vmem:[%s2653] sm:$0xf]
    %v2655 = vld [vmem:[%s2653 + $0x4] sm:$0xf]
    %v2656 = vld [vmem:[%s2653 + $0x8] sm:$0xf]
    %v2657 = vld [vmem:[%s2653 + $0xc] sm:$0xf]
    %v2658 = vld [vmem:[%s2653 + $0x10] sm:$0xf]
    %v2659 = vld [vmem:[%s2653 + $0x14] sm:$0xf]
    %v2660 = vld [vmem:[%s2653 + $0x18] sm:$0xf]
    %v2661 = vld [vmem:[%s2653 + $0x1c] sm:$0xf]
    %s2662 = scalar_lea.vmem %s4, 23
    %v2663 = vld [vmem:[%s2662] sm:$0x1]
    %v2665 = vlaneseq
    %v2666 = vshrl.u32 %v2665, 7
    %v2667 = vsub.s32 0, %v2666
    %v2668 = vrot.slane %v2663, %v2667
    %v2678 = vunpack.c.l.b16 %v2654
    %v2679 = vunpack.c.l.b16 %v2655
    %v2680 = vunpack.c.l.b16 %v2656
    %v2681 = vunpack.c.l.b16 %v2657
    %v2682 = vunpack.c.l.b16 %v2658
    %v2683 = vunpack.c.l.b16 %v2659
    %v2684 = vunpack.c.l.b16 %v2660
    %v2685 = vunpack.c.l.b16 %v2661
    %v2686 = vpack.c.b16 %v2679, %v2678
    %v2687 = vpack.c.b16 %v2681, %v2680
    %v2688 = vpack.c.b16 %v2683, %v2682
    %v2689 = vpack.c.b16 %v2685, %v2684
    %2694 = vmatprep.subr.bf16.mxu0 0
    %2695 = vmatpush1.bf16.msra.mxu0 %v2686
    %2696 = vmatprep.subr.bf16.mxu0 0
    %2697 = vmatpush1.bf16.msra.mxu0 %v2687
    %2698 = vmatprep.subr.bf16.mxu0 0
    %2699 = vmatpush1.bf16.msra.mxu0 %v2688
    %2700 = vmatprep.subr.bf16.mxu0 0
    %2701 = vmatpush1.bf16.msra.mxu0 %v2689
    %2702 = vmatprep.subr.bf16.mxu0 0
    %2703 = vmatpush1.bf16.msra.mxu0 0
    %2704 = vmatprep.subr.bf16.mxu0 0
    %2705 = vmatpush1.bf16.msra.mxu0 0
    %2706 = vmatprep.subr.bf16.mxu0 0
    %2707 = vmatpush1.bf16.msra.mxu0 0
    %2708 = vmatprep.subr.bf16.mxu0 0
    %2709 = vmatpush1.bf16.msra.mxu0 0
    %2710 = vmatprep.subr.bf16.mxu0 0
    %2711 = vmatpush1.bf16.msra.mxu0 0
    %2712 = vmatprep.subr.bf16.mxu0 0
    %2713 = vmatpush1.bf16.msra.mxu0 0
    %2714 = vmatprep.subr.bf16.mxu0 0
    %2715 = vmatpush1.bf16.msra.mxu0 0
    %2716 = vmatprep.subr.bf16.mxu0 0
    %2717 = vmatpush1.bf16.msra.mxu0 0
    %2718 = vmatprep.subr.bf16.mxu0 0
    %2719 = vmatpush1.bf16.msra.mxu0 0
    %2720 = vmatprep.subr.bf16.mxu0 0
    %2721 = vmatpush1.bf16.msra.mxu0 0
    %2722 = vmatprep.subr.bf16.mxu0 0
    %2723 = vmatpush1.bf16.msra.mxu0 0
    %2724 = vmatprep.subr.bf16.mxu0 0
    %2725 = vmatpush1.bf16.msra.mxu0 0
    %2726 = vmatprep.mubr.bf16.mxu0 0
    %2727 = vmatmul.mubr.bf16.gmra.mrb[0].mxu0 %v2509
    %v2728 = vpop.f32.mrb[0].mxu0
    %v2729 = vadd.f32 %v2668, %v2728
    %v2730 = vpop.f32.mrb[0].mxu0
    %v2731 = vpop.f32.mrb[0].mxu0
    %v2732 = vadd.f32 %v2668, %v2731
    %v2733 = vpop.f32.mrb[0].mxu0
    %2734 = vmatprep.mubr.bf16.mxu0 0
    %2735 = vmatmul.mubr.bf16.gmra.mrb[0].mxu0 %v2512
    %v2736 = vpop.f32.mrb[0].mxu0
    %v2737 = vadd.f32 %v2668, %v2736
    %v2738 = vpop.f32.mrb[0].mxu0
    %v2739 = vpop.f32.mrb[0].mxu0
    %v2740 = vadd.f32 %v2668, %v2739
    %v2741 = vpop.f32.mrb[0].mxu0
    %2742 = vdwg.mxu0
    %v2743 = vmul.f32 %v2639, %v53
    %v2744 = vmul.f32 %v2642, %v54
    %v2745 = vmul.f32 %v2647, %v55
    %v2746 = vmul.f32 %v2650, %v56
    %v2747 = vmul.f32 %v2639, %v57
    %v2748 = vmul.f32 %v2642, %v58
    %v2749 = vmul.f32 %v2647, %v59
    %v2750 = vmul.f32 %v2650, %v60
    %v2751 = vmul.f32 %v2639, %v61
    %v2752 = vmul.f32 %v2642, %v62
    %v2753 = vmul.f32 %v2647, %v63
    %v2754 = vmul.f32 %v2650, %v64
    %v2755 = vmul.f32 %v2639, %v65
    %v2756 = vmul.f32 %v2642, %v66
    %v2757 = vmul.f32 %v2647, %v67
    %v2758 = vmul.f32 %v2650, %v68
    %v2759 = vmul.f32 %v2729, %v53
    %v2760 = vmul.f32 %v2732, %v54
    %v2761 = vmul.f32 %v2737, %v55
    %v2762 = vmul.f32 %v2740, %v56
    %v2763 = vmul.f32 %v2729, %v57
    %v2764 = vmul.f32 %v2732, %v58
    %v2765 = vmul.f32 %v2737, %v59
    %v2766 = vmul.f32 %v2740, %v60
    %v2767 = vmul.f32 %v2729, %v61
    %v2768 = vmul.f32 %v2732, %v62
    %v2769 = vmul.f32 %v2737, %v63
    %v2770 = vmul.f32 %v2740, %v64
    %v2771 = vmul.f32 %v2729, %v65
    %v2772 = vmul.f32 %v2732, %v66
    %v2773 = vmul.f32 %v2737, %v67
    %v2774 = vmul.f32 %v2740, %v68
    %v2775 = vpack.c.bf16 %v2552, %v2549
    %v2776 = vpack.c.bf16 %v2560, %v2557
    %v2777 = vpack.c.bf16 %v2744, %v2743
    %v2778 = vpack.c.bf16 %v2746, %v2745
    %v2779 = vpack.c.bf16 %v2748, %v2747
    %v2780 = vpack.c.bf16 %v2750, %v2749
    %v2781 = vpack.c.bf16 %v2752, %v2751
    %v2782 = vpack.c.bf16 %v2754, %v2753
    %v2783 = vpack.c.bf16 %v2756, %v2755
    %v2784 = vpack.c.bf16 %v2758, %v2757
    %v2786 = vsel %vm122, %v2775, 0
    %v2789 = vsel %vm122, %v2776, 0
    %v2792 = vsel %vm122, %v2777, 0
    %v2795 = vsel %vm122, %v2778, 0
    %v2798 = vsel %vm122, %v2779, 0
    %v2801 = vsel %vm122, %v2780, 0
    %v2804 = vsel %vm122, %v2781, 0
    %v2807 = vsel %vm122, %v2782, 0
    %v2810 = vsel %vm122, %v2783, 0
    %v2813 = vsel %vm122, %v2784, 0
    %2815 = vmatprep.subr.bf16.mxu0 0
    %2816 = vmatpush1.bf16.xpose.msra.mxu0 %v2792
    %2817 = vmatprep.subr.bf16.mxu0 0
    %2818 = vmatpush1.bf16.xpose.msra.mxu0 %v2795
    %2819 = vmatprep.subr.bf16.mxu0 0
    %2820 = vmatpush1.bf16.xpose.msra.mxu0 %v2798
    %2821 = vmatprep.subr.bf16.mxu0 0
    %2822 = vmatpush1.bf16.xpose.msra.mxu0 %v2801
    %2823 = vmatprep.subr.bf16.mxu0 0
    %2824 = vmatpush1.bf16.xpose.msra.mxu0 %v2804
    %2825 = vmatprep.subr.bf16.mxu0 0
    %2826 = vmatpush1.bf16.xpose.msra.mxu0 %v2807
    %2827 = vmatprep.subr.bf16.mxu0 0
    %2828 = vmatpush1.bf16.xpose.msra.mxu0 %v2810
    %2829 = vmatprep.subr.bf16.mxu0 0
    %2830 = vmatpush1.bf16.xpose.msra.mxu0 %v2813
    %2831 = vmatprep.subr.bf16.mxu0 0
    %2832 = vmatpush1.bf16.xpose.msra.mxu0 0
    %2833 = vmatprep.subr.bf16.mxu0 0
    %2834 = vmatpush1.bf16.xpose.msra.mxu0 0
    %2835 = vmatprep.subr.bf16.mxu0 0
    %2836 = vmatpush1.bf16.xpose.msra.mxu0 0
    %2837 = vmatprep.subr.bf16.mxu0 0
    %2838 = vmatpush1.bf16.xpose.msra.mxu0 0
    %2839 = vmatprep.subr.bf16.mxu0 0
    %2840 = vmatpush1.bf16.xpose.msra.mxu0 0
    %2841 = vmatprep.subr.bf16.mxu0 0
    %2842 = vmatpush1.bf16.xpose.msra.mxu0 0
    %2843 = vmatprep.subr.bf16.mxu0 0
    %2844 = vmatpush1.bf16.xpose.msra.mxu0 0
    %2845 = vmatprep.subr.bf16.mxu0 0
    %2846 = vmatpush1.bf16.xpose.msra.mxu0 0
    %2847 = vmatprep.mubr.bf16.mxu0 0
    %2848 = vmatmul.mubr.bf16.gmra.mrb[0].mxu0 %v2786
    %v2849 = vpop.f32.mrb[0].mxu0
    %v2850 = vadd.f32 0.0, %v2849
    %v2851 = vpop.f32.mrb[0].mxu0
    %v2852 = vpop.f32.mrb[0].mxu0
    %v2853 = vadd.f32 0.0, %v2852
    %v2854 = vpop.f32.mrb[0].mxu0
    %2855 = vmatprep.mubr.bf16.mxu0 0
    %2856 = vmatmul.mubr.bf16.gmra.mrb[0].mxu0 %v2789
    %v2857 = vpop.f32.mrb[0].mxu0
    %v2858 = vadd.f32 0.0, %v2857
    %v2859 = vpop.f32.mrb[0].mxu0
    %v2860 = vpop.f32.mrb[0].mxu0
    %v2861 = vadd.f32 0.0, %v2860
    %v2862 = vpop.f32.mrb[0].mxu0
    %2863 = vdwg.mxu0
    %v2864 = vmul.f32 %v2850, 0.25
    %v2865 = vmul.f32 %v2853, 0.25
    %v2866 = vmul.f32 %v2858, 0.25
    %v2867 = vmul.f32 %v2861, 0.25
    %v2868 = vadd.f32 %v2864, %v69
    %v2869 = vadd.f32 %v2865, %v70
    %v2870 = vadd.f32 %v2866, %v71
    %v2871 = vadd.f32 %v2867, %v72
    %2872 = vmax.xlane.f32.xlu0 %v2868
    %v2873 = vpop.xlane.xlu0 %2872
    %2874 = vmax.xlane.f32.xlu0 %v2869
    %v2875 = vpop.xlane.xlu0 %2874
    %2876 = vmax.xlane.f32.xlu0 %v2870
    %v2877 = vpop.xlane.xlu0 %2876
    %2878 = vmax.xlane.f32.xlu0 %v2871
    %v2879 = vpop.xlane.xlu0 %2878
    %v2880 = vsub.f32 %v2868, %v2873
    %v2881 = vsub.f32 %v2869, %v2875
    %v2882 = vsub.f32 %v2870, %v2877
    %v2883 = vsub.f32 %v2871, %v2879
    %v2884 = vmul.f32 %v2880, 1.442695
    %v2885 = vpow.pop %v2884
    %v2886 = vmul.f32 %v2881, 1.442695
    %v2887 = vpow.pop %v2886
    %v2888 = vmul.f32 %v2882, 1.442695
    %v2889 = vpow.pop %v2888
    %v2890 = vmul.f32 %v2883, 1.442695
    %v2891 = vpow.pop %v2890
    %v2892 = vpack.c.bf16 %v2887, %v2885
    %v2893 = vpack.c.bf16 %v2891, %v2889
    %v2894 = vpack.c.bf16 %v2760, %v2759
    %v2895 = vpack.c.bf16 %v2762, %v2761
    %v2896 = vpack.c.bf16 %v2764, %v2763
    %v2897 = vpack.c.bf16 %v2766, %v2765
    %v2898 = vpack.c.bf16 %v2768, %v2767
    %v2899 = vpack.c.bf16 %v2770, %v2769
    %v2900 = vpack.c.bf16 %v2772, %v2771
    %v2901 = vpack.c.bf16 %v2774, %v2773
    %2902 = vmatprep.subr.bf16.mxu0 0
    %2903 = vmatpush1.bf16.msra.mxu0 %v2894
    %2904 = vmatprep.subr.bf16.mxu0 0
    %2905 = vmatpush1.bf16.msra.mxu0 %v2895
    %2906 = vmatprep.subr.bf16.mxu0 0
    %2907 = vmatpush1.bf16.msra.mxu0 %v2896
    %2908 = vmatprep.subr.bf16.mxu0 0
    %2909 = vmatpush1.bf16.msra.mxu0 %v2897
    %2910 = vmatprep.subr.bf16.mxu0 0
    %2911 = vmatpush1.bf16.msra.mxu0 %v2898
    %2912 = vmatprep.subr.bf16.mxu0 0
    %2913 = vmatpush1.bf16.msra.mxu0 %v2899
    %2914 = vmatprep.subr.bf16.mxu0 0
    %2915 = vmatpush1.bf16.msra.mxu0 %v2900
    %2916 = vmatprep.subr.bf16.mxu0 0
    %2917 = vmatpush1.bf16.msra.mxu0 %v2901
    %2918 = vmatprep.subr.bf16.mxu0 0
    %2919 = vmatpush1.bf16.msra.mxu0 0
    %2920 = vmatprep.subr.bf16.mxu0 0
    %2921 = vmatpush1.bf16.msra.mxu0 0
    %2922 = vmatprep.subr.bf16.mxu0 0
    %2923 = vmatpush1.bf16.msra.mxu0 0
    %2924 = vmatprep.subr.bf16.mxu0 0
    %2925 = vmatpush1.bf16.msra.mxu0 0
    %2926 = vmatprep.subr.bf16.mxu0 0
    %2927 = vmatpush1.bf16.msra.mxu0 0
    %2928 = vmatprep.subr.bf16.mxu0 0
    %2929 = vmatpush1.bf16.msra.mxu0 0
    %2930 = vmatprep.subr.bf16.mxu0 0
    %2931 = vmatpush1.bf16.msra.mxu0 0
    %2932 = vmatprep.subr.bf16.mxu0 0
    %2933 = vmatpush1.bf16.msra.mxu0 0
    %2934 = vmatprep.mubr.bf16.mxu0 0
    %2935 = vmatmul.mubr.bf16.gmra.mrb[0].mxu0 %v2892
    %v2936 = vpop.f32.mrb[0].mxu0
    %v2937 = vadd.f32 0.0, %v2936
    %v2938 = vpop.f32.mrb[0].mxu0
    %v2939 = vpop.f32.mrb[0].mxu0
    %v2940 = vadd.f32 0.0, %v2939
    %v2941 = vpop.f32.mrb[0].mxu0
    %2942 = vmatprep.mubr.bf16.mxu0 0
    %2943 = vmatmul.mubr.bf16.gmra.mrb[0].mxu0 %v2893
    %v2944 = vpop.f32.mrb[0].mxu0
    %v2945 = vadd.f32 0.0, %v2944
    %v2946 = vpop.f32.mrb[0].mxu0
    %v2947 = vpop.f32.mrb[0].mxu0
    %v2948 = vadd.f32 0.0, %v2947
    %v2949 = vpop.f32.mrb[0].mxu0
    %2950 = vdwg.mxu0
    %v2951 = vpack.c.bf16 %v54, %v53
    %v2952 = vpack.c.bf16 %v56, %v55
    %v2953 = vpack.c.bf16 %v58, %v57
    %v2954 = vpack.c.bf16 %v60, %v59
    %v2955 = vpack.c.bf16 %v62, %v61
    %v2956 = vpack.c.bf16 %v64, %v63
    %v2957 = vpack.c.bf16 %v66, %v65
    %v2958 = vpack.c.bf16 %v68, %v67
    %2959 = vmatprep.subr.bf16.mxu0 0
    %2960 = vmatpush1.bf16.msra.mxu0 %v2951
    %2961 = vmatprep.subr.bf16.mxu0 0
    %2962 = vmatpush1.bf16.msra.mxu0 %v2952
    %2963 = vmatprep.subr.bf16.mxu0 0
    %2964 = vmatpush1.bf16.msra.mxu0 %v2953
    %2965 = vmatprep.subr.bf16.mxu0 0
    %2966 = vmatpush1.bf16.msra.mxu0 %v2954
    %2967 = vmatprep.subr.bf16.mxu0 0
    %2968 = vmatpush1.bf16.msra.mxu0 %v2955
    %2969 = vmatprep.subr.bf16.mxu0 0
    %2970 = vmatpush1.bf16.msra.mxu0 %v2956
    %2971 = vmatprep.subr.bf16.mxu0 0
    %2972 = vmatpush1.bf16.msra.mxu0 %v2957
    %2973 = vmatprep.subr.bf16.mxu0 0
    %2974 = vmatpush1.bf16.msra.mxu0 %v2958
    %2975 = vmatprep.subr.bf16.mxu0 0
    %2976 = vmatpush1.bf16.msra.mxu0 0
    %2977 = vmatprep.subr.bf16.mxu0 0
    %2978 = vmatpush1.bf16.msra.mxu0 0
    %2979 = vmatprep.subr.bf16.mxu0 0
    %2980 = vmatpush1.bf16.msra.mxu0 0
    %2981 = vmatprep.subr.bf16.mxu0 0
    %2982 = vmatpush1.bf16.msra.mxu0 0
    %2983 = vmatprep.subr.bf16.mxu0 0
    %2984 = vmatpush1.bf16.msra.mxu0 0
    %2985 = vmatprep.subr.bf16.mxu0 0
    %2986 = vmatpush1.bf16.msra.mxu0 0
    %2987 = vmatprep.subr.bf16.mxu0 0
    %2988 = vmatpush1.bf16.msra.mxu0 0
    %2989 = vmatprep.subr.bf16.mxu0 0
    %2990 = vmatpush1.bf16.msra.mxu0 0
    %2991 = vmatprep.mubr.bf16.mxu0 0
    %2992 = vmatmul.mubr.bf16.gmra.mrb[0].mxu0 %v2892
    %v2993 = vpop.f32.mrb[0].mxu0
    %v2994 = vadd.f32 1e-20, %v2993
    %v2995 = vpop.f32.mrb[0].mxu0
    %v2996 = vpop.f32.mrb[0].mxu0
    %v2997 = vadd.f32 1e-20, %v2996
    %v2998 = vpop.f32.mrb[0].mxu0
    %2999 = vmatprep.mubr.bf16.mxu0 0
    %3000 = vmatmul.mubr.bf16.gmra.mrb[0].mxu0 %v2893
    %v3001 = vpop.f32.mrb[0].mxu0
    %v3002 = vadd.f32 1e-20, %v3001
    %v3003 = vpop.f32.mrb[0].mxu0
    %v3004 = vpop.f32.mrb[0].mxu0
    %v3005 = vadd.f32 1e-20, %v3004
    %v3006 = vpop.f32.mrb[0].mxu0
    %3007 = vdwg.mxu0
    %v3008 = vrcp.pop %v2994
    %v3009 = vrcp.pop %v2997
    %v3010 = vrcp.pop %v3002
    %v3011 = vrcp.pop %v3005
    %v3012 = vmul.f32 %v2937, %v3008
    %v3013 = vmul.f32 %v2940, %v3009
    %v3014 = vmul.f32 %v2945, %v3010
    %v3015 = vmul.f32 %v2948, %v3011
    %s3016 = scalar_lea.vmem [#allocation2], 576
    %v3017 = vld [vmem:[%s3016] sm:$0xf]
    %v3018 = vld [vmem:[%s3016 + $0x4] sm:$0xf]
    %v3019 = vld [vmem:[%s3016 + $0x8] sm:$0xf]
    %v3020 = vld [vmem:[%s3016 + $0xc] sm:$0xf]
    %v3021 = vld [vmem:[%s3016 + $0x10] sm:$0xf]
    %v3022 = vld [vmem:[%s3016 + $0x14] sm:$0xf]
    %v3023 = vld [vmem:[%s3016 + $0x18] sm:$0xf]
    %v3024 = vld [vmem:[%s3016 + $0x1c] sm:$0xf]
    %v3025 = vpack.c.bf16 %v3013, %v3012
    %v3026 = vpack.c.bf16 %v3015, %v3014
    %v3035 = vunpack.c.l.b16 %v3017
    %v3036 = vunpack.c.l.b16 %v3018
    %v3037 = vunpack.c.l.b16 %v3019
    %v3038 = vunpack.c.l.b16 %v3020
    %v3039 = vunpack.c.l.b16 %v3021
    %v3040 = vunpack.c.l.b16 %v3022
    %v3041 = vunpack.c.l.b16 %v3023
    %v3042 = vunpack.c.l.b16 %v3024
    %v3043 = vpack.c.b16 %v3036, %v3035
    %v3044 = vpack.c.b16 %v3038, %v3037
    %v3045 = vpack.c.b16 %v3040, %v3039
    %v3046 = vpack.c.b16 %v3042, %v3041
    %v3052 = vsel %vm122, %v3025, 0
    %v3055 = vsel %vm122, %v3026, 0
    %3057 = vmatprep.subr.bf16.mxu0 0
    %3058 = vmatpush1.bf16.msra.mxu0 %v3043
    %3059 = vmatprep.subr.bf16.mxu0 0
    %3060 = vmatpush1.bf16.msra.mxu0 %v3044
    %3061 = vmatprep.subr.bf16.mxu0 0
    %3062 = vmatpush1.bf16.msra.mxu0 %v3045
    %3063 = vmatprep.subr.bf16.mxu0 0
    %3064 = vmatpush1.bf16.msra.mxu0 %v3046
    %3065 = vmatprep.subr.bf16.mxu0 0
    %3066 = vmatpush1.bf16.msra.mxu0 0
    %3067 = vmatprep.subr.bf16.mxu0 0
    %3068 = vmatpush1.bf16.msra.mxu0 0
    %3069 = vmatprep.subr.bf16.mxu0 0
    %3070 = vmatpush1.bf16.msra.mxu0 0
    %3071 = vmatprep.subr.bf16.mxu0 0
    %3072 = vmatpush1.bf16.msra.mxu0 0
    %3073 = vmatprep.subr.bf16.mxu0 0
    %3074 = vmatpush1.bf16.msra.mxu0 0
    %3075 = vmatprep.subr.bf16.mxu0 0
    %3076 = vmatpush1.bf16.msra.mxu0 0
    %3077 = vmatprep.subr.bf16.mxu0 0
    %3078 = vmatpush1.bf16.msra.mxu0 0
    %3079 = vmatprep.subr.bf16.mxu0 0
    %3080 = vmatpush1.bf16.msra.mxu0 0
    %3081 = vmatprep.subr.bf16.mxu0 0
    %3082 = vmatpush1.bf16.msra.mxu0 0
    %3083 = vmatprep.subr.bf16.mxu0 0
    %3084 = vmatpush1.bf16.msra.mxu0 0
    %3085 = vmatprep.subr.bf16.mxu0 0
    %3086 = vmatpush1.bf16.msra.mxu0 0
    %3087 = vmatprep.subr.bf16.mxu0 0
    %3088 = vmatpush1.bf16.msra.mxu0 0
    %3089 = vmatprep.mubr.bf16.mxu0 0
    %3090 = vmatmul.mubr.bf16.gmra.mrb[0].mxu0 %v3052
    %v3091 = vpop.f32.mrb[0].mxu0
    %v3092 = vadd.f32 0.0, %v3091
    %v3093 = vpop.f32.mrb[0].mxu0
    %v3094 = vpop.f32.mrb[0].mxu0
    %v3095 = vadd.f32 0.0, %v3094
    %v3096 = vpop.f32.mrb[0].mxu0
    %3097 = vmatprep.mubr.bf16.mxu0 0
    %3098 = vmatmul.mubr.bf16.gmra.mrb[0].mxu0 %v3055
    %v3099 = vpop.f32.mrb[0].mxu0
    %v3100 = vadd.f32 0.0, %v3099
    %v3101 = vpop.f32.mrb[0].mxu0
    %v3102 = vpop.f32.mrb[0].mxu0
    %v3103 = vadd.f32 0.0, %v3102
    %v3104 = vpop.f32.mrb[0].mxu0
    %3105 = vdwg.mxu0
    %v3106 = vadd.f32 %v2171, %v3092
    %v3107 = vadd.f32 %v2172, %v3095
    %v3108 = vadd.f32 %v2173, %v3100
    %v3109 = vadd.f32 %v2174, %v3103
    %s3110 = scalar_lea.vmem %s4, 24
    %v3111 = vld [vmem:[%s3110] sm:$0x1]
    %v3113 = vlaneseq
    %v3114 = vshrl.u32 %v3113, 7
    %v3115 = vsub.s32 0, %v3114
    %v3116 = vrot.slane %v3111, %v3115
    %v3118 = vadd.f32 %v3106, %v3116
    %v3119 = vadd.f32 %v3107, %v3116
    %v3120 = vadd.f32 %v3108, %v3116
    %v3121 = vadd.f32 %v3109, %v3116
    %s3122 = scalar_lea.vmem %s4, 25
    %v3123 = vld [vmem:[%s3122] sm:$0x1]
    %s3124 = scalar_lea.vmem %s4, 26
    %v3125 = vld [vmem:[%s3124] sm:$0x1]
    %v3126 = vsel %vm122, %v3118, 0.0
    %v3127 = vsel %vm122, %v3119, 0.0
    %v3128 = vadd.f32 %v3126, %v3127
    %v3129 = vrot.slane %v3128, 4
    %v3130 = vadd.f32 %v3128, %v3129
    %v3131 = vrot.slane %v3130, 2
    %v3132 = vadd.f32 %v3130, %v3131
    %v3133 = vrot.slane %v3132, 1
    %v3134 = vadd.f32 %v3132, %v3133
    %v3135 = vsel %vm122, %v3120, 0.0
    %v3136 = vsel %vm122, %v3121, 0.0
    %v3137 = vadd.f32 %v3135, %v3136
    %v3138 = vrot.slane %v3137, 4
    %v3139 = vadd.f32 %v3137, %v3138
    %v3140 = vrot.slane %v3139, 2
    %v3141 = vadd.f32 %v3139, %v3140
    %v3142 = vrot.slane %v3141, 1
    %v3143 = vadd.f32 %v3141, %v3142
    %v3144 = vmul.f32 %v3118, %v3118
    %v3145 = vmul.f32 %v3119, %v3119
    %v3146 = vmul.f32 %v3120, %v3120
    %v3147 = vmul.f32 %v3121, %v3121
    %v3148 = vsel %vm122, %v3144, 0.0
    %v3149 = vsel %vm122, %v3145, 0.0
    %v3150 = vadd.f32 %v3148, %v3149
    %v3151 = vrot.slane %v3150, 4
    %v3152 = vadd.f32 %v3150, %v3151
    %v3153 = vrot.slane %v3152, 2
    %v3154 = vadd.f32 %v3152, %v3153
    %v3155 = vrot.slane %v3154, 1
    %v3156 = vadd.f32 %v3154, %v3155
    %v3157 = vsel %vm122, %v3146, 0.0
    %v3158 = vsel %vm122, %v3147, 0.0
    %v3159 = vadd.f32 %v3157, %v3158
    %v3160 = vrot.slane %v3159, 4
    %v3161 = vadd.f32 %v3159, %v3160
    %v3162 = vrot.slane %v3161, 2
    %v3163 = vadd.f32 %v3161, %v3162
    %v3164 = vrot.slane %v3163, 1
    %v3165 = vadd.f32 %v3163, %v3164
    %v3168 = vsel %vm293, %v3143, %v3134
    %v3169 = vsel %vm122, %v3168, 0
    %3171 = vmatprep.subr.mxu0 0.0
    %3172 = vmatpush1.msra.mxu0 %v73
    %3173 = vmatprep.subr.mxu0 0.0
    %3174 = vmatpush1.msra.mxu0 %v74
    %3175 = vmatprep.subr.mxu0 0.0
    %3176 = vmatpush1.msra.mxu0 %v75
    %3177 = vmatprep.subr.mxu0 0.0
    %3178 = vmatpush1.msra.mxu0 %v76
    %3179 = vmatprep.subr.mxu0 0.0
    %3180 = vmatpush1.msra.mxu0 %v77
    %3181 = vmatprep.subr.mxu0 0.0
    %3182 = vmatpush1.msra.mxu0 %v78
    %3183 = vmatprep.subr.mxu0 0.0
    %3184 = vmatpush1.msra.mxu0 %v79
    %3185 = vmatprep.subr.mxu0 0.0
    %3186 = vmatpush1.msra.mxu0 %v80
    %3187 = vmatprep.subr.mxu0 0.0
    %3188 = vmatpush1.msra.mxu0 0.0
    %3189 = vmatprep.subr.mxu0 0.0
    %3190 = vmatpush1.msra.mxu0 0.0
    %3191 = vmatprep.subr.mxu0 0.0
    %3192 = vmatpush1.msra.mxu0 0.0
    %3193 = vmatprep.subr.mxu0 0.0
    %3194 = vmatpush1.msra.mxu0 0.0
    %3195 = vmatprep.subr.mxu0 0.0
    %3196 = vmatpush1.msra.mxu0 0.0
    %3197 = vmatprep.subr.mxu0 0.0
    %3198 = vmatpush1.msra.mxu0 0.0
    %3199 = vmatprep.subr.mxu0 0.0
    %3200 = vmatpush1.msra.mxu0 0.0
    %3201 = vmatprep.subr.mxu0 0.0
    %3202 = vmatpush1.msra.mxu0 0.0
    %3203 = vmatprep.subr.mxu0 0.0
    %3204 = vmatpush1.msra.mxu0 0.0
    %3205 = vmatprep.subr.mxu0 0.0
    %3206 = vmatpush1.msra.mxu0 0.0
    %3207 = vmatprep.subr.mxu0 0.0
    %3208 = vmatpush1.msra.mxu0 0.0
    %3209 = vmatprep.subr.mxu0 0.0
    %3210 = vmatpush1.msra.mxu0 0.0
    %3211 = vmatprep.subr.mxu0 0.0
    %3212 = vmatpush1.msra.mxu0 0.0
    %3213 = vmatprep.subr.mxu0 0.0
    %3214 = vmatpush1.msra.mxu0 0.0
    %3215 = vmatprep.subr.mxu0 0.0
    %3216 = vmatpush1.msra.mxu0 0.0
    %3217 = vmatprep.subr.mxu0 0.0
    %3218 = vmatpush1.msra.mxu0 0.0
    %3219 = vmatprep.subr.mxu0 0.0
    %3220 = vmatpush1.msra.mxu0 0.0
    %3221 = vmatprep.subr.mxu0 0.0
    %3222 = vmatpush1.msra.mxu0 0.0
    %3223 = vmatprep.subr.mxu0 0.0
    %3224 = vmatpush1.msra.mxu0 0.0
    %3225 = vmatprep.subr.mxu0 0.0
    %3226 = vmatpush1.msra.mxu0 0.0
    %3227 = vmatprep.subr.mxu0 0.0
    %3228 = vmatpush1.msra.mxu0 0.0
    %3229 = vmatprep.subr.mxu0 0.0
    %3230 = vmatpush1.msra.mxu0 0.0
    %3231 = vmatprep.subr.mxu0 0.0
    %3232 = vmatpush1.msra.mxu0 0.0
    %3233 = vmatprep.subr.mxu0 0.0
    %3234 = vmatpush1.msra.mxu0 0.0
    %3235 = vmatprep.mubr.f32.mxu0 0.0
    %3236 = vmatmul.mubr.f32.gmra.mrb[0].mxu0 %v3169
    %v3237 = vpop.f32.mrb[0].mxu0
    %v3238 = vadd.f32 0.0, %v3237
    %v3239 = vpop.f32.mrb[0].mxu0
    %3240 = vdwg.mxu0
    %v3243 = vsel %vm293, %v3165, %v3156
    %v3244 = vsel %vm122, %v3243, 0
    %3246 = vmatprep.subr.mxu0 0.0
    %3247 = vmatpush1.msra.mxu0 %v73
    %3248 = vmatprep.subr.mxu0 0.0
    %3249 = vmatpush1.msra.mxu0 %v74
    %3250 = vmatprep.subr.mxu0 0.0
    %3251 = vmatpush1.msra.mxu0 %v75
    %3252 = vmatprep.subr.mxu0 0.0
    %3253 = vmatpush1.msra.mxu0 %v76
    %3254 = vmatprep.subr.mxu0 0.0
    %3255 = vmatpush1.msra.mxu0 %v77
    %3256 = vmatprep.subr.mxu0 0.0
    %3257 = vmatpush1.msra.mxu0 %v78
    %3258 = vmatprep.subr.mxu0 0.0
    %3259 = vmatpush1.msra.mxu0 %v79
    %3260 = vmatprep.subr.mxu0 0.0
    %3261 = vmatpush1.msra.mxu0 %v80
    %3262 = vmatprep.subr.mxu0 0.0
    %3263 = vmatpush1.msra.mxu0 0.0
    %3264 = vmatprep.subr.mxu0 0.0
    %3265 = vmatpush1.msra.mxu0 0.0
    %3266 = vmatprep.subr.mxu0 0.0
    %3267 = vmatpush1.msra.mxu0 0.0
    %3268 = vmatprep.subr.mxu0 0.0
    %3269 = vmatpush1.msra.mxu0 0.0
    %3270 = vmatprep.subr.mxu0 0.0
    %3271 = vmatpush1.msra.mxu0 0.0
    %3272 = vmatprep.subr.mxu0 0.0
    %3273 = vmatpush1.msra.mxu0 0.0
    %3274 = vmatprep.subr.mxu0 0.0
    %3275 = vmatpush1.msra.mxu0 0.0
    %3276 = vmatprep.subr.mxu0 0.0
    %3277 = vmatpush1.msra.mxu0 0.0
    %3278 = vmatprep.subr.mxu0 0.0
    %3279 = vmatpush1.msra.mxu0 0.0
    %3280 = vmatprep.subr.mxu0 0.0
    %3281 = vmatpush1.msra.mxu0 0.0
    %3282 = vmatprep.subr.mxu0 0.0
    %3283 = vmatpush1.msra.mxu0 0.0
    %3284 = vmatprep.subr.mxu0 0.0
    %3285 = vmatpush1.msra.mxu0 0.0
    %3286 = vmatprep.subr.mxu0 0.0
    %3287 = vmatpush1.msra.mxu0 0.0
    %3288 = vmatprep.subr.mxu0 0.0
    %3289 = vmatpush1.msra.mxu0 0.0
    %3290 = vmatprep.subr.mxu0 0.0
    %3291 = vmatpush1.msra.mxu0 0.0
    %3292 = vmatprep.subr.mxu0 0.0
    %3293 = vmatpush1.msra.mxu0 0.0
    %3294 = vmatprep.subr.mxu0 0.0
    %3295 = vmatpush1.msra.mxu0 0.0
    %3296 = vmatprep.subr.mxu0 0.0
    %3297 = vmatpush1.msra.mxu0 0.0
    %3298 = vmatprep.subr.mxu0 0.0
    %3299 = vmatpush1.msra.mxu0 0.0
    %3300 = vmatprep.subr.mxu0 0.0
    %3301 = vmatpush1.msra.mxu0 0.0
    %3302 = vmatprep.subr.mxu0 0.0
    %3303 = vmatpush1.msra.mxu0 0.0
    %3304 = vmatprep.subr.mxu0 0.0
    %3305 = vmatpush1.msra.mxu0 0.0
    %3306 = vmatprep.subr.mxu0 0.0
    %3307 = vmatpush1.msra.mxu0 0.0
    %3308 = vmatprep.subr.mxu0 0.0
    %3309 = vmatpush1.msra.mxu0 0.0
    %3310 = vmatprep.mubr.f32.mxu0 0.0
    %3311 = vmatmul.mubr.f32.gmra.mrb[0].mxu0 %v3244
    %v3312 = vpop.f32.mrb[0].mxu0
    %v3313 = vadd.f32 0.0, %v3312
    %v3314 = vpop.f32.mrb[0].mxu0
    %3315 = vdwg.mxu0
    %v3316 = vmul.f32 %v3238, 0.03125
    %v3317 = vmul.f32 %v3313, 0.03125
    %v3318 = vmul.f32 %v3316, %v3316
    %v3319 = vsub.f32 %v3317, %v3318
    %v3320 = vmax.f32 %v3319, 0.0
    %v3321 = vadd.f32 %v3320, 1e-06
    %v3322 = vrsqrt.pop %v3321
    %v3324 = vlaneseq
    %v3325 = vshrl.u32 %v3324, 7
    %v3326 = vsub.s32 0, %v3325
    %v3327 = vrot.slane %v3123, %v3326
    %v3329 = vmul.f32 %v3327, %v3322
    %v3330 = vmul.f32 %v3316, %v3329
    %v3332 = vlaneseq
    %v3333 = vshrl.u32 %v3332, 7
    %v3334 = vsub.s32 0, %v3333
    %v3335 = vrot.slane %v3125, %v3334
    %v3337 = vsub.f32 %v3335, %v3330
    %v3340 = vunpack.c.l.s4 1966171168
    %v3341 = vunpack.c.0.s8 %v3340
    %v3342 = vlaneseq
    %v3343 = vshrl.u32 %v3342, 7
    %v3344 = vsub.s32 %v3341, %v3343
    %v3345 = vrot.slane %v3329, %v3344
    %v3346 = vcombine.high %v3345, %v3345
    %v3348 = vunpack.c.l.s4 1966171168
    %v3349 = vunpack.c.0.s8 %v3348
    %v3350 = vlaneseq
    %v3351 = vshrl.u32 %v3350, 7
    %v3352 = vsub.s32 %v3349, %v3351
    %v3353 = vrot.slane %v3345, %v3352
    %v3355 = vunpack.c.l.s4 1966171168
    %v3356 = vunpack.c.0.s8 %v3355
    %v3357 = vlaneseq
    %v3358 = vshrl.u32 %v3357, 7
    %v3359 = vsub.s32 %v3356, %v3358
    %v3360 = vrot.slane %v3346, %v3359
    %v3361 = vlaneseq
    %v3362 = vshrl.u32 %v3361, 7
    %v3363 = vsub.s32 0, %v3362
    %v3364 = vrot.slane %v3353, %v3363
    %v3365 = vlaneseq
    %v3366 = vshrl.u32 %v3365, 7
    %v3367 = vsub.s32 0, %v3366
    %v3368 = vrot.slane %v3360, %v3367
    %v3371 = vmul.f32 %v3118, %v3364
    %v3372 = vmul.f32 %v3119, %v3364
    %v3373 = vmul.f32 %v3120, %v3368
    %v3374 = vmul.f32 %v3121, %v3368
    %v3377 = vunpack.c.l.s4 1966171168
    %v3378 = vunpack.c.0.s8 %v3377
    %v3379 = vlaneseq
    %v3380 = vshrl.u32 %v3379, 7
    %v3381 = vsub.s32 %v3378, %v3380
    %v3382 = vrot.slane %v3337, %v3381
    %v3383 = vcombine.high %v3382, %v3382
    %v3385 = vunpack.c.l.s4 1966171168
    %v3386 = vunpack.c.0.s8 %v3385
    %v3387 = vlaneseq
    %v3388 = vshrl.u32 %v3387, 7
    %v3389 = vsub.s32 %v3386, %v3388
    %v3390 = vrot.slane %v3382, %v3389
    %v3392 = vunpack.c.l.s4 1966171168
    %v3393 = vunpack.c.0.s8 %v3392
    %v3394 = vlaneseq
    %v3395 = vshrl.u32 %v3394, 7
    %v3396 = vsub.s32 %v3393, %v3395
    %v3397 = vrot.slane %v3383, %v3396
    %v3398 = vlaneseq
    %v3399 = vshrl.u32 %v3398, 7
    %v3400 = vsub.s32 0, %v3399
    %v3401 = vrot.slane %v3390, %v3400
    %v3402 = vlaneseq
    %v3403 = vshrl.u32 %v3402, 7
    %v3404 = vsub.s32 0, %v3403
    %v3405 = vrot.slane %v3397, %v3404
    %v3408 = vadd.f32 %v3371, %v3401
    %v3409 = vadd.f32 %v3372, %v3401
    %v3410 = vadd.f32 %v3373, %v3405
    %v3411 = vadd.f32 %v3374, %v3405
    %v3412 = vsub.f32 0.0, %v3408
    %v3413 = vsub.f32 0.0, %v3409
    %v3414 = vsub.f32 0.0, %v3410
    %v3415 = vsub.f32 0.0, %v3411
    %v3416 = vmul.f32 %v3412, 1.442695
    %v3417 = vpow.pop %v3416
    %v3418 = vmul.f32 %v3413, 1.442695
    %v3419 = vpow.pop %v3418
    %v3420 = vmul.f32 %v3414, 1.442695
    %v3421 = vpow.pop %v3420
    %v3422 = vmul.f32 %v3415, 1.442695
    %v3423 = vpow.pop %v3422
    %v3424 = vadd.f32 %v3417, 1.0
    %v3425 = vadd.f32 %v3419, 1.0
    %v3426 = vadd.f32 %v3421, 1.0
    %v3427 = vadd.f32 %v3423, 1.0
    %v3428 = vrcp.pop %v3424
    %v3429 = vmul.f32 1.0, %v3428
    %v3430 = vrcp.pop %v3425
    %v3431 = vmul.f32 1.0, %v3430
    %v3432 = vrcp.pop %v3426
    %v3433 = vmul.f32 1.0, %v3432
    %v3434 = vrcp.pop %v3427
    %v3435 = vmul.f32 1.0, %v3434
    %v3436 = vmul.f32 %v3408, %v3429
    %v3437 = vmul.f32 %v3409, %v3431
    %v3438 = vmul.f32 %v3410, %v3433
    %v3439 = vmul.f32 %v3411, %v3435
    %s3440 = scalar_lea.vmem [#allocation2], 608
    %v3441 = vld [vmem:[%s3440] sm:$0xf]
    %v3442 = vld [vmem:[%s3440 + $0x4] sm:$0xf]
    %v3443 = vld [vmem:[%s3440 + $0x8] sm:$0xf]
    %v3444 = vld [vmem:[%s3440 + $0xc] sm:$0xf]
    %v3445 = vld [vmem:[%s3440 + $0x10] sm:$0xf]
    %v3446 = vld [vmem:[%s3440 + $0x14] sm:$0xf]
    %v3447 = vld [vmem:[%s3440 + $0x18] sm:$0xf]
    %v3448 = vld [vmem:[%s3440 + $0x1c] sm:$0xf]
    %v3449 = vpack.c.bf16 %v3437, %v3436
    %v3450 = vpack.c.bf16 %v3439, %v3438
    %s3451 = scalar_lea.vmem %s4, 27
    %v3452 = vld [vmem:[%s3451] sm:$0x1]
    %v3454 = vlaneseq
    %v3455 = vshrl.u32 %v3454, 7
    %v3456 = vsub.s32 0, %v3455
    %v3457 = vrot.slane %v3452, %v3456
    %v3467 = vunpack.c.l.b16 %v3441
    %v3468 = vunpack.c.l.b16 %v3442
    %v3469 = vunpack.c.l.b16 %v3443
    %v3470 = vunpack.c.l.b16 %v3444
    %v3471 = vunpack.c.l.b16 %v3445
    %v3472 = vunpack.c.l.b16 %v3446
    %v3473 = vunpack.c.l.b16 %v3447
    %v3474 = vunpack.c.l.b16 %v3448
    %v3475 = vpack.c.b16 %v3468, %v3467
    %v3476 = vpack.c.b16 %v3470, %v3469
    %v3477 = vpack.c.b16 %v3472, %v3471
    %v3478 = vpack.c.b16 %v3474, %v3473
    %v3484 = vsel %vm122, %v3449, 0
    %v3487 = vsel %vm122, %v3450, 0
    %3489 = vmatprep.subr.bf16.mxu0 0
    %3490 = vmatpush1.bf16.msra.mxu0 %v3475
    %3491 = vmatprep.subr.bf16.mxu0 0
    %3492 = vmatpush1.bf16.msra.mxu0 %v3476
    %3493 = vmatprep.subr.bf16.mxu0 0
    %3494 = vmatpush1.bf16.msra.mxu0 %v3477
    %3495 = vmatprep.subr.bf16.mxu0 0
    %3496 = vmatpush1.bf16.msra.mxu0 %v3478
    %3497 = vmatprep.subr.bf16.mxu0 0
    %3498 = vmatpush1.bf16.msra.mxu0 0
    %3499 = vmatprep.subr.bf16.mxu0 0
    %3500 = vmatpush1.bf16.msra.mxu0 0
    %3501 = vmatprep.subr.bf16.mxu0 0
    %3502 = vmatpush1.bf16.msra.mxu0 0
    %3503 = vmatprep.subr.bf16.mxu0 0
    %3504 = vmatpush1.bf16.msra.mxu0 0
    %3505 = vmatprep.subr.bf16.mxu0 0
    %3506 = vmatpush1.bf16.msra.mxu0 0
    %3507 = vmatprep.subr.bf16.mxu0 0
    %3508 = vmatpush1.bf16.msra.mxu0 0
    %3509 = vmatprep.subr.bf16.mxu0 0
    %3510 = vmatpush1.bf16.msra.mxu0 0
    %3511 = vmatprep.subr.bf16.mxu0 0
    %3512 = vmatpush1.bf16.msra.mxu0 0
    %3513 = vmatprep.subr.bf16.mxu0 0
    %3514 = vmatpush1.bf16.msra.mxu0 0
    %3515 = vmatprep.subr.bf16.mxu0 0
    %3516 = vmatpush1.bf16.msra.mxu0 0
    %3517 = vmatprep.subr.bf16.mxu0 0
    %3518 = vmatpush1.bf16.msra.mxu0 0
    %3519 = vmatprep.subr.bf16.mxu0 0
    %3520 = vmatpush1.bf16.msra.mxu0 0
    %3521 = vmatprep.mubr.bf16.mxu0 0
    %3522 = vmatmul.mubr.bf16.gmra.mrb[0].mxu0 %v3484
    %v3523 = vpop.f32.mrb[0].mxu0
    %v3524 = vadd.f32 %v3457, %v3523
    %v3525 = vpop.f32.mrb[0].mxu0
    %v3526 = vpop.f32.mrb[0].mxu0
    %v3527 = vadd.f32 %v3457, %v3526
    %v3528 = vpop.f32.mrb[0].mxu0
    %3529 = vmatprep.mubr.bf16.mxu0 0
    %3530 = vmatmul.mubr.bf16.gmra.mrb[0].mxu0 %v3487
    %v3531 = vpop.f32.mrb[0].mxu0
    %v3532 = vadd.f32 %v3457, %v3531
    %v3533 = vpop.f32.mrb[0].mxu0
    %v3534 = vpop.f32.mrb[0].mxu0
    %v3535 = vadd.f32 %v3457, %v3534
    %v3536 = vpop.f32.mrb[0].mxu0
    %3537 = vdwg.mxu0
    %s3538 = scalar_lea.vmem [#allocation2], 640
    %v3539 = vld [vmem:[%s3538] sm:$0xf]
    %v3540 = vld [vmem:[%s3538 + $0x4] sm:$0xf]
    %v3541 = vld [vmem:[%s3538 + $0x8] sm:$0xf]
    %v3542 = vld [vmem:[%s3538 + $0xc] sm:$0xf]
    %v3543 = vld [vmem:[%s3538 + $0x10] sm:$0xf]
    %v3544 = vld [vmem:[%s3538 + $0x14] sm:$0xf]
    %v3545 = vld [vmem:[%s3538 + $0x18] sm:$0xf]
    %v3546 = vld [vmem:[%s3538 + $0x1c] sm:$0xf]
    %s3547 = scalar_lea.vmem %s4, 28
    %v3548 = vld [vmem:[%s3547] sm:$0x1]
    %v3550 = vlaneseq
    %v3551 = vshrl.u32 %v3550, 7
    %v3552 = vsub.s32 0, %v3551
    %v3553 = vrot.slane %v3548, %v3552
    %v3563 = vunpack.c.l.b16 %v3539
    %v3564 = vunpack.c.l.b16 %v3540
    %v3565 = vunpack.c.l.b16 %v3541
    %v3566 = vunpack.c.l.b16 %v3542
    %v3567 = vunpack.c.l.b16 %v3543
    %v3568 = vunpack.c.l.b16 %v3544
    %v3569 = vunpack.c.l.b16 %v3545
    %v3570 = vunpack.c.l.b16 %v3546
    %v3571 = vpack.c.b16 %v3564, %v3563
    %v3572 = vpack.c.b16 %v3566, %v3565
    %v3573 = vpack.c.b16 %v3568, %v3567
    %v3574 = vpack.c.b16 %v3570, %v3569
    %3579 = vmatprep.subr.bf16.mxu0 0
    %3580 = vmatpush1.bf16.msra.mxu0 %v3571
    %3581 = vmatprep.subr.bf16.mxu0 0
    %3582 = vmatpush1.bf16.msra.mxu0 %v3572
    %3583 = vmatprep.subr.bf16.mxu0 0
    %3584 = vmatpush1.bf16.msra.mxu0 %v3573
    %3585 = vmatprep.subr.bf16.mxu0 0
    %3586 = vmatpush1.bf16.msra.mxu0 %v3574
    %3587 = vmatprep.subr.bf16.mxu0 0
    %3588 = vmatpush1.bf16.msra.mxu0 0
    %3589 = vmatprep.subr.bf16.mxu0 0
    %3590 = vmatpush1.bf16.msra.mxu0 0
    %3591 = vmatprep.subr.bf16.mxu0 0
    %3592 = vmatpush1.bf16.msra.mxu0 0
    %3593 = vmatprep.subr.bf16.mxu0 0
    %3594 = vmatpush1.bf16.msra.mxu0 0
    %3595 = vmatprep.subr.bf16.mxu0 0
    %3596 = vmatpush1.bf16.msra.mxu0 0
    %3597 = vmatprep.subr.bf16.mxu0 0
    %3598 = vmatpush1.bf16.msra.mxu0 0
    %3599 = vmatprep.subr.bf16.mxu0 0
    %3600 = vmatpush1.bf16.msra.mxu0 0
    %3601 = vmatprep.subr.bf16.mxu0 0
    %3602 = vmatpush1.bf16.msra.mxu0 0
    %3603 = vmatprep.subr.bf16.mxu0 0
    %3604 = vmatpush1.bf16.msra.mxu0 0
    %3605 = vmatprep.subr.bf16.mxu0 0
    %3606 = vmatpush1.bf16.msra.mxu0 0
    %3607 = vmatprep.subr.bf16.mxu0 0
    %3608 = vmatpush1.bf16.msra.mxu0 0
    %3609 = vmatprep.subr.bf16.mxu0 0
    %3610 = vmatpush1.bf16.msra.mxu0 0
    %3611 = vmatprep.mubr.bf16.mxu0 0
    %3612 = vmatmul.mubr.bf16.gmra.mrb[0].mxu0 %v1676
    %v3613 = vpop.f32.mrb[0].mxu0
    %v3614 = vadd.f32 %v3553, %v3613
    %v3615 = vpop.f32.mrb[0].mxu0
    %v3616 = vpop.f32.mrb[0].mxu0
    %v3617 = vpop.f32.mrb[0].mxu0
    %3618 = vdwg.mxu0
    %v3621 = vunpack.c.l.s4 1966171168
    %v3622 = vunpack.c.0.s8 %v3621
    %v3623 = vlaneseq
    %v3624 = vshrl.u32 %v3623, 7
    %v3625 = vsub.s32 %v3622, %v3624
    %v3626 = vrot.slane %v3614, %v3625
    %v3627 = vcombine.high %v3626, %v3626
    %v3629 = vunpack.c.l.s4 1966171168
    %v3630 = vunpack.c.0.s8 %v3629
    %v3631 = vlaneseq
    %v3632 = vshrl.u32 %v3631, 7
    %v3633 = vsub.s32 %v3630, %v3632
    %v3634 = vrot.slane %v3626, %v3633
    %v3636 = vunpack.c.l.s4 1966171168
    %v3637 = vunpack.c.0.s8 %v3636
    %v3638 = vlaneseq
    %v3639 = vshrl.u32 %v3638, 7
    %v3640 = vsub.s32 %v3637, %v3639
    %v3641 = vrot.slane %v3627, %v3640
    %v3642 = vlaneseq
    %v3643 = vshrl.u32 %v3642, 7
    %v3644 = vsub.s32 0, %v3643
    %v3645 = vrot.slane %v3634, %v3644
    %v3646 = vlaneseq
    %v3647 = vshrl.u32 %v3646, 7
    %v3648 = vsub.s32 0, %v3647
    %v3649 = vrot.slane %v3641, %v3648
    %v3652 = vadd.f32 %v3524, %v3645
    %v3653 = vadd.f32 %v3527, %v3645
    %v3654 = vadd.f32 %v3532, %v3649
    %v3655 = vadd.f32 %v3535, %v3649
    %s3656 = scalar_lea.vmem %s4, 29
    %v3657 = vld [vmem:[%s3656] sm:$0x1]
    %s3658 = scalar_lea.vmem %s4, 30
    %v3659 = vld [vmem:[%s3658] sm:$0x1]
    %v3660 = vsel %vm122, %v3652, 0.0
    %v3661 = vsel %vm122, %v3653, 0.0
    %v3662 = vadd.f32 %v3660, %v3661
    %v3663 = vrot.slane %v3662, 4
    %v3664 = vadd.f32 %v3662, %v3663
    %v3665 = vrot.slane %v3664, 2
    %v3666 = vadd.f32 %v3664, %v3665
    %v3667 = vrot.slane %v3666, 1
    %v3668 = vadd.f32 %v3666, %v3667
    %v3669 = vsel %vm122, %v3654, 0.0
    %v3670 = vsel %vm122, %v3655, 0.0
    %v3671 = vadd.f32 %v3669, %v3670
    %v3672 = vrot.slane %v3671, 4
    %v3673 = vadd.f32 %v3671, %v3672
    %v3674 = vrot.slane %v3673, 2
    %v3675 = vadd.f32 %v3673, %v3674
    %v3676 = vrot.slane %v3675, 1
    %v3677 = vadd.f32 %v3675, %v3676
    %v3678 = vmul.f32 %v3652, %v3652
    %v3679 = vmul.f32 %v3653, %v3653
    %v3680 = vmul.f32 %v3654, %v3654
    %v3681 = vmul.f32 %v3655, %v3655
    %v3682 = vsel %vm122, %v3678, 0.0
    %v3683 = vsel %vm122, %v3679, 0.0
    %v3684 = vadd.f32 %v3682, %v3683
    %v3685 = vrot.slane %v3684, 4
    %v3686 = vadd.f32 %v3684, %v3685
    %v3687 = vrot.slane %v3686, 2
    %v3688 = vadd.f32 %v3686, %v3687
    %v3689 = vrot.slane %v3688, 1
    %v3690 = vadd.f32 %v3688, %v3689
    %v3691 = vsel %vm122, %v3680, 0.0
    %v3692 = vsel %vm122, %v3681, 0.0
    %v3693 = vadd.f32 %v3691, %v3692
    %v3694 = vrot.slane %v3693, 4
    %v3695 = vadd.f32 %v3693, %v3694
    %v3696 = vrot.slane %v3695, 2
    %v3697 = vadd.f32 %v3695, %v3696
    %v3698 = vrot.slane %v3697, 1
    %v3699 = vadd.f32 %v3697, %v3698
    %v3702 = vsel %vm293, %v3677, %v3668
    %v3703 = vsel %vm122, %v3702, 0
    %3705 = vmatprep.subr.mxu0 0.0
    %3706 = vmatpush1.msra.mxu0 %v73
    %3707 = vmatprep.subr.mxu0 0.0
    %3708 = vmatpush1.msra.mxu0 %v74
    %3709 = vmatprep.subr.mxu0 0.0
    %3710 = vmatpush1.msra.mxu0 %v75
    %3711 = vmatprep.subr.mxu0 0.0
    %3712 = vmatpush1.msra.mxu0 %v76
    %3713 = vmatprep.subr.mxu0 0.0
    %3714 = vmatpush1.msra.mxu0 %v77
    %3715 = vmatprep.subr.mxu0 0.0
    %3716 = vmatpush1.msra.mxu0 %v78
    %3717 = vmatprep.subr.mxu0 0.0
    %3718 = vmatpush1.msra.mxu0 %v79
    %3719 = vmatprep.subr.mxu0 0.0
    %3720 = vmatpush1.msra.mxu0 %v80
    %3721 = vmatprep.subr.mxu0 0.0
    %3722 = vmatpush1.msra.mxu0 0.0
    %3723 = vmatprep.subr.mxu0 0.0
    %3724 = vmatpush1.msra.mxu0 0.0
    %3725 = vmatprep.subr.mxu0 0.0
    %3726 = vmatpush1.msra.mxu0 0.0
    %3727 = vmatprep.subr.mxu0 0.0
    %3728 = vmatpush1.msra.mxu0 0.0
    %3729 = vmatprep.subr.mxu0 0.0
    %3730 = vmatpush1.msra.mxu0 0.0
    %3731 = vmatprep.subr.mxu0 0.0
    %3732 = vmatpush1.msra.mxu0 0.0
    %3733 = vmatprep.subr.mxu0 0.0
    %3734 = vmatpush1.msra.mxu0 0.0
    %3735 = vmatprep.subr.mxu0 0.0
    %3736 = vmatpush1.msra.mxu0 0.0
    %3737 = vmatprep.subr.mxu0 0.0
    %3738 = vmatpush1.msra.mxu0 0.0
    %3739 = vmatprep.subr.mxu0 0.0
    %3740 = vmatpush1.msra.mxu0 0.0
    %3741 = vmatprep.subr.mxu0 0.0
    %3742 = vmatpush1.msra.mxu0 0.0
    %3743 = vmatprep.subr.mxu0 0.0
    %3744 = vmatpush1.msra.mxu0 0.0
    %3745 = vmatprep.subr.mxu0 0.0
    %3746 = vmatpush1.msra.mxu0 0.0
    %3747 = vmatprep.subr.mxu0 0.0
    %3748 = vmatpush1.msra.mxu0 0.0
    %3749 = vmatprep.subr.mxu0 0.0
    %3750 = vmatpush1.msra.mxu0 0.0
    %3751 = vmatprep.subr.mxu0 0.0
    %3752 = vmatpush1.msra.mxu0 0.0
    %3753 = vmatprep.subr.mxu0 0.0
    %3754 = vmatpush1.msra.mxu0 0.0
    %3755 = vmatprep.subr.mxu0 0.0
    %3756 = vmatpush1.msra.mxu0 0.0
    %3757 = vmatprep.subr.mxu0 0.0
    %3758 = vmatpush1.msra.mxu0 0.0
    %3759 = vmatprep.subr.mxu0 0.0
    %3760 = vmatpush1.msra.mxu0 0.0
    %3761 = vmatprep.subr.mxu0 0.0
    %3762 = vmatpush1.msra.mxu0 0.0
    %3763 = vmatprep.subr.mxu0 0.0
    %3764 = vmatpush1.msra.mxu0 0.0
    %3765 = vmatprep.subr.mxu0 0.0
    %3766 = vmatpush1.msra.mxu0 0.0
    %3767 = vmatprep.subr.mxu0 0.0
    %3768 = vmatpush1.msra.mxu0 0.0
    %3769 = vmatprep.mubr.f32.mxu0 0.0
    %3770 = vmatmul.mubr.f32.gmra.mrb[0].mxu0 %v3703
    %v3771 = vpop.f32.mrb[0].mxu0
    %v3772 = vadd.f32 0.0, %v3771
    %v3773 = vpop.f32.mrb[0].mxu0
    %3774 = vdwg.mxu0
    %v3777 = vsel %vm293, %v3699, %v3690
    %v3778 = vsel %vm122, %v3777, 0
    %3780 = vmatprep.subr.mxu0 0.0
    %3781 = vmatpush1.msra.mxu0 %v73
    %3782 = vmatprep.subr.mxu0 0.0
    %3783 = vmatpush1.msra.mxu0 %v74
    %3784 = vmatprep.subr.mxu0 0.0
    %3785 = vmatpush1.msra.mxu0 %v75
    %3786 = vmatprep.subr.mxu0 0.0
    %3787 = vmatpush1.msra.mxu0 %v76
    %3788 = vmatprep.subr.mxu0 0.0
    %3789 = vmatpush1.msra.mxu0 %v77
    %3790 = vmatprep.subr.mxu0 0.0
    %3791 = vmatpush1.msra.mxu0 %v78
    %3792 = vmatprep.subr.mxu0 0.0
    %3793 = vmatpush1.msra.mxu0 %v79
    %3794 = vmatprep.subr.mxu0 0.0
    %3795 = vmatpush1.msra.mxu0 %v80
    %3796 = vmatprep.subr.mxu0 0.0
    %3797 = vmatpush1.msra.mxu0 0.0
    %3798 = vmatprep.subr.mxu0 0.0
    %3799 = vmatpush1.msra.mxu0 0.0
    %3800 = vmatprep.subr.mxu0 0.0
    %3801 = vmatpush1.msra.mxu0 0.0
    %3802 = vmatprep.subr.mxu0 0.0
    %3803 = vmatpush1.msra.mxu0 0.0
    %3804 = vmatprep.subr.mxu0 0.0
    %3805 = vmatpush1.msra.mxu0 0.0
    %3806 = vmatprep.subr.mxu0 0.0
    %3807 = vmatpush1.msra.mxu0 0.0
    %3808 = vmatprep.subr.mxu0 0.0
    %3809 = vmatpush1.msra.mxu0 0.0
    %3810 = vmatprep.subr.mxu0 0.0
    %3811 = vmatpush1.msra.mxu0 0.0
    %3812 = vmatprep.subr.mxu0 0.0
    %3813 = vmatpush1.msra.mxu0 0.0
    %3814 = vmatprep.subr.mxu0 0.0
    %3815 = vmatpush1.msra.mxu0 0.0
    %3816 = vmatprep.subr.mxu0 0.0
    %3817 = vmatpush1.msra.mxu0 0.0
    %3818 = vmatprep.subr.mxu0 0.0
    %3819 = vmatpush1.msra.mxu0 0.0
    %3820 = vmatprep.subr.mxu0 0.0
    %3821 = vmatpush1.msra.mxu0 0.0
    %3822 = vmatprep.subr.mxu0 0.0
    %3823 = vmatpush1.msra.mxu0 0.0
    %3824 = vmatprep.subr.mxu0 0.0
    %3825 = vmatpush1.msra.mxu0 0.0
    %3826 = vmatprep.subr.mxu0 0.0
    %3827 = vmatpush1.msra.mxu0 0.0
    %3828 = vmatprep.subr.mxu0 0.0
    %3829 = vmatpush1.msra.mxu0 0.0
    %3830 = vmatprep.subr.mxu0 0.0
    %3831 = vmatpush1.msra.mxu0 0.0
    %3832 = vmatprep.subr.mxu0 0.0
    %3833 = vmatpush1.msra.mxu0 0.0
    %3834 = vmatprep.subr.mxu0 0.0
    %3835 = vmatpush1.msra.mxu0 0.0
    %3836 = vmatprep.subr.mxu0 0.0
    %3837 = vmatpush1.msra.mxu0 0.0
    %3838 = vmatprep.subr.mxu0 0.0
    %3839 = vmatpush1.msra.mxu0 0.0
    %3840 = vmatprep.subr.mxu0 0.0
    %3841 = vmatpush1.msra.mxu0 0.0
    %3842 = vmatprep.subr.mxu0 0.0
    %3843 = vmatpush1.msra.mxu0 0.0
    %3844 = vmatprep.mubr.f32.mxu0 0.0
    %3845 = vmatmul.mubr.f32.gmra.mrb[0].mxu0 %v3778
    %v3846 = vpop.f32.mrb[0].mxu0
    %v3847 = vadd.f32 0.0, %v3846
    %v3848 = vpop.f32.mrb[0].mxu0
    %3849 = vdwg.mxu0
    %v3850 = vmul.f32 %v3772, 0.03125
    %v3851 = vmul.f32 %v3847, 0.03125
    %v3852 = vmul.f32 %v3850, %v3850
    %v3853 = vsub.f32 %v3851, %v3852
    %v3854 = vmax.f32 %v3853, 0.0
    %v3855 = vadd.f32 %v3854, 1e-06
    %v3856 = vrsqrt.pop %v3855
    %v3858 = vlaneseq
    %v3859 = vshrl.u32 %v3858, 7
    %v3860 = vsub.s32 0, %v3859
    %v3861 = vrot.slane %v3657, %v3860
    %v3863 = vmul.f32 %v3861, %v3856
    %v3864 = vmul.f32 %v3850, %v3863
    %v3866 = vlaneseq
    %v3867 = vshrl.u32 %v3866, 7
    %v3868 = vsub.s32 0, %v3867
    %v3869 = vrot.slane %v3659, %v3868
    %v3871 = vsub.f32 %v3869, %v3864
    %v3874 = vunpack.c.l.s4 1966171168
    %v3875 = vunpack.c.0.s8 %v3874
    %v3876 = vlaneseq
    %v3877 = vshrl.u32 %v3876, 7
    %v3878 = vsub.s32 %v3875, %v3877
    %v3879 = vrot.slane %v3863, %v3878
    %v3880 = vcombine.high %v3879, %v3879
    %v3882 = vunpack.c.l.s4 1966171168
    %v3883 = vunpack.c.0.s8 %v3882
    %v3884 = vlaneseq
    %v3885 = vshrl.u32 %v3884, 7
    %v3886 = vsub.s32 %v3883, %v3885
    %v3887 = vrot.slane %v3879, %v3886
    %v3889 = vunpack.c.l.s4 1966171168
    %v3890 = vunpack.c.0.s8 %v3889
    %v3891 = vlaneseq
    %v3892 = vshrl.u32 %v3891, 7
    %v3893 = vsub.s32 %v3890, %v3892
    %v3894 = vrot.slane %v3880, %v3893
    %v3895 = vlaneseq
    %v3896 = vshrl.u32 %v3895, 7
    %v3897 = vsub.s32 0, %v3896
    %v3898 = vrot.slane %v3887, %v3897
    %v3899 = vlaneseq
    %v3900 = vshrl.u32 %v3899, 7
    %v3901 = vsub.s32 0, %v3900
    %v3902 = vrot.slane %v3894, %v3901
    %v3905 = vmul.f32 %v3652, %v3898
    %v3906 = vmul.f32 %v3653, %v3898
    %v3907 = vmul.f32 %v3654, %v3902
    %v3908 = vmul.f32 %v3655, %v3902
    %v3911 = vunpack.c.l.s4 1966171168
    %v3912 = vunpack.c.0.s8 %v3911
    %v3913 = vlaneseq
    %v3914 = vshrl.u32 %v3913, 7
    %v3915 = vsub.s32 %v3912, %v3914
    %v3916 = vrot.slane %v3871, %v3915
    %v3917 = vcombine.high %v3916, %v3916
    %v3919 = vunpack.c.l.s4 1966171168
    %v3920 = vunpack.c.0.s8 %v3919
    %v3921 = vlaneseq
    %v3922 = vshrl.u32 %v3921, 7
    %v3923 = vsub.s32 %v3920, %v3922
    %v3924 = vrot.slane %v3916, %v3923
    %v3926 = vunpack.c.l.s4 1966171168
    %v3927 = vunpack.c.0.s8 %v3926
    %v3928 = vlaneseq
    %v3929 = vshrl.u32 %v3928, 7
    %v3930 = vsub.s32 %v3927, %v3929
    %v3931 = vrot.slane %v3917, %v3930
    %v3932 = vlaneseq
    %v3933 = vshrl.u32 %v3932, 7
    %v3934 = vsub.s32 0, %v3933
    %v3935 = vrot.slane %v3924, %v3934
    %v3936 = vlaneseq
    %v3937 = vshrl.u32 %v3936, 7
    %v3938 = vsub.s32 0, %v3937
    %v3939 = vrot.slane %v3931, %v3938
    %v3942 = vadd.f32 %v3905, %v3935
    %v3943 = vadd.f32 %v3906, %v3935
    %v3944 = vadd.f32 %v3907, %v3939
    %v3945 = vadd.f32 %v3908, %v3939
    %v3946 = vsub.f32 0.0, %v3942
    %v3947 = vsub.f32 0.0, %v3943
    %v3948 = vsub.f32 0.0, %v3944
    %v3949 = vsub.f32 0.0, %v3945
    %v3950 = vmul.f32 %v3946, 1.442695
    %v3951 = vpow.pop %v3950
    %v3952 = vmul.f32 %v3947, 1.442695
    %v3953 = vpow.pop %v3952
    %v3954 = vmul.f32 %v3948, 1.442695
    %v3955 = vpow.pop %v3954
    %v3956 = vmul.f32 %v3949, 1.442695
    %v3957 = vpow.pop %v3956
    %v3958 = vadd.f32 %v3951, 1.0
    %v3959 = vadd.f32 %v3953, 1.0
    %v3960 = vadd.f32 %v3955, 1.0
    %v3961 = vadd.f32 %v3957, 1.0
    %v3962 = vrcp.pop %v3958
    %v3963 = vmul.f32 1.0, %v3962
    %v3964 = vrcp.pop %v3959
    %v3965 = vmul.f32 1.0, %v3964
    %v3966 = vrcp.pop %v3960
    %v3967 = vmul.f32 1.0, %v3966
    %v3968 = vrcp.pop %v3961
    %v3969 = vmul.f32 1.0, %v3968
    %v3970 = vmul.f32 %v3942, %v3963
    %v3971 = vmul.f32 %v3943, %v3965
    %v3972 = vmul.f32 %v3944, %v3967
    %v3973 = vmul.f32 %v3945, %v3969
    %s3974 = scalar_lea.vmem [#allocation2], 672
    %v3975 = vld [vmem:[%s3974] sm:$0xf]
    %v3976 = vld [vmem:[%s3974 + $0x4] sm:$0xf]
    %v3977 = vld [vmem:[%s3974 + $0x8] sm:$0xf]
    %v3978 = vld [vmem:[%s3974 + $0xc] sm:$0xf]
    %v3979 = vld [vmem:[%s3974 + $0x10] sm:$0xf]
    %v3980 = vld [vmem:[%s3974 + $0x14] sm:$0xf]
    %v3981 = vld [vmem:[%s3974 + $0x18] sm:$0xf]
    %v3982 = vld [vmem:[%s3974 + $0x1c] sm:$0xf]
    %v3983 = vpack.c.bf16 %v3971, %v3970
    %v3984 = vpack.c.bf16 %v3973, %v3972
    %s3985 = scalar_lea.vmem %s4, 31
    %v3986 = vld [vmem:[%s3985] sm:$0x1]
    %v3988 = vlaneseq
    %v3989 = vshrl.u32 %v3988, 7
    %v3990 = vsub.s32 0, %v3989
    %v3991 = vrot.slane %v3986, %v3990
    %v4001 = vunpack.c.l.b16 %v3975
    %v4002 = vunpack.c.l.b16 %v3976
    %v4003 = vunpack.c.l.b16 %v3977
    %v4004 = vunpack.c.l.b16 %v3978
    %v4005 = vunpack.c.l.b16 %v3979
    %v4006 = vunpack.c.l.b16 %v3980
    %v4007 = vunpack.c.l.b16 %v3981
    %v4008 = vunpack.c.l.b16 %v3982
    %v4009 = vpack.c.b16 %v4002, %v4001
    %v4010 = vpack.c.b16 %v4004, %v4003
    %v4011 = vpack.c.b16 %v4006, %v4005
    %v4012 = vpack.c.b16 %v4008, %v4007
    %v4018 = vsel %vm122, %v3983, 0
    %v4021 = vsel %vm122, %v3984, 0
    %4023 = vmatprep.subr.bf16.mxu0 0
    %4024 = vmatpush1.bf16.msra.mxu0 %v4009
    %4025 = vmatprep.subr.bf16.mxu0 0
    %4026 = vmatpush1.bf16.msra.mxu0 %v4010
    %4027 = vmatprep.subr.bf16.mxu0 0
    %4028 = vmatpush1.bf16.msra.mxu0 %v4011
    %4029 = vmatprep.subr.bf16.mxu0 0
    %4030 = vmatpush1.bf16.msra.mxu0 %v4012
    %4031 = vmatprep.subr.bf16.mxu0 0
    %4032 = vmatpush1.bf16.msra.mxu0 0
    %4033 = vmatprep.subr.bf16.mxu0 0
    %4034 = vmatpush1.bf16.msra.mxu0 0
    %4035 = vmatprep.subr.bf16.mxu0 0
    %4036 = vmatpush1.bf16.msra.mxu0 0
    %4037 = vmatprep.subr.bf16.mxu0 0
    %4038 = vmatpush1.bf16.msra.mxu0 0
    %4039 = vmatprep.subr.bf16.mxu0 0
    %4040 = vmatpush1.bf16.msra.mxu0 0
    %4041 = vmatprep.subr.bf16.mxu0 0
    %4042 = vmatpush1.bf16.msra.mxu0 0
    %4043 = vmatprep.subr.bf16.mxu0 0
    %4044 = vmatpush1.bf16.msra.mxu0 0
    %4045 = vmatprep.subr.bf16.mxu0 0
    %4046 = vmatpush1.bf16.msra.mxu0 0
    %4047 = vmatprep.subr.bf16.mxu0 0
    %4048 = vmatpush1.bf16.msra.mxu0 0
    %4049 = vmatprep.subr.bf16.mxu0 0
    %4050 = vmatpush1.bf16.msra.mxu0 0
    %4051 = vmatprep.subr.bf16.mxu0 0
    %4052 = vmatpush1.bf16.msra.mxu0 0
    %4053 = vmatprep.subr.bf16.mxu0 0
    %4054 = vmatpush1.bf16.msra.mxu0 0
    %4055 = vmatprep.mubr.bf16.mxu0 0
    %4056 = vmatmul.mubr.bf16.gmra.mrb[0].mxu0 %v4018
    %v4057 = vpop.f32.mrb[0].mxu0
    %v4058 = vadd.f32 %v3991, %v4057
    %v4059 = vpop.f32.mrb[0].mxu0
    %v4060 = vpop.f32.mrb[0].mxu0
    %v4061 = vadd.f32 %v3991, %v4060
    %v4062 = vpop.f32.mrb[0].mxu0
    %4063 = vmatprep.mubr.bf16.mxu0 0
    %4064 = vmatmul.mubr.bf16.gmra.mrb[0].mxu0 %v4021
    %v4065 = vpop.f32.mrb[0].mxu0
    %v4066 = vadd.f32 %v3991, %v4065
    %v4067 = vpop.f32.mrb[0].mxu0
    %v4068 = vpop.f32.mrb[0].mxu0
    %v4069 = vadd.f32 %v3991, %v4068
    %v4070 = vpop.f32.mrb[0].mxu0
    %4071 = vdwg.mxu0
    %v4072 = vadd.f32 %v3118, %v4058
    %v4073 = vadd.f32 %v3119, %v4061
    %v4074 = vadd.f32 %v3120, %v4066
    %v4075 = vadd.f32 %v3121, %v4069
    %s4076 = scalar_lea.vmem %s4, 32
    %v4077 = vld [vmem:[%s4076] sm:$0x1]
    %s4078 = scalar_lea.vmem %s4, 33
    %v4079 = vld [vmem:[%s4078] sm:$0x1]
    %v4080 = vsel %vm122, %v4072, 0.0
    %v4081 = vsel %vm122, %v4073, 0.0
    %v4082 = vadd.f32 %v4080, %v4081
    %v4083 = vrot.slane %v4082, 4
    %v4084 = vadd.f32 %v4082, %v4083
    %v4085 = vrot.slane %v4084, 2
    %v4086 = vadd.f32 %v4084, %v4085
    %v4087 = vrot.slane %v4086, 1
    %v4088 = vadd.f32 %v4086, %v4087
    %v4089 = vsel %vm122, %v4074, 0.0
    %v4090 = vsel %vm122, %v4075, 0.0
    %v4091 = vadd.f32 %v4089, %v4090
    %v4092 = vrot.slane %v4091, 4
    %v4093 = vadd.f32 %v4091, %v4092
    %v4094 = vrot.slane %v4093, 2
    %v4095 = vadd.f32 %v4093, %v4094
    %v4096 = vrot.slane %v4095, 1
    %v4097 = vadd.f32 %v4095, %v4096
    %v4098 = vmul.f32 %v4072, %v4072
    %v4099 = vmul.f32 %v4073, %v4073
    %v4100 = vmul.f32 %v4074, %v4074
    %v4101 = vmul.f32 %v4075, %v4075
    %v4102 = vsel %vm122, %v4098, 0.0
    %v4103 = vsel %vm122, %v4099, 0.0
    %v4104 = vadd.f32 %v4102, %v4103
    %v4105 = vrot.slane %v4104, 4
    %v4106 = vadd.f32 %v4104, %v4105
    %v4107 = vrot.slane %v4106, 2
    %v4108 = vadd.f32 %v4106, %v4107
    %v4109 = vrot.slane %v4108, 1
    %v4110 = vadd.f32 %v4108, %v4109
    %v4111 = vsel %vm122, %v4100, 0.0
    %v4112 = vsel %vm122, %v4101, 0.0
    %v4113 = vadd.f32 %v4111, %v4112
    %v4114 = vrot.slane %v4113, 4
    %v4115 = vadd.f32 %v4113, %v4114
    %v4116 = vrot.slane %v4115, 2
    %v4117 = vadd.f32 %v4115, %v4116
    %v4118 = vrot.slane %v4117, 1
    %v4119 = vadd.f32 %v4117, %v4118
    %v4122 = vsel %vm293, %v4097, %v4088
    %v4123 = vsel %vm122, %v4122, 0
    %4125 = vmatprep.subr.mxu0 0.0
    %4126 = vmatpush1.msra.mxu0 %v73
    %4127 = vmatprep.subr.mxu0 0.0
    %4128 = vmatpush1.msra.mxu0 %v74
    %4129 = vmatprep.subr.mxu0 0.0
    %4130 = vmatpush1.msra.mxu0 %v75
    %4131 = vmatprep.subr.mxu0 0.0
    %4132 = vmatpush1.msra.mxu0 %v76
    %4133 = vmatprep.subr.mxu0 0.0
    %4134 = vmatpush1.msra.mxu0 %v77
    %4135 = vmatprep.subr.mxu0 0.0
    %4136 = vmatpush1.msra.mxu0 %v78
    %4137 = vmatprep.subr.mxu0 0.0
    %4138 = vmatpush1.msra.mxu0 %v79
    %4139 = vmatprep.subr.mxu0 0.0
    %4140 = vmatpush1.msra.mxu0 %v80
    %4141 = vmatprep.subr.mxu0 0.0
    %4142 = vmatpush1.msra.mxu0 0.0
    %4143 = vmatprep.subr.mxu0 0.0
    %4144 = vmatpush1.msra.mxu0 0.0
    %4145 = vmatprep.subr.mxu0 0.0
    %4146 = vmatpush1.msra.mxu0 0.0
    %4147 = vmatprep.subr.mxu0 0.0
    %4148 = vmatpush1.msra.mxu0 0.0
    %4149 = vmatprep.subr.mxu0 0.0
    %4150 = vmatpush1.msra.mxu0 0.0
    %4151 = vmatprep.subr.mxu0 0.0
    %4152 = vmatpush1.msra.mxu0 0.0
    %4153 = vmatprep.subr.mxu0 0.0
    %4154 = vmatpush1.msra.mxu0 0.0
    %4155 = vmatprep.subr.mxu0 0.0
    %4156 = vmatpush1.msra.mxu0 0.0
    %4157 = vmatprep.subr.mxu0 0.0
    %4158 = vmatpush1.msra.mxu0 0.0
    %4159 = vmatprep.subr.mxu0 0.0
    %4160 = vmatpush1.msra.mxu0 0.0
    %4161 = vmatprep.subr.mxu0 0.0
    %4162 = vmatpush1.msra.mxu0 0.0
    %4163 = vmatprep.subr.mxu0 0.0
    %4164 = vmatpush1.msra.mxu0 0.0
    %4165 = vmatprep.subr.mxu0 0.0
    %4166 = vmatpush1.msra.mxu0 0.0
    %4167 = vmatprep.subr.mxu0 0.0
    %4168 = vmatpush1.msra.mxu0 0.0
    %4169 = vmatprep.subr.mxu0 0.0
    %4170 = vmatpush1.msra.mxu0 0.0
    %4171 = vmatprep.subr.mxu0 0.0
    %4172 = vmatpush1.msra.mxu0 0.0
    %4173 = vmatprep.subr.mxu0 0.0
    %4174 = vmatpush1.msra.mxu0 0.0
    %4175 = vmatprep.subr.mxu0 0.0
    %4176 = vmatpush1.msra.mxu0 0.0
    %4177 = vmatprep.subr.mxu0 0.0
    %4178 = vmatpush1.msra.mxu0 0.0
    %4179 = vmatprep.subr.mxu0 0.0
    %4180 = vmatpush1.msra.mxu0 0.0
    %4181 = vmatprep.subr.mxu0 0.0
    %4182 = vmatpush1.msra.mxu0 0.0
    %4183 = vmatprep.subr.mxu0 0.0
    %4184 = vmatpush1.msra.mxu0 0.0
    %4185 = vmatprep.subr.mxu0 0.0
    %4186 = vmatpush1.msra.mxu0 0.0
    %4187 = vmatprep.subr.mxu0 0.0
    %4188 = vmatpush1.msra.mxu0 0.0
    %4189 = vmatprep.mubr.f32.mxu0 0.0
    %4190 = vmatmul.mubr.f32.gmra.mrb[0].mxu0 %v4123
    %v4191 = vpop.f32.mrb[0].mxu0
    %v4192 = vadd.f32 0.0, %v4191
    %v4193 = vpop.f32.mrb[0].mxu0
    %4194 = vdwg.mxu0
    %v4197 = vsel %vm293, %v4119, %v4110
    %v4198 = vsel %vm122, %v4197, 0
    %4200 = vmatprep.subr.mxu0 0.0
    %4201 = vmatpush1.msra.mxu0 %v73
    %4202 = vmatprep.subr.mxu0 0.0
    %4203 = vmatpush1.msra.mxu0 %v74
    %4204 = vmatprep.subr.mxu0 0.0
    %4205 = vmatpush1.msra.mxu0 %v75
    %4206 = vmatprep.subr.mxu0 0.0
    %4207 = vmatpush1.msra.mxu0 %v76
    %4208 = vmatprep.subr.mxu0 0.0
    %4209 = vmatpush1.msra.mxu0 %v77
    %4210 = vmatprep.subr.mxu0 0.0
    %4211 = vmatpush1.msra.mxu0 %v78
    %4212 = vmatprep.subr.mxu0 0.0
    %4213 = vmatpush1.msra.mxu0 %v79
    %4214 = vmatprep.subr.mxu0 0.0
    %4215 = vmatpush1.msra.mxu0 %v80
    %4216 = vmatprep.subr.mxu0 0.0
    %4217 = vmatpush1.msra.mxu0 0.0
    %4218 = vmatprep.subr.mxu0 0.0
    %4219 = vmatpush1.msra.mxu0 0.0
    %4220 = vmatprep.subr.mxu0 0.0
    %4221 = vmatpush1.msra.mxu0 0.0
    %4222 = vmatprep.subr.mxu0 0.0
    %4223 = vmatpush1.msra.mxu0 0.0
    %4224 = vmatprep.subr.mxu0 0.0
    %4225 = vmatpush1.msra.mxu0 0.0
    %4226 = vmatprep.subr.mxu0 0.0
    %4227 = vmatpush1.msra.mxu0 0.0
    %4228 = vmatprep.subr.mxu0 0.0
    %4229 = vmatpush1.msra.mxu0 0.0
    %4230 = vmatprep.subr.mxu0 0.0
    %4231 = vmatpush1.msra.mxu0 0.0
    %4232 = vmatprep.subr.mxu0 0.0
    %4233 = vmatpush1.msra.mxu0 0.0
    %4234 = vmatprep.subr.mxu0 0.0
    %4235 = vmatpush1.msra.mxu0 0.0
    %4236 = vmatprep.subr.mxu0 0.0
    %4237 = vmatpush1.msra.mxu0 0.0
    %4238 = vmatprep.subr.mxu0 0.0
    %4239 = vmatpush1.msra.mxu0 0.0
    %4240 = vmatprep.subr.mxu0 0.0
    %4241 = vmatpush1.msra.mxu0 0.0
    %4242 = vmatprep.subr.mxu0 0.0
    %4243 = vmatpush1.msra.mxu0 0.0
    %4244 = vmatprep.subr.mxu0 0.0
    %4245 = vmatpush1.msra.mxu0 0.0
    %4246 = vmatprep.subr.mxu0 0.0
    %4247 = vmatpush1.msra.mxu0 0.0
    %4248 = vmatprep.subr.mxu0 0.0
    %4249 = vmatpush1.msra.mxu0 0.0
    %4250 = vmatprep.subr.mxu0 0.0
    %4251 = vmatpush1.msra.mxu0 0.0
    %4252 = vmatprep.subr.mxu0 0.0
    %4253 = vmatpush1.msra.mxu0 0.0
    %4254 = vmatprep.subr.mxu0 0.0
    %4255 = vmatpush1.msra.mxu0 0.0
    %4256 = vmatprep.subr.mxu0 0.0
    %4257 = vmatpush1.msra.mxu0 0.0
    %4258 = vmatprep.subr.mxu0 0.0
    %4259 = vmatpush1.msra.mxu0 0.0
    %4260 = vmatprep.subr.mxu0 0.0
    %4261 = vmatpush1.msra.mxu0 0.0
    %4262 = vmatprep.subr.mxu0 0.0
    %4263 = vmatpush1.msra.mxu0 0.0
    %4264 = vmatprep.mubr.f32.mxu0 0.0
    %4265 = vmatmul.mubr.f32.gmra.mrb[0].mxu0 %v4198
    %v4266 = vpop.f32.mrb[0].mxu0
    %v4267 = vadd.f32 0.0, %v4266
    %v4268 = vpop.f32.mrb[0].mxu0
    %4269 = vdwg.mxu0
    %v4270 = vmul.f32 %v4192, 0.03125
    %v4271 = vmul.f32 %v4267, 0.03125
    %v4272 = vmul.f32 %v4270, %v4270
    %v4273 = vsub.f32 %v4271, %v4272
    %v4274 = vmax.f32 %v4273, 0.0
    %v4275 = vadd.f32 %v4274, 1e-06
    %v4276 = vrsqrt.pop %v4275
    %v4278 = vlaneseq
    %v4279 = vshrl.u32 %v4278, 7
    %v4280 = vsub.s32 0, %v4279
    %v4281 = vrot.slane %v4077, %v4280
    %v4283 = vmul.f32 %v4281, %v4276
    %v4284 = vmul.f32 %v4270, %v4283
    %v4286 = vlaneseq
    %v4287 = vshrl.u32 %v4286, 7
    %v4288 = vsub.s32 0, %v4287
    %v4289 = vrot.slane %v4079, %v4288
    %v4291 = vsub.f32 %v4289, %v4284
    %v4294 = vunpack.c.l.s4 1966171168
    %v4295 = vunpack.c.0.s8 %v4294
    %v4296 = vlaneseq
    %v4297 = vshrl.u32 %v4296, 7
    %v4298 = vsub.s32 %v4295, %v4297
    %v4299 = vrot.slane %v4283, %v4298
    %v4300 = vcombine.high %v4299, %v4299
    %v4302 = vunpack.c.l.s4 1966171168
    %v4303 = vunpack.c.0.s8 %v4302
    %v4304 = vlaneseq
    %v4305 = vshrl.u32 %v4304, 7
    %v4306 = vsub.s32 %v4303, %v4305
    %v4307 = vrot.slane %v4299, %v4306
    %v4309 = vunpack.c.l.s4 1966171168
    %v4310 = vunpack.c.0.s8 %v4309
    %v4311 = vlaneseq
    %v4312 = vshrl.u32 %v4311, 7
    %v4313 = vsub.s32 %v4310, %v4312
    %v4314 = vrot.slane %v4300, %v4313
    %v4315 = vlaneseq
    %v4316 = vshrl.u32 %v4315, 7
    %v4317 = vsub.s32 0, %v4316
    %v4318 = vrot.slane %v4307, %v4317
    %v4319 = vlaneseq
    %v4320 = vshrl.u32 %v4319, 7
    %v4321 = vsub.s32 0, %v4320
    %v4322 = vrot.slane %v4314, %v4321
    %v4325 = vmul.f32 %v4072, %v4318
    %v4326 = vmul.f32 %v4073, %v4318
    %v4327 = vmul.f32 %v4074, %v4322
    %v4328 = vmul.f32 %v4075, %v4322
    %v4331 = vunpack.c.l.s4 1966171168
    %v4332 = vunpack.c.0.s8 %v4331
    %v4333 = vlaneseq
    %v4334 = vshrl.u32 %v4333, 7
    %v4335 = vsub.s32 %v4332, %v4334
    %v4336 = vrot.slane %v4291, %v4335
    %v4337 = vcombine.high %v4336, %v4336
    %v4339 = vunpack.c.l.s4 1966171168
    %v4340 = vunpack.c.0.s8 %v4339
    %v4341 = vlaneseq
    %v4342 = vshrl.u32 %v4341, 7
    %v4343 = vsub.s32 %v4340, %v4342
    %v4344 = vrot.slane %v4336, %v4343
    %v4346 = vunpack.c.l.s4 1966171168
    %v4347 = vunpack.c.0.s8 %v4346
    %v4348 = vlaneseq
    %v4349 = vshrl.u32 %v4348, 7
    %v4350 = vsub.s32 %v4347, %v4349
    %v4351 = vrot.slane %v4337, %v4350
    %v4352 = vlaneseq
    %v4353 = vshrl.u32 %v4352, 7
    %v4354 = vsub.s32 0, %v4353
    %v4355 = vrot.slane %v4344, %v4354
    %v4356 = vlaneseq
    %v4357 = vshrl.u32 %v4356, 7
    %v4358 = vsub.s32 0, %v4357
    %v4359 = vrot.slane %v4351, %v4358
    %v4362 = vadd.f32 %v4325, %v4355
    %v4363 = vadd.f32 %v4326, %v4355
    %v4364 = vadd.f32 %v4327, %v4359
    %v4365 = vadd.f32 %v4328, %v4359
    %s4366 = scalar_lea.vmem [#allocation2], 704
    %v4367 = vld [vmem:[%s4366] sm:$0xf]
    %v4368 = vld [vmem:[%s4366 + $0x4] sm:$0xf]
    %v4369 = vld [vmem:[%s4366 + $0x8] sm:$0xf]
    %v4370 = vld [vmem:[%s4366 + $0xc] sm:$0xf]
    %v4371 = vld [vmem:[%s4366 + $0x10] sm:$0xf]
    %v4372 = vld [vmem:[%s4366 + $0x14] sm:$0xf]
    %v4373 = vld [vmem:[%s4366 + $0x18] sm:$0xf]
    %v4374 = vld [vmem:[%s4366 + $0x1c] sm:$0xf]
    %v4375 = vpack.c.bf16 %v4363, %v4362
    %v4376 = vpack.c.bf16 %v4365, %v4364
    %s4377 = scalar_lea.vmem %s4, 34
    %v4378 = vld [vmem:[%s4377] sm:$0x1]
    %v4380 = vlaneseq
    %v4381 = vshrl.u32 %v4380, 7
    %v4382 = vsub.s32 0, %v4381
    %v4383 = vrot.slane %v4378, %v4382
    %v4393 = vunpack.c.l.b16 %v4367
    %v4394 = vunpack.c.l.b16 %v4368
    %v4395 = vunpack.c.l.b16 %v4369
    %v4396 = vunpack.c.l.b16 %v4370
    %v4397 = vunpack.c.l.b16 %v4371
    %v4398 = vunpack.c.l.b16 %v4372
    %v4399 = vunpack.c.l.b16 %v4373
    %v4400 = vunpack.c.l.b16 %v4374
    %v4401 = vpack.c.b16 %v4394, %v4393
    %v4402 = vpack.c.b16 %v4396, %v4395
    %v4403 = vpack.c.b16 %v4398, %v4397
    %v4404 = vpack.c.b16 %v4400, %v4399
    %v4410 = vsel %vm122, %v4375, 0
    %v4413 = vsel %vm122, %v4376, 0
    %4415 = vmatprep.subr.bf16.mxu0 0
    %4416 = vmatpush1.bf16.msra.mxu0 %v4401
    %4417 = vmatprep.subr.bf16.mxu0 0
    %4418 = vmatpush1.bf16.msra.mxu0 %v4402
    %4419 = vmatprep.subr.bf16.mxu0 0
    %4420 = vmatpush1.bf16.msra.mxu0 %v4403
    %4421 = vmatprep.subr.bf16.mxu0 0
    %4422 = vmatpush1.bf16.msra.mxu0 %v4404
    %4423 = vmatprep.subr.bf16.mxu0 0
    %4424 = vmatpush1.bf16.msra.mxu0 0
    %4425 = vmatprep.subr.bf16.mxu0 0
    %4426 = vmatpush1.bf16.msra.mxu0 0
    %4427 = vmatprep.subr.bf16.mxu0 0
    %4428 = vmatpush1.bf16.msra.mxu0 0
    %4429 = vmatprep.subr.bf16.mxu0 0
    %4430 = vmatpush1.bf16.msra.mxu0 0
    %4431 = vmatprep.subr.bf16.mxu0 0
    %4432 = vmatpush1.bf16.msra.mxu0 0
    %4433 = vmatprep.subr.bf16.mxu0 0
    %4434 = vmatpush1.bf16.msra.mxu0 0
    %4435 = vmatprep.subr.bf16.mxu0 0
    %4436 = vmatpush1.bf16.msra.mxu0 0
    %4437 = vmatprep.subr.bf16.mxu0 0
    %4438 = vmatpush1.bf16.msra.mxu0 0
    %4439 = vmatprep.subr.bf16.mxu0 0
    %4440 = vmatpush1.bf16.msra.mxu0 0
    %4441 = vmatprep.subr.bf16.mxu0 0
    %4442 = vmatpush1.bf16.msra.mxu0 0
    %4443 = vmatprep.subr.bf16.mxu0 0
    %4444 = vmatpush1.bf16.msra.mxu0 0
    %4445 = vmatprep.subr.bf16.mxu0 0
    %4446 = vmatpush1.bf16.msra.mxu0 0
    %4447 = vmatprep.mubr.bf16.mxu0 0
    %4448 = vmatmul.mubr.bf16.gmra.mrb[0].mxu0 %v4410
    %v4449 = vpop.f32.mrb[0].mxu0
    %v4450 = vadd.f32 %v4383, %v4449
    %v4451 = vpop.f32.mrb[0].mxu0
    %v4452 = vpop.f32.mrb[0].mxu0
    %v4453 = vadd.f32 %v4383, %v4452
    %v4454 = vpop.f32.mrb[0].mxu0
    %4455 = vmatprep.mubr.bf16.mxu0 0
    %4456 = vmatmul.mubr.bf16.gmra.mrb[0].mxu0 %v4413
    %v4457 = vpop.f32.mrb[0].mxu0
    %v4458 = vadd.f32 %v4383, %v4457
    %v4459 = vpop.f32.mrb[0].mxu0
    %v4460 = vpop.f32.mrb[0].mxu0
    %v4461 = vadd.f32 %v4383, %v4460
    %v4462 = vpop.f32.mrb[0].mxu0
    %4463 = vdwg.mxu0
    %s4464 = scalar_lea.vmem [#allocation2], 736
    %v4465 = vld [vmem:[%s4464] sm:$0xf]
    %v4466 = vld [vmem:[%s4464 + $0x4] sm:$0xf]
    %v4467 = vld [vmem:[%s4464 + $0x8] sm:$0xf]
    %v4468 = vld [vmem:[%s4464 + $0xc] sm:$0xf]
    %v4469 = vld [vmem:[%s4464 + $0x10] sm:$0xf]
    %v4470 = vld [vmem:[%s4464 + $0x14] sm:$0xf]
    %v4471 = vld [vmem:[%s4464 + $0x18] sm:$0xf]
    %v4472 = vld [vmem:[%s4464 + $0x1c] sm:$0xf]
    %s4473 = scalar_lea.vmem %s4, 35
    %v4474 = vld [vmem:[%s4473] sm:$0x1]
    %v4476 = vlaneseq
    %v4477 = vshrl.u32 %v4476, 7
    %v4478 = vsub.s32 0, %v4477
    %v4479 = vrot.slane %v4474, %v4478
    %v4489 = vunpack.c.l.b16 %v4465
    %v4490 = vunpack.c.l.b16 %v4466
    %v4491 = vunpack.c.l.b16 %v4467
    %v4492 = vunpack.c.l.b16 %v4468
    %v4493 = vunpack.c.l.b16 %v4469
    %v4494 = vunpack.c.l.b16 %v4470
    %v4495 = vunpack.c.l.b16 %v4471
    %v4496 = vunpack.c.l.b16 %v4472
    %v4497 = vpack.c.b16 %v4490, %v4489
    %v4498 = vpack.c.b16 %v4492, %v4491
    %v4499 = vpack.c.b16 %v4494, %v4493
    %v4500 = vpack.c.b16 %v4496, %v4495
    %4505 = vmatprep.subr.bf16.mxu0 0
    %4506 = vmatpush1.bf16.msra.mxu0 %v4497
    %4507 = vmatprep.subr.bf16.mxu0 0
    %4508 = vmatpush1.bf16.msra.mxu0 %v4498
    %4509 = vmatprep.subr.bf16.mxu0 0
    %4510 = vmatpush1.bf16.msra.mxu0 %v4499
    %4511 = vmatprep.subr.bf16.mxu0 0
    %4512 = vmatpush1.bf16.msra.mxu0 %v4500
    %4513 = vmatprep.subr.bf16.mxu0 0
    %4514 = vmatpush1.bf16.msra.mxu0 0
    %4515 = vmatprep.subr.bf16.mxu0 0
    %4516 = vmatpush1.bf16.msra.mxu0 0
    %4517 = vmatprep.subr.bf16.mxu0 0
    %4518 = vmatpush1.bf16.msra.mxu0 0
    %4519 = vmatprep.subr.bf16.mxu0 0
    %4520 = vmatpush1.bf16.msra.mxu0 0
    %4521 = vmatprep.subr.bf16.mxu0 0
    %4522 = vmatpush1.bf16.msra.mxu0 0
    %4523 = vmatprep.subr.bf16.mxu0 0
    %4524 = vmatpush1.bf16.msra.mxu0 0
    %4525 = vmatprep.subr.bf16.mxu0 0
    %4526 = vmatpush1.bf16.msra.mxu0 0
    %4527 = vmatprep.subr.bf16.mxu0 0
    %4528 = vmatpush1.bf16.msra.mxu0 0
    %4529 = vmatprep.subr.bf16.mxu0 0
    %4530 = vmatpush1.bf16.msra.mxu0 0
    %4531 = vmatprep.subr.bf16.mxu0 0
    %4532 = vmatpush1.bf16.msra.mxu0 0
    %4533 = vmatprep.subr.bf16.mxu0 0
    %4534 = vmatpush1.bf16.msra.mxu0 0
    %4535 = vmatprep.subr.bf16.mxu0 0
    %4536 = vmatpush1.bf16.msra.mxu0 0
    %4537 = vmatprep.mubr.bf16.mxu0 0
    %4538 = vmatmul.mubr.bf16.gmra.mrb[0].mxu0 %v4410
    %v4539 = vpop.f32.mrb[0].mxu0
    %v4540 = vadd.f32 %v4479, %v4539
    %v4541 = vpop.f32.mrb[0].mxu0
    %v4542 = vpop.f32.mrb[0].mxu0
    %v4543 = vadd.f32 %v4479, %v4542
    %v4544 = vpop.f32.mrb[0].mxu0
    %4545 = vmatprep.mubr.bf16.mxu0 0
    %4546 = vmatmul.mubr.bf16.gmra.mrb[0].mxu0 %v4413
    %v4547 = vpop.f32.mrb[0].mxu0
    %v4548 = vadd.f32 %v4479, %v4547
    %v4549 = vpop.f32.mrb[0].mxu0
    %v4550 = vpop.f32.mrb[0].mxu0
    %v4551 = vadd.f32 %v4479, %v4550
    %v4552 = vpop.f32.mrb[0].mxu0
    %4553 = vdwg.mxu0
    %s4554 = scalar_lea.vmem [#allocation2], 768
    %v4555 = vld [vmem:[%s4554] sm:$0xf]
    %v4556 = vld [vmem:[%s4554 + $0x4] sm:$0xf]
    %v4557 = vld [vmem:[%s4554 + $0x8] sm:$0xf]
    %v4558 = vld [vmem:[%s4554 + $0xc] sm:$0xf]
    %v4559 = vld [vmem:[%s4554 + $0x10] sm:$0xf]
    %v4560 = vld [vmem:[%s4554 + $0x14] sm:$0xf]
    %v4561 = vld [vmem:[%s4554 + $0x18] sm:$0xf]
    %v4562 = vld [vmem:[%s4554 + $0x1c] sm:$0xf]
    %s4563 = scalar_lea.vmem %s4, 36
    %v4564 = vld [vmem:[%s4563] sm:$0x1]
    %v4566 = vlaneseq
    %v4567 = vshrl.u32 %v4566, 7
    %v4568 = vsub.s32 0, %v4567
    %v4569 = vrot.slane %v4564, %v4568
    %v4579 = vunpack.c.l.b16 %v4555
    %v4580 = vunpack.c.l.b16 %v4556
    %v4581 = vunpack.c.l.b16 %v4557
    %v4582 = vunpack.c.l.b16 %v4558
    %v4583 = vunpack.c.l.b16 %v4559
    %v4584 = vunpack.c.l.b16 %v4560
    %v4585 = vunpack.c.l.b16 %v4561
    %v4586 = vunpack.c.l.b16 %v4562
    %v4587 = vpack.c.b16 %v4580, %v4579
    %v4588 = vpack.c.b16 %v4582, %v4581
    %v4589 = vpack.c.b16 %v4584, %v4583
    %v4590 = vpack.c.b16 %v4586, %v4585
    %4595 = vmatprep.subr.bf16.mxu0 0
    %4596 = vmatpush1.bf16.msra.mxu0 %v4587
    %4597 = vmatprep.subr.bf16.mxu0 0
    %4598 = vmatpush1.bf16.msra.mxu0 %v4588
    %4599 = vmatprep.subr.bf16.mxu0 0
    %4600 = vmatpush1.bf16.msra.mxu0 %v4589
    %4601 = vmatprep.subr.bf16.mxu0 0
    %4602 = vmatpush1.bf16.msra.mxu0 %v4590
    %4603 = vmatprep.subr.bf16.mxu0 0
    %4604 = vmatpush1.bf16.msra.mxu0 0
    %4605 = vmatprep.subr.bf16.mxu0 0
    %4606 = vmatpush1.bf16.msra.mxu0 0
    %4607 = vmatprep.subr.bf16.mxu0 0
    %4608 = vmatpush1.bf16.msra.mxu0 0
    %4609 = vmatprep.subr.bf16.mxu0 0
    %4610 = vmatpush1.bf16.msra.mxu0 0
    %4611 = vmatprep.subr.bf16.mxu0 0
    %4612 = vmatpush1.bf16.msra.mxu0 0
    %4613 = vmatprep.subr.bf16.mxu0 0
    %4614 = vmatpush1.bf16.msra.mxu0 0
    %4615 = vmatprep.subr.bf16.mxu0 0
    %4616 = vmatpush1.bf16.msra.mxu0 0
    %4617 = vmatprep.subr.bf16.mxu0 0
    %4618 = vmatpush1.bf16.msra.mxu0 0
    %4619 = vmatprep.subr.bf16.mxu0 0
    %4620 = vmatpush1.bf16.msra.mxu0 0
    %4621 = vmatprep.subr.bf16.mxu0 0
    %4622 = vmatpush1.bf16.msra.mxu0 0
    %4623 = vmatprep.subr.bf16.mxu0 0
    %4624 = vmatpush1.bf16.msra.mxu0 0
    %4625 = vmatprep.subr.bf16.mxu0 0
    %4626 = vmatpush1.bf16.msra.mxu0 0
    %4627 = vmatprep.mubr.bf16.mxu0 0
    %4628 = vmatmul.mubr.bf16.gmra.mrb[0].mxu0 %v4410
    %v4629 = vpop.f32.mrb[0].mxu0
    %v4630 = vadd.f32 %v4569, %v4629
    %v4631 = vpop.f32.mrb[0].mxu0
    %v4632 = vpop.f32.mrb[0].mxu0
    %v4633 = vadd.f32 %v4569, %v4632
    %v4634 = vpop.f32.mrb[0].mxu0
    %4635 = vmatprep.mubr.bf16.mxu0 0
    %4636 = vmatmul.mubr.bf16.gmra.mrb[0].mxu0 %v4413
    %v4637 = vpop.f32.mrb[0].mxu0
    %v4638 = vadd.f32 %v4569, %v4637
    %v4639 = vpop.f32.mrb[0].mxu0
    %v4640 = vpop.f32.mrb[0].mxu0
    %v4641 = vadd.f32 %v4569, %v4640
    %v4642 = vpop.f32.mrb[0].mxu0
    %4643 = vdwg.mxu0
    %v4644 = vmul.f32 %v4540, %v53
    %v4645 = vmul.f32 %v4543, %v54
    %v4646 = vmul.f32 %v4548, %v55
    %v4647 = vmul.f32 %v4551, %v56
    %v4648 = vmul.f32 %v4540, %v57
    %v4649 = vmul.f32 %v4543, %v58
    %v4650 = vmul.f32 %v4548, %v59
    %v4651 = vmul.f32 %v4551, %v60
    %v4652 = vmul.f32 %v4540, %v61
    %v4653 = vmul.f32 %v4543, %v62
    %v4654 = vmul.f32 %v4548, %v63
    %v4655 = vmul.f32 %v4551, %v64
    %v4656 = vmul.f32 %v4540, %v65
    %v4657 = vmul.f32 %v4543, %v66
    %v4658 = vmul.f32 %v4548, %v67
    %v4659 = vmul.f32 %v4551, %v68
    %v4660 = vmul.f32 %v4630, %v53
    %v4661 = vmul.f32 %v4633, %v54
    %v4662 = vmul.f32 %v4638, %v55
    %v4663 = vmul.f32 %v4641, %v56
    %v4664 = vmul.f32 %v4630, %v57
    %v4665 = vmul.f32 %v4633, %v58
    %v4666 = vmul.f32 %v4638, %v59
    %v4667 = vmul.f32 %v4641, %v60
    %v4668 = vmul.f32 %v4630, %v61
    %v4669 = vmul.f32 %v4633, %v62
    %v4670 = vmul.f32 %v4638, %v63
    %v4671 = vmul.f32 %v4641, %v64
    %v4672 = vmul.f32 %v4630, %v65
    %v4673 = vmul.f32 %v4633, %v66
    %v4674 = vmul.f32 %v4638, %v67
    %v4675 = vmul.f32 %v4641, %v68
    %v4676 = vpack.c.bf16 %v4453, %v4450
    %v4677 = vpack.c.bf16 %v4461, %v4458
    %v4678 = vpack.c.bf16 %v4645, %v4644
    %v4679 = vpack.c.bf16 %v4647, %v4646
    %v4680 = vpack.c.bf16 %v4649, %v4648
    %v4681 = vpack.c.bf16 %v4651, %v4650
    %v4682 = vpack.c.bf16 %v4653, %v4652
    %v4683 = vpack.c.bf16 %v4655, %v4654
    %v4684 = vpack.c.bf16 %v4657, %v4656
    %v4685 = vpack.c.bf16 %v4659, %v4658
    %v4687 = vsel %vm122, %v4676, 0
    %v4690 = vsel %vm122, %v4677, 0
    %v4693 = vsel %vm122, %v4678, 0
    %v4696 = vsel %vm122, %v4679, 0
    %v4699 = vsel %vm122, %v4680, 0
    %v4702 = vsel %vm122, %v4681, 0
    %v4705 = vsel %vm122, %v4682, 0
    %v4708 = vsel %vm122, %v4683, 0
    %v4711 = vsel %vm122, %v4684, 0
    %v4714 = vsel %vm122, %v4685, 0
    %4716 = vmatprep.subr.bf16.mxu0 0
    %4717 = vmatpush1.bf16.xpose.msra.mxu0 %v4693
    %4718 = vmatprep.subr.bf16.mxu0 0
    %4719 = vmatpush1.bf16.xpose.msra.mxu0 %v4696
    %4720 = vmatprep.subr.bf16.mxu0 0
    %4721 = vmatpush1.bf16.xpose.msra.mxu0 %v4699
    %4722 = vmatprep.subr.bf16.mxu0 0
    %4723 = vmatpush1.bf16.xpose.msra.mxu0 %v4702
    %4724 = vmatprep.subr.bf16.mxu0 0
    %4725 = vmatpush1.bf16.xpose.msra.mxu0 %v4705
    %4726 = vmatprep.subr.bf16.mxu0 0
    %4727 = vmatpush1.bf16.xpose.msra.mxu0 %v4708
    %4728 = vmatprep.subr.bf16.mxu0 0
    %4729 = vmatpush1.bf16.xpose.msra.mxu0 %v4711
    %4730 = vmatprep.subr.bf16.mxu0 0
    %4731 = vmatpush1.bf16.xpose.msra.mxu0 %v4714
    %4732 = vmatprep.subr.bf16.mxu0 0
    %4733 = vmatpush1.bf16.xpose.msra.mxu0 0
    %4734 = vmatprep.subr.bf16.mxu0 0
    %4735 = vmatpush1.bf16.xpose.msra.mxu0 0
    %4736 = vmatprep.subr.bf16.mxu0 0
    %4737 = vmatpush1.bf16.xpose.msra.mxu0 0
    %4738 = vmatprep.subr.bf16.mxu0 0
    %4739 = vmatpush1.bf16.xpose.msra.mxu0 0
    %4740 = vmatprep.subr.bf16.mxu0 0
    %4741 = vmatpush1.bf16.xpose.msra.mxu0 0
    %4742 = vmatprep.subr.bf16.mxu0 0
    %4743 = vmatpush1.bf16.xpose.msra.mxu0 0
    %4744 = vmatprep.subr.bf16.mxu0 0
    %4745 = vmatpush1.bf16.xpose.msra.mxu0 0
    %4746 = vmatprep.subr.bf16.mxu0 0
    %4747 = vmatpush1.bf16.xpose.msra.mxu0 0
    %4748 = vmatprep.mubr.bf16.mxu0 0
    %4749 = vmatmul.mubr.bf16.gmra.mrb[0].mxu0 %v4687
    %v4750 = vpop.f32.mrb[0].mxu0
    %v4751 = vadd.f32 0.0, %v4750
    %v4752 = vpop.f32.mrb[0].mxu0
    %v4753 = vpop.f32.mrb[0].mxu0
    %v4754 = vadd.f32 0.0, %v4753
    %v4755 = vpop.f32.mrb[0].mxu0
    %4756 = vmatprep.mubr.bf16.mxu0 0
    %4757 = vmatmul.mubr.bf16.gmra.mrb[0].mxu0 %v4690
    %v4758 = vpop.f32.mrb[0].mxu0
    %v4759 = vadd.f32 0.0, %v4758
    %v4760 = vpop.f32.mrb[0].mxu0
    %v4761 = vpop.f32.mrb[0].mxu0
    %v4762 = vadd.f32 0.0, %v4761
    %v4763 = vpop.f32.mrb[0].mxu0
    %4764 = vdwg.mxu0
    %v4765 = vmul.f32 %v4751, 0.25
    %v4766 = vmul.f32 %v4754, 0.25
    %v4767 = vmul.f32 %v4759, 0.25
    %v4768 = vmul.f32 %v4762, 0.25
    %v4769 = vadd.f32 %v4765, %v69
    %v4770 = vadd.f32 %v4766, %v70
    %v4771 = vadd.f32 %v4767, %v71
    %v4772 = vadd.f32 %v4768, %v72
    %4773 = vmax.xlane.f32.xlu0 %v4769
    %v4774 = vpop.xlane.xlu0 %4773
    %4775 = vmax.xlane.f32.xlu0 %v4770
    %v4776 = vpop.xlane.xlu0 %4775
    %4777 = vmax.xlane.f32.xlu0 %v4771
    %v4778 = vpop.xlane.xlu0 %4777
    %4779 = vmax.xlane.f32.xlu0 %v4772
    %v4780 = vpop.xlane.xlu0 %4779
    %v4781 = vsub.f32 %v4769, %v4774
    %v4782 = vsub.f32 %v4770, %v4776
    %v4783 = vsub.f32 %v4771, %v4778
    %v4784 = vsub.f32 %v4772, %v4780
    %v4785 = vmul.f32 %v4781, 1.442695
    %v4786 = vpow.pop %v4785
    %v4787 = vmul.f32 %v4782, 1.442695
    %v4788 = vpow.pop %v4787
    %v4789 = vmul.f32 %v4783, 1.442695
    %v4790 = vpow.pop %v4789
    %v4791 = vmul.f32 %v4784, 1.442695
    %v4792 = vpow.pop %v4791
    %v4793 = vpack.c.bf16 %v4788, %v4786
    %v4794 = vpack.c.bf16 %v4792, %v4790
    %v4795 = vpack.c.bf16 %v4661, %v4660
    %v4796 = vpack.c.bf16 %v4663, %v4662
    %v4797 = vpack.c.bf16 %v4665, %v4664
    %v4798 = vpack.c.bf16 %v4667, %v4666
    %v4799 = vpack.c.bf16 %v4669, %v4668
    %v4800 = vpack.c.bf16 %v4671, %v4670
    %v4801 = vpack.c.bf16 %v4673, %v4672
    %v4802 = vpack.c.bf16 %v4675, %v4674
    %4803 = vmatprep.subr.bf16.mxu0 0
    %4804 = vmatpush1.bf16.msra.mxu0 %v4795
    %4805 = vmatprep.subr.bf16.mxu0 0
    %4806 = vmatpush1.bf16.msra.mxu0 %v4796
    %4807 = vmatprep.subr.bf16.mxu0 0
    %4808 = vmatpush1.bf16.msra.mxu0 %v4797
    %4809 = vmatprep.subr.bf16.mxu0 0
    %4810 = vmatpush1.bf16.msra.mxu0 %v4798
    %4811 = vmatprep.subr.bf16.mxu0 0
    %4812 = vmatpush1.bf16.msra.mxu0 %v4799
    %4813 = vmatprep.subr.bf16.mxu0 0
    %4814 = vmatpush1.bf16.msra.mxu0 %v4800
    %4815 = vmatprep.subr.bf16.mxu0 0
    %4816 = vmatpush1.bf16.msra.mxu0 %v4801
    %4817 = vmatprep.subr.bf16.mxu0 0
    %4818 = vmatpush1.bf16.msra.mxu0 %v4802
    %4819 = vmatprep.subr.bf16.mxu0 0
    %4820 = vmatpush1.bf16.msra.mxu0 0
    %4821 = vmatprep.subr.bf16.mxu0 0
    %4822 = vmatpush1.bf16.msra.mxu0 0
    %4823 = vmatprep.subr.bf16.mxu0 0
    %4824 = vmatpush1.bf16.msra.mxu0 0
    %4825 = vmatprep.subr.bf16.mxu0 0
    %4826 = vmatpush1.bf16.msra.mxu0 0
    %4827 = vmatprep.subr.bf16.mxu0 0
    %4828 = vmatpush1.bf16.msra.mxu0 0
    %4829 = vmatprep.subr.bf16.mxu0 0
    %4830 = vmatpush1.bf16.msra.mxu0 0
    %4831 = vmatprep.subr.bf16.mxu0 0
    %4832 = vmatpush1.bf16.msra.mxu0 0
    %4833 = vmatprep.subr.bf16.mxu0 0
    %4834 = vmatpush1.bf16.msra.mxu0 0
    %4835 = vmatprep.mubr.bf16.mxu0 0
    %4836 = vmatmul.mubr.bf16.gmra.mrb[0].mxu0 %v4793
    %v4837 = vpop.f32.mrb[0].mxu0
    %v4838 = vadd.f32 0.0, %v4837
    %v4839 = vpop.f32.mrb[0].mxu0
    %v4840 = vpop.f32.mrb[0].mxu0
    %v4841 = vadd.f32 0.0, %v4840
    %v4842 = vpop.f32.mrb[0].mxu0
    %4843 = vmatprep.mubr.bf16.mxu0 0
    %4844 = vmatmul.mubr.bf16.gmra.mrb[0].mxu0 %v4794
    %v4845 = vpop.f32.mrb[0].mxu0
    %v4846 = vadd.f32 0.0, %v4845
    %v4847 = vpop.f32.mrb[0].mxu0
    %v4848 = vpop.f32.mrb[0].mxu0
    %v4849 = vadd.f32 0.0, %v4848
    %v4850 = vpop.f32.mrb[0].mxu0
    %4851 = vdwg.mxu0
    %4852 = vmatprep.subr.bf16.mxu0 0
    %4853 = vmatpush1.bf16.msra.mxu0 %v2951
    %4854 = vmatprep.subr.bf16.mxu0 0
    %4855 = vmatpush1.bf16.msra.mxu0 %v2952
    %4856 = vmatprep.subr.bf16.mxu0 0
    %4857 = vmatpush1.bf16.msra.mxu0 %v2953
    %4858 = vmatprep.subr.bf16.mxu0 0
    %4859 = vmatpush1.bf16.msra.mxu0 %v2954
    %4860 = vmatprep.subr.bf16.mxu0 0
    %4861 = vmatpush1.bf16.msra.mxu0 %v2955
    %4862 = vmatprep.subr.bf16.mxu0 0
    %4863 = vmatpush1.bf16.msra.mxu0 %v2956
    %4864 = vmatprep.subr.bf16.mxu0 0
    %4865 = vmatpush1.bf16.msra.mxu0 %v2957
    %4866 = vmatprep.subr.bf16.mxu0 0
    %4867 = vmatpush1.bf16.msra.mxu0 %v2958
    %4868 = vmatprep.subr.bf16.mxu0 0
    %4869 = vmatpush1.bf16.msra.mxu0 0
    %4870 = vmatprep.subr.bf16.mxu0 0
    %4871 = vmatpush1.bf16.msra.mxu0 0
    %4872 = vmatprep.subr.bf16.mxu0 0
    %4873 = vmatpush1.bf16.msra.mxu0 0
    %4874 = vmatprep.subr.bf16.mxu0 0
    %4875 = vmatpush1.bf16.msra.mxu0 0
    %4876 = vmatprep.subr.bf16.mxu0 0
    %4877 = vmatpush1.bf16.msra.mxu0 0
    %4878 = vmatprep.subr.bf16.mxu0 0
    %4879 = vmatpush1.bf16.msra.mxu0 0
    %4880 = vmatprep.subr.bf16.mxu0 0
    %4881 = vmatpush1.bf16.msra.mxu0 0
    %4882 = vmatprep.subr.bf16.mxu0 0
    %4883 = vmatpush1.bf16.msra.mxu0 0
    %4884 = vmatprep.mubr.bf16.mxu0 0
    %4885 = vmatmul.mubr.bf16.gmra.mrb[0].mxu0 %v4793
    %v4886 = vpop.f32.mrb[0].mxu0
    %v4887 = vadd.f32 1e-20, %v4886
    %v4888 = vpop.f32.mrb[0].mxu0
    %v4889 = vpop.f32.mrb[0].mxu0
    %v4890 = vadd.f32 1e-20, %v4889
    %v4891 = vpop.f32.mrb[0].mxu0
    %4892 = vmatprep.mubr.bf16.mxu0 0
    %4893 = vmatmul.mubr.bf16.gmra.mrb[0].mxu0 %v4794
    %v4894 = vpop.f32.mrb[0].mxu0
    %v4895 = vadd.f32 1e-20, %v4894
    %v4896 = vpop.f32.mrb[0].mxu0
    %v4897 = vpop.f32.mrb[0].mxu0
    %v4898 = vadd.f32 1e-20, %v4897
    %v4899 = vpop.f32.mrb[0].mxu0
    %4900 = vdwg.mxu0
    %v4901 = vrcp.pop %v4887
    %v4902 = vrcp.pop %v4890
    %v4903 = vrcp.pop %v4895
    %v4904 = vrcp.pop %v4898
    %v4905 = vmul.f32 %v4838, %v4901
    %v4906 = vmul.f32 %v4841, %v4902
    %v4907 = vmul.f32 %v4846, %v4903
    %v4908 = vmul.f32 %v4849, %v4904
    %s4909 = scalar_lea.vmem [#allocation2], 800
    %v4910 = vld [vmem:[%s4909] sm:$0xf]
    %v4911 = vld [vmem:[%s4909 + $0x4] sm:$0xf]
    %v4912 = vld [vmem:[%s4909 + $0x8] sm:$0xf]
    %v4913 = vld [vmem:[%s4909 + $0xc] sm:$0xf]
    %v4914 = vld [vmem:[%s4909 + $0x10] sm:$0xf]
    %v4915 = vld [vmem:[%s4909 + $0x14] sm:$0xf]
    %v4916 = vld [vmem:[%s4909 + $0x18] sm:$0xf]
    %v4917 = vld [vmem:[%s4909 + $0x1c] sm:$0xf]
    %v4918 = vpack.c.bf16 %v4906, %v4905
    %v4919 = vpack.c.bf16 %v4908, %v4907
    %v4928 = vunpack.c.l.b16 %v4910
    %v4929 = vunpack.c.l.b16 %v4911
    %v4930 = vunpack.c.l.b16 %v4912
    %v4931 = vunpack.c.l.b16 %v4913
    %v4932 = vunpack.c.l.b16 %v4914
    %v4933 = vunpack.c.l.b16 %v4915
    %v4934 = vunpack.c.l.b16 %v4916
    %v4935 = vunpack.c.l.b16 %v4917
    %v4936 = vpack.c.b16 %v4929, %v4928
    %v4937 = vpack.c.b16 %v4931, %v4930
    %v4938 = vpack.c.b16 %v4933, %v4932
    %v4939 = vpack.c.b16 %v4935, %v4934
    %v4945 = vsel %vm122, %v4918, 0
    %v4948 = vsel %vm122, %v4919, 0
    %4950 = vmatprep.subr.bf16.mxu0 0
    %4951 = vmatpush1.bf16.msra.mxu0 %v4936
    %4952 = vmatprep.subr.bf16.mxu0 0
    %4953 = vmatpush1.bf16.msra.mxu0 %v4937
    %4954 = vmatprep.subr.bf16.mxu0 0
    %4955 = vmatpush1.bf16.msra.mxu0 %v4938
    %4956 = vmatprep.subr.bf16.mxu0 0
    %4957 = vmatpush1.bf16.msra.mxu0 %v4939
    %4958 = vmatprep.subr.bf16.mxu0 0
    %4959 = vmatpush1.bf16.msra.mxu0 0
    %4960 = vmatprep.subr.bf16.mxu0 0
    %4961 = vmatpush1.bf16.msra.mxu0 0
    %4962 = vmatprep.subr.bf16.mxu0 0
    %4963 = vmatpush1.bf16.msra.mxu0 0
    %4964 = vmatprep.subr.bf16.mxu0 0
    %4965 = vmatpush1.bf16.msra.mxu0 0
    %4966 = vmatprep.subr.bf16.mxu0 0
    %4967 = vmatpush1.bf16.msra.mxu0 0
    %4968 = vmatprep.subr.bf16.mxu0 0
    %4969 = vmatpush1.bf16.msra.mxu0 0
    %4970 = vmatprep.subr.bf16.mxu0 0
    %4971 = vmatpush1.bf16.msra.mxu0 0
    %4972 = vmatprep.subr.bf16.mxu0 0
    %4973 = vmatpush1.bf16.msra.mxu0 0
    %4974 = vmatprep.subr.bf16.mxu0 0
    %4975 = vmatpush1.bf16.msra.mxu0 0
    %4976 = vmatprep.subr.bf16.mxu0 0
    %4977 = vmatpush1.bf16.msra.mxu0 0
    %4978 = vmatprep.subr.bf16.mxu0 0
    %4979 = vmatpush1.bf16.msra.mxu0 0
    %4980 = vmatprep.subr.bf16.mxu0 0
    %4981 = vmatpush1.bf16.msra.mxu0 0
    %4982 = vmatprep.mubr.bf16.mxu0 0
    %4983 = vmatmul.mubr.bf16.gmra.mrb[0].mxu0 %v4945
    %v4984 = vpop.f32.mrb[0].mxu0
    %v4985 = vadd.f32 0.0, %v4984
    %v4986 = vpop.f32.mrb[0].mxu0
    %v4987 = vpop.f32.mrb[0].mxu0
    %v4988 = vadd.f32 0.0, %v4987
    %v4989 = vpop.f32.mrb[0].mxu0
    %4990 = vmatprep.mubr.bf16.mxu0 0
    %4991 = vmatmul.mubr.bf16.gmra.mrb[0].mxu0 %v4948
    %v4992 = vpop.f32.mrb[0].mxu0
    %v4993 = vadd.f32 0.0, %v4992
    %v4994 = vpop.f32.mrb[0].mxu0
    %v4995 = vpop.f32.mrb[0].mxu0
    %v4996 = vadd.f32 0.0, %v4995
    %v4997 = vpop.f32.mrb[0].mxu0
    %4998 = vdwg.mxu0
    %v4999 = vadd.f32 %v4072, %v4985
    %v5000 = vadd.f32 %v4073, %v4988
    %v5001 = vadd.f32 %v4074, %v4993
    %v5002 = vadd.f32 %v4075, %v4996
    %s5003 = scalar_lea.vmem %s4, 37
    %v5004 = vld [vmem:[%s5003] sm:$0x1]
    %v5006 = vlaneseq
    %v5007 = vshrl.u32 %v5006, 7
    %v5008 = vsub.s32 0, %v5007
    %v5009 = vrot.slane %v5004, %v5008
    %v5011 = vadd.f32 %v4999, %v5009
    %v5012 = vadd.f32 %v5000, %v5009
    %v5013 = vadd.f32 %v5001, %v5009
    %v5014 = vadd.f32 %v5002, %v5009
    %s5015 = scalar_lea.vmem [#allocation2], 352
    %v5016 = vld [vmem:[%s5015] sm:$0xf]
    %v5017 = vld [vmem:[%s5015 + $0x4] sm:$0xf]
    %v5018 = vld [vmem:[%s5015 + $0x8] sm:$0xf]
    %v5019 = vld [vmem:[%s5015 + $0xc] sm:$0xf]
    %v5020 = vld [vmem:[%s5015 + $0x10] sm:$0xf]
    %v5021 = vld [vmem:[%s5015 + $0x14] sm:$0xf]
    %v5022 = vld [vmem:[%s5015 + $0x18] sm:$0xf]
    %v5023 = vld [vmem:[%s5015 + $0x1c] sm:$0xf]
    %v5024 = vpack.c.bf16 %v5012, %v5011
    %v5025 = vpack.c.bf16 %v5014, %v5013
    %s5026 = scalar_lea.vmem %s4, 11
    %v5027 = vld [vmem:[%s5026] sm:$0x1]
    %v5029 = vlaneseq
    %v5030 = vshrl.u32 %v5029, 7
    %v5031 = vsub.s32 0, %v5030
    %v5032 = vrot.slane %v5027, %v5031
    %v5042 = vunpack.c.l.b16 %v5016
    %v5043 = vunpack.c.l.b16 %v5017
    %v5044 = vunpack.c.l.b16 %v5018
    %v5045 = vunpack.c.l.b16 %v5019
    %v5046 = vunpack.c.l.b16 %v5020
    %v5047 = vunpack.c.l.b16 %v5021
    %v5048 = vunpack.c.l.b16 %v5022
    %v5049 = vunpack.c.l.b16 %v5023
    %v5050 = vpack.c.b16 %v5043, %v5042
    %v5051 = vpack.c.b16 %v5045, %v5044
    %v5052 = vpack.c.b16 %v5047, %v5046
    %v5053 = vpack.c.b16 %v5049, %v5048
    %v5059 = vsel %vm122, %v5024, 0
    %v5062 = vsel %vm122, %v5025, 0
    %5064 = vmatprep.subr.bf16.mxu0 0
    %5065 = vmatpush1.bf16.msra.mxu0 %v5050
    %5066 = vmatprep.subr.bf16.mxu0 0
    %5067 = vmatpush1.bf16.msra.mxu0 %v5051
    %5068 = vmatprep.subr.bf16.mxu0 0
    %5069 = vmatpush1.bf16.msra.mxu0 %v5052
    %5070 = vmatprep.subr.bf16.mxu0 0
    %5071 = vmatpush1.bf16.msra.mxu0 %v5053
    %5072 = vmatprep.subr.bf16.mxu0 0
    %5073 = vmatpush1.bf16.msra.mxu0 0
    %5074 = vmatprep.subr.bf16.mxu0 0
    %5075 = vmatpush1.bf16.msra.mxu0 0
    %5076 = vmatprep.subr.bf16.mxu0 0
    %5077 = vmatpush1.bf16.msra.mxu0 0
    %5078 = vmatprep.subr.bf16.mxu0 0
    %5079 = vmatpush1.bf16.msra.mxu0 0
    %5080 = vmatprep.subr.bf16.mxu0 0
    %5081 = vmatpush1.bf16.msra.mxu0 0
    %5082 = vmatprep.subr.bf16.mxu0 0
    %5083 = vmatpush1.bf16.msra.mxu0 0
    %5084 = vmatprep.subr.bf16.mxu0 0
    %5085 = vmatpush1.bf16.msra.mxu0 0
    %5086 = vmatprep.subr.bf16.mxu0 0
    %5087 = vmatpush1.bf16.msra.mxu0 0
    %5088 = vmatprep.subr.bf16.mxu0 0
    %5089 = vmatpush1.bf16.msra.mxu0 0
    %5090 = vmatprep.subr.bf16.mxu0 0
    %5091 = vmatpush1.bf16.msra.mxu0 0
    %5092 = vmatprep.subr.bf16.mxu0 0
    %5093 = vmatpush1.bf16.msra.mxu0 0
    %5094 = vmatprep.subr.bf16.mxu0 0
    %5095 = vmatpush1.bf16.msra.mxu0 0
    %5096 = vmatprep.mubr.bf16.mxu0 0
    %5097 = vmatmul.mubr.bf16.gmra.mrb[0].mxu0 %v5059
    %v5098 = vpop.f32.mrb[0].mxu0
    %v5099 = vadd.f32 %v5032, %v5098
    %v5100 = vpop.f32.mrb[0].mxu0
    %v5101 = vpop.f32.mrb[0].mxu0
    %v5102 = vadd.f32 %v5032, %v5101
    %v5103 = vpop.f32.mrb[0].mxu0
    %5104 = vmatprep.mubr.bf16.mxu0 0
    %5105 = vmatmul.mubr.bf16.gmra.mrb[0].mxu0 %v5062
    %v5106 = vpop.f32.mrb[0].mxu0
    %v5107 = vadd.f32 %v5032, %v5106
    %v5108 = vpop.f32.mrb[0].mxu0
    %v5109 = vpop.f32.mrb[0].mxu0
    %v5110 = vadd.f32 %v5032, %v5109
    %v5111 = vpop.f32.mrb[0].mxu0
    %5112 = vdwg.mxu0
    %s5113 = scalar_lea.vmem [#allocation2], 256
    %v5114 = vld [vmem:[%s5113] sm:$0xf]
    %v5115 = vld [vmem:[%s5113 + $0x4] sm:$0xf]
    %v5116 = vld [vmem:[%s5113 + $0x8] sm:$0xf]
    %v5117 = vld [vmem:[%s5113 + $0xc] sm:$0xf]
    %v5118 = vld [vmem:[%s5113 + $0x10] sm:$0xf]
    %v5119 = vld [vmem:[%s5113 + $0x14] sm:$0xf]
    %v5120 = vld [vmem:[%s5113 + $0x18] sm:$0xf]
    %v5121 = vld [vmem:[%s5113 + $0x1c] sm:$0xf]
    %v5122 = vpack.c.bf16 %v5102, %v5099
    %v5123 = vpack.c.bf16 %v5110, %v5107
    %s5124 = scalar_lea.vmem %s4, 6
    %v5125 = vld [vmem:[%s5124] sm:$0x1]
    %v5127 = vlaneseq
    %v5128 = vshrl.u32 %v5127, 7
    %v5129 = vsub.s32 0, %v5128
    %v5130 = vrot.slane %v5125, %v5129
    %v5140 = vunpack.c.l.b16 %v5114
    %v5141 = vunpack.c.l.b16 %v5115
    %v5142 = vunpack.c.l.b16 %v5116
    %v5143 = vunpack.c.l.b16 %v5117
    %v5144 = vunpack.c.l.b16 %v5118
    %v5145 = vunpack.c.l.b16 %v5119
    %v5146 = vunpack.c.l.b16 %v5120
    %v5147 = vunpack.c.l.b16 %v5121
    %v5148 = vpack.c.b16 %v5141, %v5140
    %v5149 = vpack.c.b16 %v5143, %v5142
    %v5150 = vpack.c.b16 %v5145, %v5144
    %v5151 = vpack.c.b16 %v5147, %v5146
    %v5157 = vsel %vm122, %v5122, 0
    %v5160 = vsel %vm122, %v5123, 0
    %5162 = vmatprep.subr.bf16.mxu0 0
    %5163 = vmatpush1.bf16.msra.mxu0 %v5148
    %5164 = vmatprep.subr.bf16.mxu0 0
    %5165 = vmatpush1.bf16.msra.mxu0 %v5149
    %5166 = vmatprep.subr.bf16.mxu0 0
    %5167 = vmatpush1.bf16.msra.mxu0 %v5150
    %5168 = vmatprep.subr.bf16.mxu0 0
    %5169 = vmatpush1.bf16.msra.mxu0 %v5151
    %5170 = vmatprep.subr.bf16.mxu0 0
    %5171 = vmatpush1.bf16.msra.mxu0 0
    %5172 = vmatprep.subr.bf16.mxu0 0
    %5173 = vmatpush1.bf16.msra.mxu0 0
    %5174 = vmatprep.subr.bf16.mxu0 0
    %5175 = vmatpush1.bf16.msra.mxu0 0
    %5176 = vmatprep.subr.bf16.mxu0 0
    %5177 = vmatpush1.bf16.msra.mxu0 0
    %5178 = vmatprep.subr.bf16.mxu0 0
    %5179 = vmatpush1.bf16.msra.mxu0 0
    %5180 = vmatprep.subr.bf16.mxu0 0
    %5181 = vmatpush1.bf16.msra.mxu0 0
    %5182 = vmatprep.subr.bf16.mxu0 0
    %5183 = vmatpush1.bf16.msra.mxu0 0
    %5184 = vmatprep.subr.bf16.mxu0 0
    %5185 = vmatpush1.bf16.msra.mxu0 0
    %5186 = vmatprep.subr.bf16.mxu0 0
    %5187 = vmatpush1.bf16.msra.mxu0 0
    %5188 = vmatprep.subr.bf16.mxu0 0
    %5189 = vmatpush1.bf16.msra.mxu0 0
    %5190 = vmatprep.subr.bf16.mxu0 0
    %5191 = vmatpush1.bf16.msra.mxu0 0
    %5192 = vmatprep.subr.bf16.mxu0 0
    %5193 = vmatpush1.bf16.msra.mxu0 0
    %5194 = vmatprep.mubr.bf16.mxu0 0
    %5195 = vmatmul.mubr.bf16.gmra.mrb[0].mxu0 %v5157
    %v5196 = vpop.f32.mrb[0].mxu0
    %v5197 = vadd.f32 %v5130, %v5196
    %v5198 = vpop.f32.mrb[0].mxu0
    %v5199 = vpop.f32.mrb[0].mxu0
    %v5200 = vadd.f32 %v5130, %v5199
    %v5201 = vpop.f32.mrb[0].mxu0
    %5202 = vmatprep.mubr.bf16.mxu0 0
    %5203 = vmatmul.mubr.bf16.gmra.mrb[0].mxu0 %v5160
    %v5204 = vpop.f32.mrb[0].mxu0
    %v5205 = vadd.f32 %v5130, %v5204
    %v5206 = vpop.f32.mrb[0].mxu0
    %v5207 = vpop.f32.mrb[0].mxu0
    %v5208 = vadd.f32 %v5130, %v5207
    %v5209 = vpop.f32.mrb[0].mxu0
    %5210 = vdwg.mxu0
    %v5211 = vadd.f32 %v769, %v993
    %v5212 = vadd.f32 %v772, %v996
    %v5213 = vadd.f32 %v777, %v1001
    %v5214 = vadd.f32 %v780, %v1004
    %v5215 = vadd.f32 %v5211, %v5197
    %v5216 = vadd.f32 %v5212, %v5200
    %v5217 = vadd.f32 %v5213, %v5205
    %v5218 = vadd.f32 %v5214, %v5208
    %5219 = vst.msk [vmem:[%s8] sm:$0xff] %vm122, %v5215
    %5220 = vst.msk [vmem:[%s8 + $0x8] sm:$0xff] %vm122, %v5216
    %5221 = vst.msk [vmem:[%s8 + $0x10] sm:$0xff] %vm122, %v5217
    %5222 = vst.msk [vmem:[%s8 + $0x18] sm:$0xff] %vm122, %v5218
    // Predicated region
    $region38: #{absorbing_generator_forward.1} parent=1 // pred_check
      _
    $region39: #{absorbing_generator_forward.1} parent=1 // pred_check_branch
      %5224 = sbr.rel (0) target = $region41
    $region40: #{absorbing_generator_forward.1} parent=1 // pred_region
      _
    $region41: #{absorbing_generator_forward.1} parent=1 // pred_fallthru
      _
    // Predicated region
    $region42: #{absorbing_generator_forward.1} parent=1 // pred_check
      _
    $region43: #{absorbing_generator_forward.1} parent=1 // pred_check_branch
      %5226 = sbr.rel (0) target = $region45
    $region44: #{absorbing_generator_forward.1} parent=1 // pred_region
      _
    $region45: #{absorbing_generator_forward.1} parent=1 // pred_fallthru
      _
    %5227 = vsyncpa [#allocation3], 1

</llo_original>
